<compile_context>
chip_gen: v6e
topology: v6e:2x2x1
jax: 0.10.0
libtpu: 0.0.40
codegen_flags: <defaults>
</compile_context>

<pallas_src>
import functools

import jax
import jax.numpy as jnp
from jax import lax
from jax.experimental import pallas as pl
from jax.experimental.pallas import tpu as pltpu


# ----------------------------- helpers ---------------------------------------
def _round_up(x, m):
    return ((x + m - 1) // m) * m


def _vmem_budget_bytes():
    """Generation-aware VMEM budget (~75% of physical per-core VMEM)."""
    cap = 128 << 20  # v5e/v6e default
    try:
        cap = int(pltpu.get_tpu_info().vmem_capacity_bytes)
    except Exception:
        pass
    return max(int(cap * 3 // 4), 16 << 20)   # ~48 MiB on v7x, ~96 MiB on v5e/v6e


def _vmem_residency(tt, bt, D, Hp):
    """Estimated VMEM residency of one layer's pallas_call."""
    bf16, f32 = 2, 4
    x_io = 2 * tt * bt * D * bf16                     # double-buffered input chunk
    o_io = 2 * tt * bt * Hp * bf16                    # double-buffered output chunk
    w = (D * 4 * Hp + Hp * 4 * Hp) * bf16 + 4 * Hp * f32   # single-buffered weights
    scr = tt * bt * 4 * Hp * f32 + 3 * bt * Hp * f32        # xp + h/c(/out)
    return x_io + o_io + w + scr


def _pick_time_chunk(T, bt, D, Hp, budget, requested=None, m_target=256):
    """Time steps per grid chunk.

    Targets hoisted-projection M = tt*bt >= 256 (fills v6e/v7x MXU, >= 128 for
    v5e), bounded by the generation-aware VMEM budget. T is later padded up to
    a multiple of the chosen tt.
    """
    if requested is not None:
        tt = max(1, min(int(requested), T))
    else:
        tt = max(1, min(T, -(-m_target // bt)))       # ceil(m_target / bt)
    while tt > 1 and _vmem_residency(tt, bt, D, Hp) > budget:
        tt = max(1, tt // 2)
    return tt


def _pad_gate_cols(a, Hp):
    """Pad (n, 4H) gate-ordered columns (i|f|g|o) to (n, 4Hp), zeros per gate."""
    n, H4 = a.shape
    H = H4 // 4
    a = a.reshape(n, 4, H)
    a = jnp.pad(a, ((0, 0), (0, 0), (0, Hp - H)))
    return a.reshape(n, 4 * Hp)


# ------------------- single-buffering support probe ---------------------------
_SINGLE_BUFFER_OK = None


def _single_buffer_supported():
    """Probe once whether pipeline_mode=pl.Buffered(1) compiles & runs."""
    global _SINGLE_BUFFER_OK
    if _SINGLE_BUFFER_OK is None:
        try:
            def _k(x_ref, o_ref):
                o_ref[...] = x_ref[...]

            out = pl.pallas_call(
                _k,
                out_shape=jax.ShapeDtypeStruct((16, 128), jnp.float32),
                grid=(2,),
                in_specs=[pl.BlockSpec((8, 128), lambda i: (0, 0),
                                       pipeline_mode=pl.Buffered(1))],
                out_specs=pl.BlockSpec((8, 128), lambda i: (i, 0)),
            )(jnp.ones((8, 128), jnp.float32))
            jax.block_until_ready(out)
            _SINGLE_BUFFER_OK = True
        except Exception:
            _SINGLE_BUFFER_OK = False
    return _SINGLE_BUFFER_OK


def _resident_spec(shape, index_map):
    """BlockSpec for a grid-invariant operand; single-buffered when supported."""
    if _single_buffer_supported():
        return pl.BlockSpec(shape, index_map, pipeline_mode=pl.Buffered(1))
    return pl.BlockSpec(shape, index_map)


# ----------------------------- Pallas kernels --------------------------------
def _lstm_seq_kernel(x_ref, w_ih_ref, w_hh_ref, b_ref, h_seq_ref,
                     h_scr, c_scr, xp_scr, *, bt, tt, unroll):
    """One LSTM layer, one time-chunk per grid step; writes every hidden state.

    x_ref:     (tt*bt, D)   bf16  time-major (time fastest over chunks of bt rows)
    w_ih_ref:  (D, 4H)      bf16
    w_hh_ref:  (H, 4H)      bf16
    b_ref:     (1, 4H)      f32   (b_ih + b_hh)
    h_seq_ref: (tt*bt, H)   bf16  per-timestep hidden states
    h_scr/c_scr: (bt, H)    f32   recurrent state carried across grid steps
    xp_scr:    (tt*bt, 4H)  f32   hoisted input projection for this chunk
    """
    H = w_hh_ref.shape[0]

    @pl.when(pl.program_id(0) == 0)
    def _():
        h_scr[...] = jnp.zeros_like(h_scr)
        c_scr[...] = jnp.zeros_like(c_scr)

    # Hoisted input projection (+ bias): one big MXU matmul, M = tt*bt.
    xp_scr[...] = (
        jnp.dot(x_ref[...], w_ih_ref[...], preferred_element_type=jnp.float32)
        + b_ref[...]
    )
    w_hh = w_hh_ref[...]

    def step(t, carry):
        h, c = carry  # f32, vreg-resident across the serial loop
        row = pl.multiple_of(t * bt, bt)
        gates = xp_scr[pl.ds(row, bt), :] + jnp.dot(
            h.astype(w_hh.dtype), w_hh, preferred_element_type=jnp.float32)
        # PyTorch gate order: i, f, g, o (lane-aligned: H is a multiple of 128).
        i = jax.nn.sigmoid(gates[:, 0 * H:1 * H])
        f = jax.nn.sigmoid(gates[:, 1 * H:2 * H])
        g = jnp.tanh(gates[:, 2 * H:3 * H])
        o = jax.nn.sigmoid(gates[:, 3 * H:4 * H])
        c = f * c + i * g
        h = o * jnp.tanh(c)
        h_seq_ref[pl.ds(row, bt), :] = h.astype(h_seq_ref.dtype)
        return (h, c)

    h, c = lax.fori_loop(0, tt, step, (h_scr[...], c_scr[...]), unroll=unroll)
    h_scr[...] = h
    c_scr[...] = c


def _lstm_last_kernel(x_ref, w_ih_ref, w_hh_ref, b_ref, seq_ref, out_ref,
                      h_scr, c_scr, xp_scr, *, bt, tt, unroll):
    """Last LSTM layer: accumulates the (bt, H) hidden state at t = seq_len-1
    directly into the grid-resident out_ref (written every chunk)."""
    H = w_hh_ref.shape[0]
    chunk = pl.program_id(0)

    @pl.when(chunk == 0)
    def _():
        h_scr[...] = jnp.zeros_like(h_scr)
        c_scr[...] = jnp.zeros_like(c_scr)
        out_ref[...] = jnp.zeros_like(out_ref)

    xp_scr[...] = (
        jnp.dot(x_ref[...], w_ih_ref[...], preferred_element_type=jnp.float32)
        + b_ref[...]
    )
    w_hh = w_hh_ref[...]

    seq_last = seq_ref[...] - 1          # (bt, 1) int32
    t0 = chunk * tt

    def step(t, carry):
        h, c, last = carry
        row = pl.multiple_of(t * bt, bt)
        gates = xp_scr[pl.ds(row, bt), :] + jnp.dot(
            h.astype(w_hh.dtype), w_hh, preferred_element_type=jnp.float32)
        i = jax.nn.sigmoid(gates[:, 0 * H:1 * H])
        f = jax.nn.sigmoid(gates[:, 1 * H:2 * H])
        g = jnp.tanh(gates[:, 2 * H:3 * H])
        o = jax.nn.sigmoid(gates[:, 3 * H:4 * H])
        c = f * c + i * g
        h = o * jnp.tanh(c)
        last = jnp.where(seq_last == t0 + t, h, last)
        return (h, c, last)

    h, c, last = lax.fori_loop(
        0, tt, step, (h_scr[...], c_scr[...], out_ref[...]), unroll=unroll)
    h_scr[...] = h
    c_scr[...] = c
    out_ref[...] = last    # output block is VMEM-resident across the time axis


# ----------------------------- pallas_call wrappers ---------------------------
def lstm_seq_layer(x_2d, w_ih, w_hh, b, *, batch, time_chunk, vmem_limit):
    """x_2d: (T*batch, D) bf16 time-major -> (T*batch, H) bf16."""
    TB, D = x_2d.shape
    T = TB // batch
    H = w_hh.shape[0]
    tt = time_chunk
    unroll = tt if tt <= 8 else 8
    kernel = functools.partial(_lstm_seq_kernel, bt=batch, tt=tt, unroll=unroll)
    return pl.pallas_call(
        kernel,
        out_shape=jax.ShapeDtypeStruct((TB, H), jnp.bfloat16),
        grid_spec=pltpu.PrefetchScalarGridSpec(
            num_scalar_prefetch=0,
            grid=(T // tt,),
            in_specs=[
                pl.BlockSpec((tt * batch, D), lambda t: (t, 0)),
                _resident_spec((D, 4 * H), lambda t: (0, 0)),
                _resident_spec((H, 4 * H), lambda t: (0, 0)),
                _resident_spec((1, 4 * H), lambda t: (0, 0)),
            ],
            out_specs=pl.BlockSpec((tt * batch, H), lambda t: (t, 0)),
            scratch_shapes=[
                pltpu.VMEM((batch, H), jnp.float32),
                pltpu.VMEM((batch, H), jnp.float32),
                pltpu.VMEM((tt * batch, 4 * H), jnp.float32),
            ],
        ),
        compiler_params=pltpu.CompilerParams(
            dimension_semantics=("arbitrary",),
            vmem_limit_bytes=vmem_limit,
        ),
    )(x_2d, w_ih, w_hh, b)


def lstm_last_layer(x_2d, w_ih, w_hh, b, seq2d, *, batch, time_chunk, vmem_limit):
    """x_2d: (T*batch, D) bf16 -> (batch, H) f32 hidden at t = seq_len-1."""
    TB, D = x_2d.shape
    T = TB // batch
    H = w_hh.shape[0]
    tt = time_chunk
    unroll = tt if tt <= 8 else 8
    kernel = functools.partial(_lstm_last_kernel, bt=batch, tt=tt, unroll=unroll)
    return pl.pallas_call(
        kernel,
        out_shape=jax.ShapeDtypeStruct((batch, H), jnp.float32),
        grid_spec=pltpu.PrefetchScalarGridSpec(
            num_scalar_prefetch=0,
            grid=(T // tt,),
            in_specs=[
                pl.BlockSpec((tt * batch, D), lambda t: (t, 0)),
                _resident_spec((D, 4 * H), lambda t: (0, 0)),
                _resident_spec((H, 4 * H), lambda t: (0, 0)),
                _resident_spec((1, 4 * H), lambda t: (0, 0)),
                _resident_spec((batch, 1), lambda t: (0, 0)),
            ],
            out_specs=pl.BlockSpec((batch, H), lambda t: (0, 0)),
            scratch_shapes=[
                pltpu.VMEM((batch, H), jnp.float32),
                pltpu.VMEM((batch, H), jnp.float32),
                pltpu.VMEM((tt * batch, 4 * H), jnp.float32),
            ],
        ),
        compiler_params=pltpu.CompilerParams(
            dimension_semantics=("arbitrary",),
            vmem_limit_bytes=vmem_limit,
        ),
    )(x_2d, w_ih, w_hh, b, seq2d)


# ------------------------------ Model glue ------------------------------------
def init_params(key, vocab_size, emb_dim, n_hidden, n_layers):
    keys = jax.random.split(key, 1 + 4 * n_layers)
    embed = jax.random.normal(keys[0], (vocab_size, emb_dim), jnp.float32) * 0.1
    embed = embed.at[0].set(0.0)  # padding_idx=0

    bound = 1.0 / jnp.sqrt(n_hidden)
    layers = []
    for l in range(n_layers):
        in_dim = emb_dim if l == 0 else n_hidden
        k_ih, k_hh, k_bih, k_bhh = keys[1 + 4 * l: 1 + 4 * (l + 1)]
        # PyTorch stores (4H, in_dim); keep transposed for x @ W, bf16 for the MXU.
        w_ih = jax.random.uniform(k_ih, (in_dim, 4 * n_hidden), jnp.float32,
                                  -bound, bound).astype(jnp.bfloat16)
        w_hh = jax.random.uniform(k_hh, (n_hidden, 4 * n_hidden), jnp.float32,
                                  -bound, bound).astype(jnp.bfloat16)
        b_ih = jax.random.uniform(k_bih, (4 * n_hidden,), jnp.float32, -bound, bound)
        b_hh = jax.random.uniform(k_bhh, (4 * n_hidden,), jnp.float32, -bound, bound)
        layers.append(dict(w_ih=w_ih, w_hh=w_hh, b=(b_ih + b_hh)[None, :]))
    return dict(embed=embed, layers=layers)


def lstm_forward(params, tokens, seq_len, *, time_chunk=None):
    """tokens: (B, T) int32, seq_len: (B,) int32 (>=1) -> (B, H) f32."""
    B, T = tokens.shape
    E = params["embed"].shape[1]
    H = params["layers"][0]["w_hh"].shape[0]

    # Padding: batch -> x16 (bf16 sublane), features/hidden -> x128 (lane-dense).
    bt = _round_up(B, 16)
    Ep = _round_up(E, 128)
    Hp = _round_up(H, 128)

    budget = _vmem_budget_bytes()
    tt = _pick_time_chunk(T, bt, max(Ep, Hp), Hp, budget, requested=time_chunk)
    Tp = _round_up(T, tt)   # pad time up to a multiple of tt (causal: harmless)

    emb = jnp.take(params["embed"], tokens, axis=0)          # (B, T, E) f32
    x = jnp.transpose(emb, (1, 0, 2))                        # (T, B, E) time-major
    x = jnp.pad(x, ((0, Tp - T), (0, bt - B), (0, Ep - E)))  # zero pad T/B/E
    x = x.reshape(Tp * bt, Ep).astype(jnp.bfloat16)          # (Tp*bt, Ep)

    seq_len_p = jnp.pad(seq_len.astype(jnp.int32), (0, bt - B), constant_values=1)

    # Zero-pad weights to lane-aligned shapes (padded hidden state stays exactly 0).
    padded_layers = []
    for li, layer in enumerate(params["layers"]):
        in_p = Ep if li == 0 else Hp
        w_ih = _pad_gate_cols(layer["w_ih"], Hp)
        w_ih = jnp.pad(w_ih, ((0, in_p - w_ih.shape[0]), (0, 0)))
        w_hh = _pad_gate_cols(layer["w_hh"], Hp)
        w_hh = jnp.pad(w_hh, ((0, Hp - w_hh.shape[0]), (0, 0)))
        b = _pad_gate_cols(layer["b"], Hp)
        padded_layers.append((w_ih, w_hh, b))

    for (w_ih, w_hh, b) in padded_layers[:-1]:
        x = lstm_seq_layer(x, w_ih, w_hh, b,
                           batch=bt, time_chunk=tt, vmem_limit=budget)
    w_ih, w_hh, b = padded_layers[-1]
    seq2d = seq_len_p.reshape(bt, 1)
    out = lstm_last_layer(x, w_ih, w_hh, b, seq2d,
                          batch=bt, time_chunk=tt, vmem_limit=budget)  # (bt, Hp)
    return out[:B, :H]


# -------------------------- Pure-JAX reference --------------------------------
def lstm_forward_ref(params, tokens, seq_len):
    """Matches the kernel's dtype handling (bf16 MXU operands, f32 state)."""
    B, T = tokens.shape
    emb = jnp.take(params["embed"], tokens, axis=0)
    x = jnp.transpose(emb, (1, 0, 2)).astype(jnp.bfloat16)   # (T, B, E)
    hs = None
    for layer in params["layers"]:
        H = layer["w_hh"].shape[0]
        w_ih, w_hh, b = layer["w_ih"], layer["w_hh"], layer["b"]
        T_, B_, D_ = x.shape
        xp = (jnp.dot(x.reshape(T_ * B_, D_), w_ih,
                      preferred_element_type=jnp.float32)
              + b).reshape(T_, B_, 4 * H)

        def step(carry, xp_t):
            h, c = carry
            gates = xp_t + jnp.dot(h.astype(jnp.bfloat16), w_hh,
                                   preferred_element_type=jnp.float32)
            i = jax.nn.sigmoid(gates[:, 0 * H:1 * H])
            f = jax.nn.sigmoid(gates[:, 1 * H:2 * H])
            g = jnp.tanh(gates[:, 2 * H:3 * H])
            o = jax.nn.sigmoid(gates[:, 3 * H:4 * H])
            c = f * c + i * g
            h = o * jnp.tanh(c)
            return (h, c), h

        init = (jnp.zeros((B_, H), jnp.float32), jnp.zeros((B_, H), jnp.float32))
        _, hs = lax.scan(step, init, xp)      # (T, B, H) f32
        x = hs.astype(jnp.bfloat16)
    h_bth = jnp.transpose(hs, (1, 0, 2))      # (B, T, H) f32
    return h_bth[jnp.arange(B), seq_len - 1]


# --------------------------------- Main ----------------------------------------
if __name__ == "__main__":
    vocab_size, emb_dim, n_hidden, n_layers = 100, 32, 32, 2
    B, T = 2, 8

    key = jax.random.PRNGKey(0)
    k_params, k_tok = jax.random.split(key)
    params = init_params(k_params, vocab_size, emb_dim, n_hidden, n_layers)

    seq_len = jnp.array([8, 5], dtype=jnp.int32)   # must be >= 1
    tokens = jax.random.randint(k_tok, (B, T), 1, vocab_size, dtype=jnp.int32)
    pad_mask = jnp.arange(T)[None, :] < seq_len[:, None]
    tokens = jnp.where(pad_mask, tokens, 0)        # padding_idx = 0

    # time_chunk=4 keeps a 2-step grid in the demo to exercise the cross-chunk
    # state carry; leave None in production to auto-size from the VMEM budget.
    fwd = jax.jit(functools.partial(lstm_forward, params, time_chunk=4))
    out = fwd(tokens, seq_len)
    jax.block_until_ready(out)

    ref = lstm_forward_ref(params, tokens, seq_len)
    assert out.shape == (B, n_hidden)
    max_err = float(jnp.max(jnp.abs(out - ref)))
    assert jnp.allclose(out, ref, atol=1e-2, rtol=1e-2), f"max abs err {max_err}"

    print("KERNEL_OK")
</pallas_src>

<mosaic_0001>
module attributes {stable_mosaic.version = 11 : i64} {
  func.func @_lstm_seq_kernel(%arg0: i32, %arg1: memref<64x128xbf16, #tpu.memory_space<vmem>>, %arg2: memref<128x512xbf16, #tpu.memory_space<vmem>>, %arg3: memref<128x512xbf16, #tpu.memory_space<vmem>>, %arg4: memref<1x512xf32, #tpu.memory_space<vmem>>, %arg5: memref<64x128xbf16, #tpu.memory_space<vmem>>, %arg6: memref<16x128xf32, #tpu.memory_space<vmem>>, %arg7: memref<16x128xf32, #tpu.memory_space<vmem>>, %arg8: memref<64x512xf32, #tpu.memory_space<vmem>>) attributes {dimension_semantics = [#tpu.dimension_semantics<arbitrary>], iteration_bounds = array<i64: 2>, scalar_prefetch = 0 : i64, scratch_operands = 3 : i64, tpu.core_type = #tpu.core_type<tc>, window_params = [{transform_indices = @transform_0, window_bounds = array<i64: 64, 128>}, {pipeline_mode = #tpu.pipeline_mode<synchronous>, transform_indices = @transform_1, window_bounds = array<i64: 128, 512>}, {pipeline_mode = #tpu.pipeline_mode<synchronous>, transform_indices = @transform_2, window_bounds = array<i64: 128, 512>}, {pipeline_mode = #tpu.pipeline_mode<synchronous>, transform_indices = @transform_3, window_bounds = array<i64: 1, 512>}, {transform_indices = @transform_4, window_bounds = array<i64: 64, 128>}]} {
    %c0_i32 = arith.constant 0 : i32
    %0 = arith.cmpi eq, %arg0, %c0_i32 : i32
    %1 = arith.extui %0 : i1 to i32
    %c0_i32_0 = arith.constant 0 : i32
    %2 = arith.cmpi ne, %1, %c0_i32_0 : i32
    scf.if %2 {
      %cst_46 = arith.constant 0.000000e+00 : f32
      %155 = vector.broadcast %cst_46 : f32 to vector<16x128xf32>
      %c0_47 = arith.constant 0 : index
      %c0_48 = arith.constant 0 : index
      %156 = vector.load %arg6[%c0_47, %c0_48] : memref<16x128xf32, #tpu.memory_space<vmem>>, vector<16x128xf32>
      tpu.vector_store %arg6[%c0_47, %c0_48], %155 {strides = array<i32>} : memref<16x128xf32, #tpu.memory_space<vmem>>, vector<16x128xf32>,
      %cst_49 = arith.constant 0.000000e+00 : f32
      %157 = vector.broadcast %cst_49 : f32 to vector<16x128xf32>
      %c0_50 = arith.constant 0 : index
      %c0_51 = arith.constant 0 : index
      %158 = vector.load %arg7[%c0_50, %c0_51] : memref<16x128xf32, #tpu.memory_space<vmem>>, vector<16x128xf32>
      tpu.vector_store %arg7[%c0_50, %c0_51], %157 {strides = array<i32>} : memref<16x128xf32, #tpu.memory_space<vmem>>, vector<16x128xf32>,
    } else {
    }
    %c0 = arith.constant 0 : index
    %c0_1 = arith.constant 0 : index
    %3 = vector.load %arg1[%c0, %c0_1] : memref<64x128xbf16, #tpu.memory_space<vmem>>, vector<64x128xbf16>
    %c0_2 = arith.constant 0 : index
    %c0_3 = arith.constant 0 : index
    %4 = vector.load %arg2[%c0_2, %c0_3] : memref<128x512xbf16, #tpu.memory_space<vmem>>, vector<128x512xbf16>
    %cst = arith.constant dense<0.000000e+00> : vector<64x512xf32>
    %5 = tpu.matmul %3, %4, %cst {dimension_numbers = #tpu.dot_dimension_numbers<[1], [0], [0], [1], [0, 0, 1, 1], [], []>} : vector<64x128xbf16>, vector<128x512xbf16>, vector<64x512xf32> -> vector<64x512xf32>
    %c0_4 = arith.constant 0 : index
    %c0_5 = arith.constant 0 : index
    %6 = vector.load %arg4[%c0_4, %c0_5] : memref<1x512xf32, #tpu.memory_space<vmem>>, vector<1x512xf32>
    %7 = vector.broadcast %6 : vector<1x512xf32> to vector<64x512xf32>
    %8 = arith.addf %5, %7 : vector<64x512xf32>
    %c0_6 = arith.constant 0 : index
    %c0_7 = arith.constant 0 : index
    %9 = vector.load %arg8[%c0_6, %c0_7] : memref<64x512xf32, #tpu.memory_space<vmem>>, vector<64x512xf32>
    tpu.vector_store %arg8[%c0_6, %c0_7], %8 {strides = array<i32>} : memref<64x512xf32, #tpu.memory_space<vmem>>, vector<64x512xf32>,
    %c0_8 = arith.constant 0 : index
    %c0_9 = arith.constant 0 : index
    %10 = vector.load %arg3[%c0_8, %c0_9] : memref<128x512xbf16, #tpu.memory_space<vmem>>, vector<128x512xbf16>
    %c0_10 = arith.constant 0 : index
    %c0_11 = arith.constant 0 : index
    %11 = vector.load %arg6[%c0_10, %c0_11] : memref<16x128xf32, #tpu.memory_space<vmem>>, vector<16x128xf32>
    %c0_12 = arith.constant 0 : index
    %c0_13 = arith.constant 0 : index
    %12 = vector.load %arg7[%c0_12, %c0_13] : memref<16x128xf32, #tpu.memory_space<vmem>>, vector<16x128xf32>
    %c0_i32_14 = arith.constant 0 : i32
    %c16_i32 = arith.constant 16 : i32
    %13 = arith.muli %c0_i32_14, %c16_i32 : i32
    %14 = tpu.assume_multiple %13, 16 : i32
    %15 = arith.index_cast %14 : i32 to index
    %c0_15 = arith.constant 0 : index
    %16 = vector.load %arg8[%15, %c0_15] : memref<64x512xf32, #tpu.memory_space<vmem>>, vector<16x512xf32>
    %17 = arith.truncf %11 : vector<16x128xf32> to vector<16x128xbf16>
    %cst_16 = arith.constant dense<0.000000e+00> : vector<16x512xf32>
    %18 = tpu.matmul %17, %10, %cst_16 {dimension_numbers = #tpu.dot_dimension_numbers<[1], [0], [0], [1], [0, 0, 1, 1], [], []>} : vector<16x128xbf16>, vector<128x512xbf16>, vector<16x512xf32> -> vector<16x512xf32>
    %19 = arith.addf %16, %18 : vector<16x512xf32>
    %20 = vector.extract_strided_slice %19 {offsets = [0, 0], sizes = [16, 128], strides = [1, 1]} : vector<16x512xf32> to vector<16x128xf32>
    %21 = arith.negf %20 : vector<16x128xf32>
    %22 = math.exp %21 : vector<16x128xf32>
    %cst_17 = arith.constant 1.000000e+00 : f32
    %23 = vector.broadcast %cst_17 : f32 to vector<16x128xf32>
    %24 = arith.addf %23, %22 : vector<16x128xf32>
    %25 = arith.divf %23, %24 : vector<16x128xf32>
    %26 = vector.extract_strided_slice %19 {offsets = [0, 128], sizes = [16, 128], strides = [1, 1]} : vector<16x512xf32> to vector<16x128xf32>
    %27 = arith.negf %26 : vector<16x128xf32>
    %28 = math.exp %27 : vector<16x128xf32>
    %cst_18 = arith.constant 1.000000e+00 : f32
    %29 = vector.broadcast %cst_18 : f32 to vector<16x128xf32>
    %30 = arith.addf %29, %28 : vector<16x128xf32>
    %31 = arith.divf %29, %30 : vector<16x128xf32>
    %32 = vector.extract_strided_slice %19 {offsets = [0, 256], sizes = [16, 128], strides = [1, 1]} : vector<16x512xf32> to vector<16x128xf32>
    %33 = math.tanh %32 : vector<16x128xf32>
    %34 = vector.extract_strided_slice %19 {offsets = [0, 384], sizes = [16, 128], strides = [1, 1]} : vector<16x512xf32> to vector<16x128xf32>
    %35 = arith.negf %34 : vector<16x128xf32>
    %36 = math.exp %35 : vector<16x128xf32>
    %cst_19 = arith.constant 1.000000e+00 : f32
    %37 = vector.broadcast %cst_19 : f32 to vector<16x128xf32>
    %38 = arith.addf %37, %36 : vector<16x128xf32>
    %39 = arith.divf %37, %38 : vector<16x128xf32>
    %40 = arith.mulf %31, %12 : vector<16x128xf32>
    %41 = arith.mulf %25, %33 : vector<16x128xf32>
    %42 = arith.addf %40, %41 : vector<16x128xf32>
    %43 = math.tanh %42 : vector<16x128xf32>
    %44 = arith.mulf %39, %43 : vector<16x128xf32>
    %45 = arith.truncf %44 : vector<16x128xf32> to vector<16x128xbf16>
    %46 = arith.index_cast %14 : i32 to index
    %c0_20 = arith.constant 0 : index
    %47 = vector.load %arg5[%46, %c0_20] : memref<64x128xbf16, #tpu.memory_space<vmem>>, vector<16x128xbf16>
    tpu.vector_store %arg5[%46, %c0_20], %45 {strides = array<i32>} : memref<64x128xbf16, #tpu.memory_space<vmem>>, vector<16x128xbf16>,
    %c1_i32 = arith.constant 1 : i32
    %c16_i32_21 = arith.constant 16 : i32
    %48 = arith.muli %c1_i32, %c16_i32_21 : i32
    %49 = tpu.assume_multiple %48, 16 : i32
    %50 = arith.index_cast %49 : i32 to index
    %c0_22 = arith.constant 0 : index
    %51 = vector.load %arg8[%50, %c0_22] : memref<64x512xf32, #tpu.memory_space<vmem>>, vector<16x512xf32>
    %52 = arith.truncf %44 : vector<16x128xf32> to vector<16x128xbf16>
    %cst_23 = arith.constant dense<0.000000e+00> : vector<16x512xf32>
    %53 = tpu.matmul %52, %10, %cst_23 {dimension_numbers = #tpu.dot_dimension_numbers<[1], [0], [0], [1], [0, 0, 1, 1], [], []>} : vector<16x128xbf16>, vector<128x512xbf16>, vector<16x512xf32> -> vector<16x512xf32>
    %54 = arith.addf %51, %53 : vector<16x512xf32>
    %55 = vector.extract_strided_slice %54 {offsets = [0, 0], sizes = [16, 128], strides = [1, 1]} : vector<16x512xf32> to vector<16x128xf32>
    %56 = arith.negf %55 : vector<16x128xf32>
    %57 = math.exp %56 : vector<16x128xf32>
    %cst_24 = arith.constant 1.000000e+00 : f32
    %58 = vector.broadcast %cst_24 : f32 to vector<16x128xf32>
    %59 = arith.addf %58, %57 : vector<16x128xf32>
    %60 = arith.divf %58, %59 : vector<16x128xf32>
    %61 = vector.extract_strided_slice %54 {offsets = [0, 128], sizes = [16, 128], strides = [1, 1]} : vector<16x512xf32> to vector<16x128xf32>
    %62 = arith.negf %61 : vector<16x128xf32>
    %63 = math.exp %62 : vector<16x128xf32>
    %cst_25 = arith.constant 1.000000e+00 : f32
    %64 = vector.broadcast %cst_25 : f32 to vector<16x128xf32>
    %65 = arith.addf %64, %63 : vector<16x128xf32>
    %66 = arith.divf %64, %65 : vector<16x128xf32>
    %67 = vector.extract_strided_slice %54 {offsets = [0, 256], sizes = [16, 128], strides = [1, 1]} : vector<16x512xf32> to vector<16x128xf32>
    %68 = math.tanh %67 : vector<16x128xf32>
    %69 = vector.extract_strided_slice %54 {offsets = [0, 384], sizes = [16, 128], strides = [1, 1]} : vector<16x512xf32> to vector<16x128xf32>
    %70 = arith.negf %69 : vector<16x128xf32>
    %71 = math.exp %70 : vector<16x128xf32>
    %cst_26 = arith.constant 1.000000e+00 : f32
    %72 = vector.broadcast %cst_26 : f32 to vector<16x128xf32>
    %73 = arith.addf %72, %71 : vector<16x128xf32>
    %74 = arith.divf %72, %73 : vector<16x128xf32>
    %75 = arith.mulf %66, %42 : vector<16x128xf32>
    %76 = arith.mulf %60, %68 : vector<16x128xf32>
    %77 = arith.addf %75, %76 : vector<16x128xf32>
    %78 = math.tanh %77 : vector<16x128xf32>
    %79 = arith.mulf %74, %78 : vector<16x128xf32>
    %80 = arith.truncf %79 : vector<16x128xf32> to vector<16x128xbf16>
    %81 = arith.index_cast %49 : i32 to index
    %c0_27 = arith.constant 0 : index
    %82 = vector.load %arg5[%81, %c0_27] : memref<64x128xbf16, #tpu.memory_space<vmem>>, vector<16x128xbf16>
    tpu.vector_store %arg5[%81, %c0_27], %80 {strides = array<i32>} : memref<64x128xbf16, #tpu.memory_space<vmem>>, vector<16x128xbf16>,
    %c2_i32 = arith.constant 2 : i32
    %c16_i32_28 = arith.constant 16 : i32
    %83 = arith.muli %c2_i32, %c16_i32_28 : i32
    %84 = tpu.assume_multiple %83, 16 : i32
    %85 = arith.index_cast %84 : i32 to index
    %c0_29 = arith.constant 0 : index
    %86 = vector.load %arg8[%85, %c0_29] : memref<64x512xf32, #tpu.memory_space<vmem>>, vector<16x512xf32>
    %87 = arith.truncf %79 : vector<16x128xf32> to vector<16x128xbf16>
    %cst_30 = arith.constant dense<0.000000e+00> : vector<16x512xf32>
    %88 = tpu.matmul %87, %10, %cst_30 {dimension_numbers = #tpu.dot_dimension_numbers<[1], [0], [0], [1], [0, 0, 1, 1], [], []>} : vector<16x128xbf16>, vector<128x512xbf16>, vector<16x512xf32> -> vector<16x512xf32>
    %89 = arith.addf %86, %88 : vector<16x512xf32>
    %90 = vector.extract_strided_slice %89 {offsets = [0, 0], sizes = [16, 128], strides = [1, 1]} : vector<16x512xf32> to vector<16x128xf32>
    %91 = arith.negf %90 : vector<16x128xf32>
    %92 = math.exp %91 : vector<16x128xf32>
    %cst_31 = arith.constant 1.000000e+00 : f32
    %93 = vector.broadcast %cst_31 : f32 to vector<16x128xf32>
    %94 = arith.addf %93, %92 : vector<16x128xf32>
    %95 = arith.divf %93, %94 : vector<16x128xf32>
    %96 = vector.extract_strided_slice %89 {offsets = [0, 128], sizes = [16, 128], strides = [1, 1]} : vector<16x512xf32> to vector<16x128xf32>
    %97 = arith.negf %96 : vector<16x128xf32>
    %98 = math.exp %97 : vector<16x128xf32>
    %cst_32 = arith.constant 1.000000e+00 : f32
    %99 = vector.broadcast %cst_32 : f32 to vector<16x128xf32>
    %100 = arith.addf %99, %98 : vector<16x128xf32>
    %101 = arith.divf %99, %100 : vector<16x128xf32>
    %102 = vector.extract_strided_slice %89 {offsets = [0, 256], sizes = [16, 128], strides = [1, 1]} : vector<16x512xf32> to vector<16x128xf32>
    %103 = math.tanh %102 : vector<16x128xf32>
    %104 = vector.extract_strided_slice %89 {offsets = [0, 384], sizes = [16, 128], strides = [1, 1]} : vector<16x512xf32> to vector<16x128xf32>
    %105 = arith.negf %104 : vector<16x128xf32>
    %106 = math.exp %105 : vector<16x128xf32>
    %cst_33 = arith.constant 1.000000e+00 : f32
    %107 = vector.broadcast %cst_33 : f32 to vector<16x128xf32>
    %108 = arith.addf %107, %106 : vector<16x128xf32>
    %109 = arith.divf %107, %108 : vector<16x128xf32>
    %110 = arith.mulf %101, %77 : vector<16x128xf32>
    %111 = arith.mulf %95, %103 : vector<16x128xf32>
    %112 = arith.addf %110, %111 : vector<16x128xf32>
    %113 = math.tanh %112 : vector<16x128xf32>
    %114 = arith.mulf %109, %113 : vector<16x128xf32>
    %115 = arith.truncf %114 : vector<16x128xf32> to vector<16x128xbf16>
    %116 = arith.index_cast %84 : i32 to index
    %c0_34 = arith.constant 0 : index
    %117 = vector.load %arg5[%116, %c0_34] : memref<64x128xbf16, #tpu.memory_space<vmem>>, vector<16x128xbf16>
    tpu.vector_store %arg5[%116, %c0_34], %115 {strides = array<i32>} : memref<64x128xbf16, #tpu.memory_space<vmem>>, vector<16x128xbf16>,
    %c3_i32 = arith.constant 3 : i32
    %c16_i32_35 = arith.constant 16 : i32
    %118 = arith.muli %c3_i32, %c16_i32_35 : i32
    %119 = tpu.assume_multiple %118, 16 : i32
    %120 = arith.index_cast %119 : i32 to index
    %c0_36 = arith.constant 0 : index
    %121 = vector.load %arg8[%120, %c0_36] : memref<64x512xf32, #tpu.memory_space<vmem>>, vector<16x512xf32>
    %122 = arith.truncf %114 : vector<16x128xf32> to vector<16x128xbf16>
    %cst_37 = arith.constant dense<0.000000e+00> : vector<16x512xf32>
    %123 = tpu.matmul %122, %10, %cst_37 {dimension_numbers = #tpu.dot_dimension_numbers<[1], [0], [0], [1], [0, 0, 1, 1], [], []>} : vector<16x128xbf16>, vector<128x512xbf16>, vector<16x512xf32> -> vector<16x512xf32>
    %124 = arith.addf %121, %123 : vector<16x512xf32>
    %125 = vector.extract_strided_slice %124 {offsets = [0, 0], sizes = [16, 128], strides = [1, 1]} : vector<16x512xf32> to vector<16x128xf32>
    %126 = arith.negf %125 : vector<16x128xf32>
    %127 = math.exp %126 : vector<16x128xf32>
    %cst_38 = arith.constant 1.000000e+00 : f32
    %128 = vector.broadcast %cst_38 : f32 to vector<16x128xf32>
    %129 = arith.addf %128, %127 : vector<16x128xf32>
    %130 = arith.divf %128, %129 : vector<16x128xf32>
    %131 = vector.extract_strided_slice %124 {offsets = [0, 128], sizes = [16, 128], strides = [1, 1]} : vector<16x512xf32> to vector<16x128xf32>
    %132 = arith.negf %131 : vector<16x128xf32>
    %133 = math.exp %132 : vector<16x128xf32>
    %cst_39 = arith.constant 1.000000e+00 : f32
    %134 = vector.broadcast %cst_39 : f32 to vector<16x128xf32>
    %135 = arith.addf %134, %133 : vector<16x128xf32>
    %136 = arith.divf %134, %135 : vector<16x128xf32>
    %137 = vector.extract_strided_slice %124 {offsets = [0, 256], sizes = [16, 128], strides = [1, 1]} : vector<16x512xf32> to vector<16x128xf32>
    %138 = math.tanh %137 : vector<16x128xf32>
    %139 = vector.extract_strided_slice %124 {offsets = [0, 384], sizes = [16, 128], strides = [1, 1]} : vector<16x512xf32> to vector<16x128xf32>
    %140 = arith.negf %139 : vector<16x128xf32>
    %141 = math.exp %140 : vector<16x128xf32>
    %cst_40 = arith.constant 1.000000e+00 : f32
    %142 = vector.broadcast %cst_40 : f32 to vector<16x128xf32>
    %143 = arith.addf %142, %141 : vector<16x128xf32>
    %144 = arith.divf %142, %143 : vector<16x128xf32>
    %145 = arith.mulf %136, %112 : vector<16x128xf32>
    %146 = arith.mulf %130, %138 : vector<16x128xf32>
    %147 = arith.addf %145, %146 : vector<16x128xf32>
    %148 = math.tanh %147 : vector<16x128xf32>
    %149 = arith.mulf %144, %148 : vector<16x128xf32>
    %150 = arith.truncf %149 : vector<16x128xf32> to vector<16x128xbf16>
    %151 = arith.index_cast %119 : i32 to index
    %c0_41 = arith.constant 0 : index
    %152 = vector.load %arg5[%151, %c0_41] : memref<64x128xbf16, #tpu.memory_space<vmem>>, vector<16x128xbf16>
    tpu.vector_store %arg5[%151, %c0_41], %150 {strides = array<i32>} : memref<64x128xbf16, #tpu.memory_space<vmem>>, vector<16x128xbf16>,
    %c4_i32 = arith.constant 4 : i32
    %c0_42 = arith.constant 0 : index
    %c0_43 = arith.constant 0 : index
    %153 = vector.load %arg6[%c0_42, %c0_43] : memref<16x128xf32, #tpu.memory_space<vmem>>, vector<16x128xf32>
    tpu.vector_store %arg6[%c0_42, %c0_43], %149 {strides = array<i32>} : memref<16x128xf32, #tpu.memory_space<vmem>>, vector<16x128xf32>,
    %c0_44 = arith.constant 0 : index
    %c0_45 = arith.constant 0 : index
    %154 = vector.load %arg7[%c0_44, %c0_45] : memref<16x128xf32, #tpu.memory_space<vmem>>, vector<16x128xf32>
    tpu.vector_store %arg7[%c0_44, %c0_45], %147 {strides = array<i32>} : memref<16x128xf32, #tpu.memory_space<vmem>>, vector<16x128xf32>,
    return
  }
  func.func @transform_0(%arg0: i32) -> (i32, i32) {
    %c0_i32 = arith.constant 0 : i32
    %c0_i32_0 = arith.constant 0 : i32
    return %arg0, %c0_i32 : i32, i32
  }
  func.func @transform_1(%arg0: i32) -> (i32, i32) {
    %c0_i32 = arith.constant 0 : i32
    %c0_i32_0 = arith.constant 0 : i32
    %c0_i32_1 = arith.constant 0 : i32
    return %c0_i32, %c0_i32_0 : i32, i32
  }
  func.func @transform_2(%arg0: i32) -> (i32, i32) {
    %c0_i32 = arith.constant 0 : i32
    %c0_i32_0 = arith.constant 0 : i32
    %c0_i32_1 = arith.constant 0 : i32
    return %c0_i32, %c0_i32_0 : i32, i32
  }
  func.func @transform_3(%arg0: i32) -> (i32, i32) {
    %c0_i32 = arith.constant 0 : i32
    %c0_i32_0 = arith.constant 0 : i32
    %c0_i32_1 = arith.constant 0 : i32
    return %c0_i32, %c0_i32_0 : i32, i32
  }
  func.func @transform_4(%arg0: i32) -> (i32, i32) {
    %c0_i32 = arith.constant 0 : i32
    %c0_i32_0 = arith.constant 0 : i32
    return %arg0, %c0_i32 : i32, i32
  }
}

module attributes {stable_mosaic.version = 11 : i64} {
  func.func @_lstm_last_kernel(%arg0: i32, %arg1: memref<64x128xbf16, #tpu.memory_space<vmem>>, %arg2: memref<128x512xbf16, #tpu.memory_space<vmem>>, %arg3: memref<128x512xbf16, #tpu.memory_space<vmem>>, %arg4: memref<1x512xf32, #tpu.memory_space<vmem>>, %arg5: memref<16x1xi32, #tpu.memory_space<vmem>>, %arg6: memref<16x128xf32, #tpu.memory_space<vmem>>, %arg7: memref<16x128xf32, #tpu.memory_space<vmem>>, %arg8: memref<16x128xf32, #tpu.memory_space<vmem>>, %arg9: memref<64x512xf32, #tpu.memory_space<vmem>>) attributes {dimension_semantics = [#tpu.dimension_semantics<arbitrary>], iteration_bounds = array<i64: 2>, scalar_prefetch = 0 : i64, scratch_operands = 3 : i64, tpu.core_type = #tpu.core_type<tc>, window_params = [{transform_indices = @transform_0, window_bounds = array<i64: 64, 128>}, {pipeline_mode = #tpu.pipeline_mode<synchronous>, transform_indices = @transform_1, window_bounds = array<i64: 128, 512>}, {pipeline_mode = #tpu.pipeline_mode<synchronous>, transform_indices = @transform_2, window_bounds = array<i64: 128, 512>}, {pipeline_mode = #tpu.pipeline_mode<synchronous>, transform_indices = @transform_3, window_bounds = array<i64: 1, 512>}, {pipeline_mode = #tpu.pipeline_mode<synchronous>, transform_indices = @transform_4, window_bounds = array<i64: 16, 1>}, {pipeline_mode = #tpu.pipeline_mode<synchronous>, transform_indices = @transform_5, window_bounds = array<i64: 16, 128>}]} {
    %c0_i32 = arith.constant 0 : i32
    %0 = arith.cmpi eq, %arg0, %c0_i32 : i32
    %1 = arith.extui %0 : i1 to i32
    %c0_i32_0 = arith.constant 0 : i32
    %2 = arith.cmpi ne, %1, %c0_i32_0 : i32
    scf.if %2 {
      %cst_50 = arith.constant 0.000000e+00 : f32
      %173 = vector.broadcast %cst_50 : f32 to vector<16x128xf32>
      %c0_51 = arith.constant 0 : index
      %c0_52 = arith.constant 0 : index
      %174 = vector.load %arg7[%c0_51, %c0_52] : memref<16x128xf32, #tpu.memory_space<vmem>>, vector<16x128xf32>
      tpu.vector_store %arg7[%c0_51, %c0_52], %173 {strides = array<i32>} : memref<16x128xf32, #tpu.memory_space<vmem>>, vector<16x128xf32>,
      %cst_53 = arith.constant 0.000000e+00 : f32
      %175 = vector.broadcast %cst_53 : f32 to vector<16x128xf32>
      %c0_54 = arith.constant 0 : index
      %c0_55 = arith.constant 0 : index
      %176 = vector.load %arg8[%c0_54, %c0_55] : memref<16x128xf32, #tpu.memory_space<vmem>>, vector<16x128xf32>
      tpu.vector_store %arg8[%c0_54, %c0_55], %175 {strides = array<i32>} : memref<16x128xf32, #tpu.memory_space<vmem>>, vector<16x128xf32>,
      %cst_56 = arith.constant 0.000000e+00 : f32
      %177 = vector.broadcast %cst_56 : f32 to vector<16x128xf32>
      %c0_57 = arith.constant 0 : index
      %c0_58 = arith.constant 0 : index
      %178 = vector.load %arg6[%c0_57, %c0_58] : memref<16x128xf32, #tpu.memory_space<vmem>>, vector<16x128xf32>
      tpu.vector_store %arg6[%c0_57, %c0_58], %177 {strides = array<i32>} : memref<16x128xf32, #tpu.memory_space<vmem>>, vector<16x128xf32>,
    } else {
    }
    %c0 = arith.constant 0 : index
    %c0_1 = arith.constant 0 : index
    %3 = vector.load %arg1[%c0, %c0_1] : memref<64x128xbf16, #tpu.memory_space<vmem>>, vector<64x128xbf16>
    %c0_2 = arith.constant 0 : index
    %c0_3 = arith.constant 0 : index
    %4 = vector.load %arg2[%c0_2, %c0_3] : memref<128x512xbf16, #tpu.memory_space<vmem>>, vector<128x512xbf16>
    %cst = arith.constant dense<0.000000e+00> : vector<64x512xf32>
    %5 = tpu.matmul %3, %4, %cst {dimension_numbers = #tpu.dot_dimension_numbers<[1], [0], [0], [1], [0, 0, 1, 1], [], []>} : vector<64x128xbf16>, vector<128x512xbf16>, vector<64x512xf32> -> vector<64x512xf32>
    %c0_4 = arith.constant 0 : index
    %c0_5 = arith.constant 0 : index
    %6 = vector.load %arg4[%c0_4, %c0_5] : memref<1x512xf32, #tpu.memory_space<vmem>>, vector<1x512xf32>
    %7 = vector.broadcast %6 : vector<1x512xf32> to vector<64x512xf32>
    %8 = arith.addf %5, %7 : vector<64x512xf32>
    %c0_6 = arith.constant 0 : index
    %c0_7 = arith.constant 0 : index
    %9 = vector.load %arg9[%c0_6, %c0_7] : memref<64x512xf32, #tpu.memory_space<vmem>>, vector<64x512xf32>
    tpu.vector_store %arg9[%c0_6, %c0_7], %8 {strides = array<i32>} : memref<64x512xf32, #tpu.memory_space<vmem>>, vector<64x512xf32>,
    %c0_8 = arith.constant 0 : index
    %c0_9 = arith.constant 0 : index
    %10 = vector.load %arg3[%c0_8, %c0_9] : memref<128x512xbf16, #tpu.memory_space<vmem>>, vector<128x512xbf16>
    %c0_10 = arith.constant 0 : index
    %c0_11 = arith.constant 0 : index
    %11 = vector.load %arg5[%c0_10, %c0_11] : memref<16x1xi32, #tpu.memory_space<vmem>>, vector<16x1xi32>
    %c1_i32 = arith.constant 1 : i32
    %12 = vector.broadcast %c1_i32 : i32 to vector<16x1xi32>
    %13 = arith.subi %11, %12 : vector<16x1xi32>
    %c4_i32 = arith.constant 4 : i32
    %14 = arith.muli %arg0, %c4_i32 : i32
    %c0_12 = arith.constant 0 : index
    %c0_13 = arith.constant 0 : index
    %15 = vector.load %arg7[%c0_12, %c0_13] : memref<16x128xf32, #tpu.memory_space<vmem>>, vector<16x128xf32>
    %c0_14 = arith.constant 0 : index
    %c0_15 = arith.constant 0 : index
    %16 = vector.load %arg8[%c0_14, %c0_15] : memref<16x128xf32, #tpu.memory_space<vmem>>, vector<16x128xf32>
    %c0_16 = arith.constant 0 : index
    %c0_17 = arith.constant 0 : index
    %17 = vector.load %arg6[%c0_16, %c0_17] : memref<16x128xf32, #tpu.memory_space<vmem>>, vector<16x128xf32>
    %c0_i32_18 = arith.constant 0 : i32
    %c16_i32 = arith.constant 16 : i32
    %18 = arith.muli %c0_i32_18, %c16_i32 : i32
    %19 = tpu.assume_multiple %18, 16 : i32
    %20 = arith.index_cast %19 : i32 to index
    %c0_19 = arith.constant 0 : index
    %21 = vector.load %arg9[%20, %c0_19] : memref<64x512xf32, #tpu.memory_space<vmem>>, vector<16x512xf32>
    %22 = arith.truncf %15 : vector<16x128xf32> to vector<16x128xbf16>
    %cst_20 = arith.constant dense<0.000000e+00> : vector<16x512xf32>
    %23 = tpu.matmul %22, %10, %cst_20 {dimension_numbers = #tpu.dot_dimension_numbers<[1], [0], [0], [1], [0, 0, 1, 1], [], []>} : vector<16x128xbf16>, vector<128x512xbf16>, vector<16x512xf32> -> vector<16x512xf32>
    %24 = arith.addf %21, %23 : vector<16x512xf32>
    %25 = vector.extract_strided_slice %24 {offsets = [0, 0], sizes = [16, 128], strides = [1, 1]} : vector<16x512xf32> to vector<16x128xf32>
    %26 = arith.negf %25 : vector<16x128xf32>
    %27 = math.exp %26 : vector<16x128xf32>
    %cst_21 = arith.constant 1.000000e+00 : f32
    %28 = vector.broadcast %cst_21 : f32 to vector<16x128xf32>
    %29 = arith.addf %28, %27 : vector<16x128xf32>
    %30 = arith.divf %28, %29 : vector<16x128xf32>
    %31 = vector.extract_strided_slice %24 {offsets = [0, 128], sizes = [16, 128], strides = [1, 1]} : vector<16x512xf32> to vector<16x128xf32>
    %32 = arith.negf %31 : vector<16x128xf32>
    %33 = math.exp %32 : vector<16x128xf32>
    %cst_22 = arith.constant 1.000000e+00 : f32
    %34 = vector.broadcast %cst_22 : f32 to vector<16x128xf32>
    %35 = arith.addf %34, %33 : vector<16x128xf32>
    %36 = arith.divf %34, %35 : vector<16x128xf32>
    %37 = vector.extract_strided_slice %24 {offsets = [0, 256], sizes = [16, 128], strides = [1, 1]} : vector<16x512xf32> to vector<16x128xf32>
    %38 = math.tanh %37 : vector<16x128xf32>
    %39 = vector.extract_strided_slice %24 {offsets = [0, 384], sizes = [16, 128], strides = [1, 1]} : vector<16x512xf32> to vector<16x128xf32>
    %40 = arith.negf %39 : vector<16x128xf32>
    %41 = math.exp %40 : vector<16x128xf32>
    %cst_23 = arith.constant 1.000000e+00 : f32
    %42 = vector.broadcast %cst_23 : f32 to vector<16x128xf32>
    %43 = arith.addf %42, %41 : vector<16x128xf32>
    %44 = arith.divf %42, %43 : vector<16x128xf32>
    %45 = arith.mulf %36, %16 : vector<16x128xf32>
    %46 = arith.mulf %30, %38 : vector<16x128xf32>
    %47 = arith.addf %45, %46 : vector<16x128xf32>
    %48 = math.tanh %47 : vector<16x128xf32>
    %49 = arith.mulf %44, %48 : vector<16x128xf32>
    %50 = arith.addi %14, %c0_i32_18 : i32
    %51 = vector.broadcast %50 : i32 to vector<16x1xi32>
    %52 = arith.cmpi eq, %13, %51 : vector<16x1xi32>
    %53 = vector.shape_cast %52 : vector<16x1xi1> to vector<16x1xi1>
    %54 = vector.broadcast %53 : vector<16x1xi1> to vector<16x128xi1>
    %55 = arith.select %54, %49, %17 : vector<16x128xi1>, vector<16x128xf32>
    %c1_i32_24 = arith.constant 1 : i32
    %c16_i32_25 = arith.constant 16 : i32
    %56 = arith.muli %c1_i32_24, %c16_i32_25 : i32
    %57 = tpu.assume_multiple %56, 16 : i32
    %58 = arith.index_cast %57 : i32 to index
    %c0_26 = arith.constant 0 : index
    %59 = vector.load %arg9[%58, %c0_26] : memref<64x512xf32, #tpu.memory_space<vmem>>, vector<16x512xf32>
    %60 = arith.truncf %49 : vector<16x128xf32> to vector<16x128xbf16>
    %cst_27 = arith.constant dense<0.000000e+00> : vector<16x512xf32>
    %61 = tpu.matmul %60, %10, %cst_27 {dimension_numbers = #tpu.dot_dimension_numbers<[1], [0], [0], [1], [0, 0, 1, 1], [], []>} : vector<16x128xbf16>, vector<128x512xbf16>, vector<16x512xf32> -> vector<16x512xf32>
    %62 = arith.addf %59, %61 : vector<16x512xf32>
    %63 = vector.extract_strided_slice %62 {offsets = [0, 0], sizes = [16, 128], strides = [1, 1]} : vector<16x512xf32> to vector<16x128xf32>
    %64 = arith.negf %63 : vector<16x128xf32>
    %65 = math.exp %64 : vector<16x128xf32>
    %cst_28 = arith.constant 1.000000e+00 : f32
    %66 = vector.broadcast %cst_28 : f32 to vector<16x128xf32>
    %67 = arith.addf %66, %65 : vector<16x128xf32>
    %68 = arith.divf %66, %67 : vector<16x128xf32>
    %69 = vector.extract_strided_slice %62 {offsets = [0, 128], sizes = [16, 128], strides = [1, 1]} : vector<16x512xf32> to vector<16x128xf32>
    %70 = arith.negf %69 : vector<16x128xf32>
    %71 = math.exp %70 : vector<16x128xf32>
    %cst_29 = arith.constant 1.000000e+00 : f32
    %72 = vector.broadcast %cst_29 : f32 to vector<16x128xf32>
    %73 = arith.addf %72, %71 : vector<16x128xf32>
    %74 = arith.divf %72, %73 : vector<16x128xf32>
    %75 = vector.extract_strided_slice %62 {offsets = [0, 256], sizes = [16, 128], strides = [1, 1]} : vector<16x512xf32> to vector<16x128xf32>
    %76 = math.tanh %75 : vector<16x128xf32>
    %77 = vector.extract_strided_slice %62 {offsets = [0, 384], sizes = [16, 128], strides = [1, 1]} : vector<16x512xf32> to vector<16x128xf32>
    %78 = arith.negf %77 : vector<16x128xf32>
    %79 = math.exp %78 : vector<16x128xf32>
    %cst_30 = arith.constant 1.000000e+00 : f32
    %80 = vector.broadcast %cst_30 : f32 to vector<16x128xf32>
    %81 = arith.addf %80, %79 : vector<16x128xf32>
    %82 = arith.divf %80, %81 : vector<16x128xf32>
    %83 = arith.mulf %74, %47 : vector<16x128xf32>
    %84 = arith.mulf %68, %76 : vector<16x128xf32>
    %85 = arith.addf %83, %84 : vector<16x128xf32>
    %86 = math.tanh %85 : vector<16x128xf32>
    %87 = arith.mulf %82, %86 : vector<16x128xf32>
    %88 = arith.addi %14, %c1_i32_24 : i32
    %89 = vector.broadcast %88 : i32 to vector<16x1xi32>
    %90 = arith.cmpi eq, %13, %89 : vector<16x1xi32>
    %91 = vector.shape_cast %90 : vector<16x1xi1> to vector<16x1xi1>
    %92 = vector.broadcast %91 : vector<16x1xi1> to vector<16x128xi1>
    %93 = arith.select %92, %87, %55 : vector<16x128xi1>, vector<16x128xf32>
    %c2_i32 = arith.constant 2 : i32
    %c16_i32_31 = arith.constant 16 : i32
    %94 = arith.muli %c2_i32, %c16_i32_31 : i32
    %95 = tpu.assume_multiple %94, 16 : i32
    %96 = arith.index_cast %95 : i32 to index
    %c0_32 = arith.constant 0 : index
    %97 = vector.load %arg9[%96, %c0_32] : memref<64x512xf32, #tpu.memory_space<vmem>>, vector<16x512xf32>
    %98 = arith.truncf %87 : vector<16x128xf32> to vector<16x128xbf16>
    %cst_33 = arith.constant dense<0.000000e+00> : vector<16x512xf32>
    %99 = tpu.matmul %98, %10, %cst_33 {dimension_numbers = #tpu.dot_dimension_numbers<[1], [0], [0], [1], [0, 0, 1, 1], [], []>} : vector<16x128xbf16>, vector<128x512xbf16>, vector<16x512xf32> -> vector<16x512xf32>
    %100 = arith.addf %97, %99 : vector<16x512xf32>
    %101 = vector.extract_strided_slice %100 {offsets = [0, 0], sizes = [16, 128], strides = [1, 1]} : vector<16x512xf32> to vector<16x128xf32>
    %102 = arith.negf %101 : vector<16x128xf32>
    %103 = math.exp %102 : vector<16x128xf32>
    %cst_34 = arith.constant 1.000000e+00 : f32
    %104 = vector.broadcast %cst_34 : f32 to vector<16x128xf32>
    %105 = arith.addf %104, %103 : vector<16x128xf32>
    %106 = arith.divf %104, %105 : vector<16x128xf32>
    %107 = vector.extract_strided_slice %100 {offsets = [0, 128], sizes = [16, 128], strides = [1, 1]} : vector<16x512xf32> to vector<16x128xf32>
    %108 = arith.negf %107 : vector<16x128xf32>
    %109 = math.exp %108 : vector<16x128xf32>
    %cst_35 = arith.constant 1.000000e+00 : f32
    %110 = vector.broadcast %cst_35 : f32 to vector<16x128xf32>
    %111 = arith.addf %110, %109 : vector<16x128xf32>
    %112 = arith.divf %110, %111 : vector<16x128xf32>
    %113 = vector.extract_strided_slice %100 {offsets = [0, 256], sizes = [16, 128], strides = [1, 1]} : vector<16x512xf32> to vector<16x128xf32>
    %114 = math.tanh %113 : vector<16x128xf32>
    %115 = vector.extract_strided_slice %100 {offsets = [0, 384], sizes = [16, 128], strides = [1, 1]} : vector<16x512xf32> to vector<16x128xf32>
    %116 = arith.negf %115 : vector<16x128xf32>
    %117 = math.exp %116 : vector<16x128xf32>
    %cst_36 = arith.constant 1.000000e+00 : f32
    %118 = vector.broadcast %cst_36 : f32 to vector<16x128xf32>
    %119 = arith.addf %118, %117 : vector<16x128xf32>
    %120 = arith.divf %118, %119 : vector<16x128xf32>
    %121 = arith.mulf %112, %85 : vector<16x128xf32>
    %122 = arith.mulf %106, %114 : vector<16x128xf32>
    %123 = arith.addf %121, %122 : vector<16x128xf32>
    %124 = math.tanh %123 : vector<16x128xf32>
    %125 = arith.mulf %120, %124 : vector<16x128xf32>
    %126 = arith.addi %14, %c2_i32 : i32
    %127 = vector.broadcast %126 : i32 to vector<16x1xi32>
    %128 = arith.cmpi eq, %13, %127 : vector<16x1xi32>
    %129 = vector.shape_cast %128 : vector<16x1xi1> to vector<16x1xi1>
    %130 = vector.broadcast %129 : vector<16x1xi1> to vector<16x128xi1>
    %131 = arith.select %130, %125, %93 : vector<16x128xi1>, vector<16x128xf32>
    %c3_i32 = arith.constant 3 : i32
    %c16_i32_37 = arith.constant 16 : i32
    %132 = arith.muli %c3_i32, %c16_i32_37 : i32
    %133 = tpu.assume_multiple %132, 16 : i32
    %134 = arith.index_cast %133 : i32 to index
    %c0_38 = arith.constant 0 : index
    %135 = vector.load %arg9[%134, %c0_38] : memref<64x512xf32, #tpu.memory_space<vmem>>, vector<16x512xf32>
    %136 = arith.truncf %125 : vector<16x128xf32> to vector<16x128xbf16>
    %cst_39 = arith.constant dense<0.000000e+00> : vector<16x512xf32>
    %137 = tpu.matmul %136, %10, %cst_39 {dimension_numbers = #tpu.dot_dimension_numbers<[1], [0], [0], [1], [0, 0, 1, 1], [], []>} : vector<16x128xbf16>, vector<128x512xbf16>, vector<16x512xf32> -> vector<16x512xf32>
    %138 = arith.addf %135, %137 : vector<16x512xf32>
    %139 = vector.extract_strided_slice %138 {offsets = [0, 0], sizes = [16, 128], strides = [1, 1]} : vector<16x512xf32> to vector<16x128xf32>
    %140 = arith.negf %139 : vector<16x128xf32>
    %141 = math.exp %140 : vector<16x128xf32>
    %cst_40 = arith.constant 1.000000e+00 : f32
    %142 = vector.broadcast %cst_40 : f32 to vector<16x128xf32>
    %143 = arith.addf %142, %141 : vector<16x128xf32>
    %144 = arith.divf %142, %143 : vector<16x128xf32>
    %145 = vector.extract_strided_slice %138 {offsets = [0, 128], sizes = [16, 128], strides = [1, 1]} : vector<16x512xf32> to vector<16x128xf32>
    %146 = arith.negf %145 : vector<16x128xf32>
    %147 = math.exp %146 : vector<16x128xf32>
    %cst_41 = arith.constant 1.000000e+00 : f32
    %148 = vector.broadcast %cst_41 : f32 to vector<16x128xf32>
    %149 = arith.addf %148, %147 : vector<16x128xf32>
    %150 = arith.divf %148, %149 : vector<16x128xf32>
    %151 = vector.extract_strided_slice %138 {offsets = [0, 256], sizes = [16, 128], strides = [1, 1]} : vector<16x512xf32> to vector<16x128xf32>
    %152 = math.tanh %151 : vector<16x128xf32>
    %153 = vector.extract_strided_slice %138 {offsets = [0, 384], sizes = [16, 128], strides = [1, 1]} : vector<16x512xf32> to vector<16x128xf32>
    %154 = arith.negf %153 : vector<16x128xf32>
    %155 = math.exp %154 : vector<16x128xf32>
    %cst_42 = arith.constant 1.000000e+00 : f32
    %156 = vector.broadcast %cst_42 : f32 to vector<16x128xf32>
    %157 = arith.addf %156, %155 : vector<16x128xf32>
    %158 = arith.divf %156, %157 : vector<16x128xf32>
    %159 = arith.mulf %150, %123 : vector<16x128xf32>
    %160 = arith.mulf %144, %152 : vector<16x128xf32>
    %161 = arith.addf %159, %160 : vector<16x128xf32>
    %162 = math.tanh %161 : vector<16x128xf32>
    %163 = arith.mulf %158, %162 : vector<16x128xf32>
    %164 = arith.addi %14, %c3_i32 : i32
    %165 = vector.broadcast %164 : i32 to vector<16x1xi32>
    %166 = arith.cmpi eq, %13, %165 : vector<16x1xi32>
    %167 = vector.shape_cast %166 : vector<16x1xi1> to vector<16x1xi1>
    %168 = vector.broadcast %167 : vector<16x1xi1> to vector<16x128xi1>
    %169 = arith.select %168, %163, %131 : vector<16x128xi1>, vector<16x128xf32>
    %c4_i32_43 = arith.constant 4 : i32
    %c0_44 = arith.constant 0 : index
    %c0_45 = arith.constant 0 : index
    %170 = vector.load %arg7[%c0_44, %c0_45] : memref<16x128xf32, #tpu.memory_space<vmem>>, vector<16x128xf32>
    tpu.vector_store %arg7[%c0_44, %c0_45], %163 {strides = array<i32>} : memref<16x128xf32, #tpu.memory_space<vmem>>, vector<16x128xf32>,
    %c0_46 = arith.constant 0 : index
    %c0_47 = arith.constant 0 : index
    %171 = vector.load %arg8[%c0_46, %c0_47] : memref<16x128xf32, #tpu.memory_space<vmem>>, vector<16x128xf32>
    tpu.vector_store %arg8[%c0_46, %c0_47], %161 {strides = array<i32>} : memref<16x128xf32, #tpu.memory_space<vmem>>, vector<16x128xf32>,
    %c0_48 = arith.constant 0 : index
    %c0_49 = arith.constant 0 : index
    %172 = vector.load %arg6[%c0_48, %c0_49] : memref<16x128xf32, #tpu.memory_space<vmem>>, vector<16x128xf32>
    tpu.vector_store %arg6[%c0_48, %c0_49], %169 {strides = array<i32>} : memref<16x128xf32, #tpu.memory_space<vmem>>, vector<16x128xf32>,
    return
  }
  func.func @transform_0(%arg0: i32) -> (i32, i32) {
    %c0_i32 = arith.constant 0 : i32
    %c0_i32_0 = arith.constant 0 : i32
    return %arg0, %c0_i32 : i32, i32
  }
  func.func @transform_1(%arg0: i32) -> (i32, i32) {
    %c0_i32 = arith.constant 0 : i32
    %c0_i32_0 = arith.constant 0 : i32
    %c0_i32_1 = arith.constant 0 : i32
    return %c0_i32, %c0_i32_0 : i32, i32
  }
  func.func @transform_2(%arg0: i32) -> (i32, i32) {
    %c0_i32 = arith.constant 0 : i32
    %c0_i32_0 = arith.constant 0 : i32
    %c0_i32_1 = arith.constant 0 : i32
    return %c0_i32, %c0_i32_0 : i32, i32
  }
  func.func @transform_3(%arg0: i32) -> (i32, i32) {
    %c0_i32 = arith.constant 0 : i32
    %c0_i32_0 = arith.constant 0 : i32
    %c0_i32_1 = arith.constant 0 : i32
    return %c0_i32, %c0_i32_0 : i32, i32
  }
  func.func @transform_4(%arg0: i32) -> (i32, i32) {
    %c0_i32 = arith.constant 0 : i32
    %c0_i32_0 = arith.constant 0 : i32
    %c0_i32_1 = arith.constant 0 : i32
    return %c0_i32, %c0_i32_0 : i32, i32
  }
  func.func @transform_5(%arg0: i32) -> (i32, i32) {
    %c0_i32 = arith.constant 0 : i32
    %c0_i32_0 = arith.constant 0 : i32
    %c0_i32_1 = arith.constant 0 : i32
    return %c0_i32, %c0_i32_0 : i32, i32
  }
}

</mosaic_0001>

<llo_original>
// kernel: lstm_forward.2
$region0: #{lstm_forward.2}
  #allocation0 [shape = 'u32[]', space=smem, size = 0x4, offset = 0x4, fixed_abs, tag = 'smem constant byte address 0x4 - core index']
  #allocation1 [shape = 'u32[144,128]{1,0:T(1,128)}', space=vmem, size = 0x12000, scoped, tag = 'internal scratch']
  #allocation2 [shape = 'f32[16,128]{1,0:T(8,128)}', space=vmem, size = 0x2000, scoped, tag = 'scratch operand']
  #allocation3 [shape = 'f32[16,128]{1,0:T(8,128)}', space=vmem, size = 0x2000, scoped, tag = 'scratch operand']
  #allocation4 [shape = 'f32[64,512]{1,0:T(8,128)}', space=vmem, size = 0x20000, scoped, tag = 'scratch operand']
  %s0 = inlined_call_operand.vmem [shape: bf16[128,128], index: 0, kind: input, shape index: {}]
  %s1 = inlined_call_operand.hbm [shape: bf16[128,512], index: 1, kind: input, shape index: {}]
  %s2 = inlined_call_operand.hbm [shape: bf16[128,512], index: 2, kind: input, shape index: {}]
  %s3 = inlined_call_operand.vmem [shape: f32[1,512], index: 3, kind: input, shape index: {}]
  %s4 = inlined_call_operand.vmem [shape: bf16[128,128], index: 4, kind: output, shape index: {}]
  %s5 = sld [smem:[#allocation0]]
  $region61: #{lstm_forward.2} parent=0
    _
  %s7 = ssub.s32 1, %s5
  %s8 = scalar_select 0, %s7, %s5
  $region1: #{lstm_forward.2} parent=0
    #allocation5 [shape = 'u8[131072]{0}', space=vmem, size = 0x20000, scoped, tag = 'input window, operand 1, single buffered']
    #allocation6 [shape = 's32[2]{0}', space=sflag, size = 0x8, scoped, tag = 'scoped memory for lstm_forward.2']
    #allocation7 [shape = 'u8[131072]{0}', space=vmem, size = 0x20000, scoped, tag = 'input window, operand 2, single buffered']
    #allocation8 [shape = 's32[1]{0}', space=sflag, size = 0x4, scoped, tag = 'scoped memory for lstm_forward.2']
    %9 = vsyncpa [#allocation6], 0
    %10 = vsyncpa [#allocation8], 0
    loop: start=0, step=1, limit=4
    $region2: #{lstm_forward.2} parent=1 // loop_pre_header
      _
    $region3: #{lstm_forward.2} parent=1 // loop_header
      %s12 = sphi 0, %s16
      %p13 = scmp.ge.s32.totalorder %s12, 4
      %s22 = sphi 0, %s24
      %s25 = sphi 0, %s22
      %s26 = sphi 0, %s25
      %s42 = sphi 0, %s26
      %s46 = sphi 0, %s46
      %s48 = sphi 0, %s46
      %s49 = sphi 0, %s48
      %s63 = sphi 0, %s49
      %s67 = sphi 0, %s67
      %s69 = sphi 0, %s67
      %s70 = sphi 0, %s69
      %s84 = sphi 0, %s70
      %s88 = sphi 0, %s88
      %s90 = sphi 0, %s88
      %s91 = sphi 0, %s90
      %s105 = sphi 0, %s91
      %s111 = sphi 0, %s113
      %s114 = sphi 0, %s111
      %s115 = sphi 0, %s114
      %s131 = sphi 0, %s115
    $region4: #{lstm_forward.2} parent=1 // loop_header_branch
      %15 = sbr.rel (%p13) target = $region8
    $region5: #{lstm_forward.2} parent=1 // loop_body
      %s17 = ssub.s32 %s12, 1
      %s18 = ssub.s32 %s12, 2
      %s19 = sadd.s32 %s12, 1
      %s20 = ssub.s32 %s12, %s19
      %p21 = scmp.eq.s32.totalorder %s20, 0
      %s23 = sadd.s32 %s22, 1
      %s24 = scalar_select %p21, %s22, %s23
      %p27 = pneg %p21
      %p28 = scmp.eq.s32.totalorder %s12, 1
      %p29 = por %p27, %p28
      %p30 = scmp.ne.s32.totalorder %s22, %s25
      %p31 = scmp.eq.s32.totalorder %s12, 0
      %p32 = por %p30, %p31
      %p33 = scmp.ne.s32.totalorder %s22, %s25
      %p34 = scmp.eq.s32.totalorder %s17, 1
      %p35 = por %p33, %p34
      %p36 = scmp.ne.s32.totalorder %s25, %s26
      %p37 = scmp.eq.s32.totalorder %s17, 0
      %p38 = por %p36, %p37
      %p39 = scmp.ne.s32.totalorder %s25, %s26
      %p40 = scmp.eq.s32.totalorder %s18, 1
      %p41 = por %p39, %p40
      %p43 = scmp.ne.s32.totalorder %s26, %s42
      %p44 = scmp.eq.s32.totalorder %s18, 0
      %p45 = por %p43, %p44
      %s47 = sadd.s32 %s46, 1
      %p50 = scmp.eq.s32.totalorder %s12, 1
      %p51 = scmp.ne.s32.totalorder %s46, %s48
      %p52 = scmp.eq.s32.totalorder %s12, 0
      %p53 = por %p51, %p52
      %p54 = scmp.ne.s32.totalorder %s46, %s48
      %p55 = scmp.eq.s32.totalorder %s17, 1
      %p56 = por %p54, %p55
      %p57 = scmp.ne.s32.totalorder %s48, %s49
      %p58 = scmp.eq.s32.totalorder %s17, 0
      %p59 = por %p57, %p58
      %p60 = scmp.ne.s32.totalorder %s48, %s49
      %p61 = scmp.eq.s32.totalorder %s18, 1
      %p62 = por %p60, %p61
      %p64 = scmp.ne.s32.totalorder %s49, %s63
      %p65 = scmp.eq.s32.totalorder %s18, 0
      %p66 = por %p64, %p65
      %s68 = sadd.s32 %s67, 1
      %p71 = scmp.eq.s32.totalorder %s12, 1
      %p72 = scmp.ne.s32.totalorder %s67, %s69
      %p73 = scmp.eq.s32.totalorder %s12, 0
      %p74 = por %p72, %p73
      %p75 = scmp.ne.s32.totalorder %s67, %s69
      %p76 = scmp.eq.s32.totalorder %s17, 1
      %p77 = por %p75, %p76
      %p78 = scmp.ne.s32.totalorder %s69, %s70
      %p79 = scmp.eq.s32.totalorder %s17, 0
      %p80 = por %p78, %p79
      %p81 = scmp.ne.s32.totalorder %s69, %s70
      %p82 = scmp.eq.s32.totalorder %s18, 1
      %p83 = por %p81, %p82
      %p85 = scmp.ne.s32.totalorder %s70, %s84
      %p86 = scmp.eq.s32.totalorder %s18, 0
      %p87 = por %p85, %p86
      %s89 = sadd.s32 %s88, 1
      %p92 = scmp.eq.s32.totalorder %s12, 1
      %p93 = scmp.ne.s32.totalorder %s88, %s90
      %p94 = scmp.eq.s32.totalorder %s12, 0
      %p95 = por %p93, %p94
      %p96 = scmp.ne.s32.totalorder %s88, %s90
      %p97 = scmp.eq.s32.totalorder %s17, 1
      %p98 = por %p96, %p97
      %p99 = scmp.ne.s32.totalorder %s90, %s91
      %p100 = scmp.eq.s32.totalorder %s17, 0
      %p101 = por %p99, %p100
      %p102 = scmp.ne.s32.totalorder %s90, %s91
      %p103 = scmp.eq.s32.totalorder %s18, 1
      %p104 = por %p102, %p103
      %p106 = scmp.ne.s32.totalorder %s91, %s105
      %p107 = scmp.eq.s32.totalorder %s18, 0
      %p108 = por %p106, %p107
      %s109 = ssub.s32 %s12, %s19
      %p110 = scmp.eq.s32.totalorder %s109, 0
      %s112 = sadd.s32 %s111, 1
      %s113 = scalar_select %p110, %s111, %s112
      %p116 = pneg %p110
      %p117 = scmp.eq.s32.totalorder %s12, 1
      %p118 = por %p116, %p117
      %p119 = scmp.ne.s32.totalorder %s111, %s114
      %p120 = scmp.eq.s32.totalorder %s12, 0
      %p121 = por %p119, %p120
      %p122 = scmp.ne.s32.totalorder %s111, %s114
      %p123 = scmp.eq.s32.totalorder %s17, 1
      %p124 = por %p122, %p123
      %p125 = scmp.ne.s32.totalorder %s114, %s115
      %p126 = scmp.eq.s32.totalorder %s17, 0
      %p127 = por %p125, %p126
      %p128 = scmp.ne.s32.totalorder %s114, %s115
      %p129 = scmp.eq.s32.totalorder %s18, 1
      %p130 = por %p128, %p129
      %p132 = scmp.ne.s32.totalorder %s115, %s131
      %p133 = scmp.eq.s32.totalorder %s18, 0
      %p134 = por %p132, %p133
      %p135 = scmp.le.s32.totalorder 1, %s12
      %p136 = scmp.lt.s32.totalorder %s12, 3
      %p137 = pnand %p135, %p136
      %p138 = pneg %p137
      // Predicated region
      $region9: #{lstm_forward.2} parent=5 // pred_check
        _
      $region10: #{lstm_forward.2} parent=5 // pred_check_branch
        %140 = sbr.rel (%p137) target = $region12
      $region11: #{lstm_forward.2} parent=5 // pred_region
        %s141 = ssub.s32 %s12, 1
        // Predicated region
        $region13: #{lstm_forward.2} parent=11 // pred_check
          %p142 = pneg %p59
        $region14: #{lstm_forward.2} parent=11 // pred_check_branch
          %144 = sbr.rel (%p142) target = $region16
        $region15: #{lstm_forward.2} parent=11 // pred_region
          %s146 = ssub.s32 4096, 4096
          %147 = vsyncadd [#allocation6], %s146
          %s148 = sshll.u32 [#allocation5], 4
          %s149 = int_to_ptr.vmem [resolvable:$true] %s148
          %154 = dma.hbm_to_vmem [thread:$0]  %s1, 4096, %s149, [#allocation6], 256, 256, 16
        $region16: #{lstm_forward.2} parent=11 // pred_fallthru
          _
        // Predicated region
        $region17: #{lstm_forward.2} parent=11 // pred_check
          %p155 = pneg %p80
        $region18: #{lstm_forward.2} parent=11 // pred_check_branch
          %157 = sbr.rel (%p155) target = $region20
        $region19: #{lstm_forward.2} parent=11 // pred_region
          %s159 = ssub.s32 4096, 4096
          %160 = vsyncadd [#allocation8], %s159
          %s161 = sshll.u32 [#allocation7], 4
          %s162 = int_to_ptr.vmem [resolvable:$true] %s161
          %167 = dma.hbm_to_vmem [thread:$0]  %s2, 4096, %s162, [#allocation8], 256, 256, 16
        $region20: #{lstm_forward.2} parent=11 // pred_fallthru
          _
        // Predicated region
        $region21: #{lstm_forward.2} parent=11 // pred_check
          %p168 = pneg %p101
        $region22: #{lstm_forward.2} parent=11 // pred_check_branch
          %170 = sbr.rel (%p168) target = $region24
        $region23: #{lstm_forward.2} parent=11 // pred_region
          _
        $region24: #{lstm_forward.2} parent=11 // pred_fallthru
          _
      $region12: #{lstm_forward.2} parent=5 // pred_fallthru
        _
      %p171 = scmp.lt.s32.totalorder %s12, 2
      // Predicated region
      $region25: #{lstm_forward.2} parent=5 // pred_check
        %p172 = pneg %p171
      $region26: #{lstm_forward.2} parent=5 // pred_check_branch
        %174 = sbr.rel (%p172) target = $region28
      $region27: #{lstm_forward.2} parent=5 // pred_region
        // Predicated region
        $region29: #{lstm_forward.2} parent=27 // pred_check
          %p175 = pneg %p32
        $region30: #{lstm_forward.2} parent=27 // pred_check_branch
          %177 = sbr.rel (%p175) target = $region32
        $region31: #{lstm_forward.2} parent=27 // pred_region
          %s178 = smul.u32 8, %s12
          %p179 = scmp.lt.s32.totalorder %s178, 15
          %s180 = scalar_select %p179, %s178, 15
          %s181 = smul.addr %s180, 4
          %s182 = scalar_lea.vmem %s0, %s181
          %s183 = smul.u32 8, %s12
        $region32: #{lstm_forward.2} parent=27 // pred_fallthru
          _
      $region28: #{lstm_forward.2} parent=5 // pred_fallthru
        _
      %p184 = scmp.le.s32.totalorder 1, %s12
      %p185 = scmp.lt.s32.totalorder %s12, 3
      %p186 = pnand %p184, %p185
      %p187 = pneg %p186
      // Predicated region
      $region33: #{lstm_forward.2} parent=5 // pred_check
        _
      $region34: #{lstm_forward.2} parent=5 // pred_check_branch
        %189 = sbr.rel (%p186) target = $region36
      $region35: #{lstm_forward.2} parent=5 // pred_region
        %s190 = ssub.s32 %s12, 1
        // Predicated region
        $region37: #{lstm_forward.2} parent=35 // pred_check
          %p191 = pneg %p59
        $region38: #{lstm_forward.2} parent=35 // pred_check_branch
          %193 = sbr.rel (%p191) target = $region40
        $region39: #{lstm_forward.2} parent=35 // pred_region
          %194 = dma.done [#allocation6], 4096
        $region40: #{lstm_forward.2} parent=35 // pred_fallthru
          _
        // Predicated region
        $region41: #{lstm_forward.2} parent=35 // pred_check
          %p195 = pneg %p80
        $region42: #{lstm_forward.2} parent=35 // pred_check_branch
          %197 = sbr.rel (%p195) target = $region44
        $region43: #{lstm_forward.2} parent=35 // pred_region
          %198 = dma.done [#allocation8], 4096
        $region44: #{lstm_forward.2} parent=35 // pred_fallthru
          _
        %s199 = smul.u32 8, %s17
        %p200 = scmp.lt.s32.totalorder %s199, 15
        %s201 = scalar_select %p200, %s199, 15
        %s202 = smul.addr %s201, 4
        %s203 = scalar_lea.vmem %s0, %s202
        %p204 = pneg %p38
        %p205 = pneg %p35
        %p206 = pneg %p59
        %p207 = pneg %p56
        %p208 = pneg %p80
        %p209 = pneg %p77
        %p210 = pneg %p101
        %p211 = pneg %p98
        %p212 = pneg %p127
        %p213 = pneg %p124
        %s214 = smul.u32 8, %s17
        %p215 = scmp.lt.s32.totalorder %s214, 15
        %s216 = scalar_select %p215, %s214, 15
        %s217 = smul.addr %s216, 4
        %s218 = scalar_lea.vmem %s4, %s217
        %s219 = smul.u32 8, %s17
        %p220 = scmp.lt.s32.totalorder %s219, 15
        %s221 = scalar_select %p220, %s219, 15
        %s222 = smul.addr %s221, 4
        %s223 = scalar_lea.vmem %s0, %s222
        %s224 = smul.u32 8, %s17
        %s225 = smul.u32 8, %s17
        %p226 = scmp.lt.s32.totalorder %s225, 15
        %s227 = scalar_select %p226, %s225, 15
        %s228 = smul.addr %s227, 4
        %s229 = scalar_lea.vmem %s4, %s228
        %s230 = smul.u32 8, %s17
        %p232 = scmp.eq.s32.totalorder %s17, 0
        // Predicated region
        $region45: #{lstm_forward.2} parent=35 // pred_check
          %p233 = pneg %p232
        $region46: #{lstm_forward.2} parent=35 // pred_check_branch
          %235 = sbr.rel (%p233) target = $region48
        $region47: #{lstm_forward.2} parent=35 // pred_region
          %236 = vst [vmem:[#allocation2] sm:$0xff] 0.0
          %237 = vst [vmem:[#allocation2 + $0x8] sm:$0xff] 0.0
          %238 = vst [vmem:[#allocation3] sm:$0xff] 0.0
          %239 = vst [vmem:[#allocation3 + $0x8] sm:$0xff] 0.0
        $region48: #{lstm_forward.2} parent=35 // pred_fallthru
          _
        %v240 = vld [vmem:[%s223] sm:$0xf]
        %v241 = vld [vmem:[%s223 + $0x4] sm:$0xf]
        %v242 = vld [vmem:[%s223 + $0x8] sm:$0xf]
        %v243 = vld [vmem:[%s223 + $0xc] sm:$0xf]
        %v244 = vld [vmem:[%s223 + $0x10] sm:$0xf]
        %v245 = vld [vmem:[%s223 + $0x14] sm:$0xf]
        %v246 = vld [vmem:[%s223 + $0x18] sm:$0xf]
        %v247 = vld [vmem:[%s223 + $0x1c] sm:$0xf]
        %v248 = vld [vmem:[#allocation5] sm:$0xff]
        %v249 = vld [vmem:[#allocation5 + $0x8] sm:$0xff]
        %v250 = vld [vmem:[#allocation5 + $0x10] sm:$0xff]
        %v251 = vld [vmem:[#allocation5 + $0x18] sm:$0xff]
        %v252 = vld [vmem:[#allocation5 + $0x20] sm:$0xff]
        %v253 = vld [vmem:[#allocation5 + $0x28] sm:$0xff]
        %v254 = vld [vmem:[#allocation5 + $0x30] sm:$0xff]
        %v255 = vld [vmem:[#allocation5 + $0x38] sm:$0xff]
        %v256 = vld [vmem:[#allocation5 + $0x40] sm:$0xff]
        %v257 = vld [vmem:[#allocation5 + $0x48] sm:$0xff]
        %v258 = vld [vmem:[#allocation5 + $0x50] sm:$0xff]
        %v259 = vld [vmem:[#allocation5 + $0x58] sm:$0xff]
        %v260 = vld [vmem:[#allocation5 + $0x60] sm:$0xff]
        %v261 = vld [vmem:[#allocation5 + $0x68] sm:$0xff]
        %v262 = vld [vmem:[#allocation5 + $0x70] sm:$0xff]
        %v263 = vld [vmem:[#allocation5 + $0x78] sm:$0xff]
        %v264 = vld [vmem:[#allocation5 + $0x80] sm:$0xff]
        %v265 = vld [vmem:[#allocation5 + $0x88] sm:$0xff]
        %v266 = vld [vmem:[#allocation5 + $0x90] sm:$0xff]
        %v267 = vld [vmem:[#allocation5 + $0x98] sm:$0xff]
        %v268 = vld [vmem:[#allocation5 + $0xa0] sm:$0xff]
        %v269 = vld [vmem:[#allocation5 + $0xa8] sm:$0xff]
        %v270 = vld [vmem:[#allocation5 + $0xb0] sm:$0xff]
        %v271 = vld [vmem:[#allocation5 + $0xb8] sm:$0xff]
        %v272 = vld [vmem:[#allocation5 + $0xc0] sm:$0xff]
        %v273 = vld [vmem:[#allocation5 + $0xc8] sm:$0xff]
        %v274 = vld [vmem:[#allocation5 + $0xd0] sm:$0xff]
        %v275 = vld [vmem:[#allocation5 + $0xd8] sm:$0xff]
        %v276 = vld [vmem:[#allocation5 + $0xe0] sm:$0xff]
        %v277 = vld [vmem:[#allocation5 + $0xe8] sm:$0xff]
        %v278 = vld [vmem:[#allocation5 + $0xf0] sm:$0xff]
        %v279 = vld [vmem:[#allocation5 + $0xf8] sm:$0xff]
        %v280 = vld [vmem:[%s3] sm:$0xf]
        %v282 = vlaneseq
        %v283 = vshrl.u32 %v282, 7
        %v284 = vsub.s32 0, %v283
        %v285 = vrot.slane %v280, %v284
        %v286 = vlaneseq
        %v287 = vshrl.u32 %v286, 7
        %v288 = vsub.s32 1, %v287
        %v289 = vrot.slane %v280, %v288
        %v290 = vlaneseq
        %v291 = vshrl.u32 %v290, 7
        %v292 = vsub.s32 2, %v291
        %v293 = vrot.slane %v280, %v292
        %v294 = vlaneseq
        %v295 = vshrl.u32 %v294, 7
        %v296 = vsub.s32 3, %v295
        %v297 = vrot.slane %v280, %v296
        %v310 = vunpack.c.l.b16 %v240
        %v311 = vunpack.c.l.b16 %v241
        %v312 = vunpack.c.l.b16 %v242
        %v313 = vunpack.c.l.b16 %v243
        %v314 = vunpack.c.l.b16 %v244
        %v315 = vunpack.c.l.b16 %v245
        %v316 = vunpack.c.l.b16 %v246
        %v317 = vunpack.c.l.b16 %v247
        %v318 = vpack.c.b16 %v311, %v310
        %v319 = vpack.c.b16 %v313, %v312
        %v320 = vpack.c.b16 %v315, %v314
        %v321 = vpack.c.b16 %v317, %v316
        %v358 = vunpack.c.l.b16 %v248
        %v359 = vunpack.c.h.b16 %v248
        %v360 = vunpack.c.l.b16 %v249
        %v361 = vunpack.c.h.b16 %v249
        %v362 = vunpack.c.l.b16 %v250
        %v363 = vunpack.c.h.b16 %v250
        %v364 = vunpack.c.l.b16 %v251
        %v365 = vunpack.c.h.b16 %v251
        %v366 = vunpack.c.l.b16 %v252
        %v367 = vunpack.c.h.b16 %v252
        %v368 = vunpack.c.l.b16 %v253
        %v369 = vunpack.c.h.b16 %v253
        %v370 = vunpack.c.l.b16 %v254
        %v371 = vunpack.c.h.b16 %v254
        %v372 = vunpack.c.l.b16 %v255
        %v373 = vunpack.c.h.b16 %v255
        %v374 = vunpack.c.l.b16 %v256
        %v375 = vunpack.c.h.b16 %v256
        %v376 = vunpack.c.l.b16 %v257
        %v377 = vunpack.c.h.b16 %v257
        %v378 = vunpack.c.l.b16 %v258
        %v379 = vunpack.c.h.b16 %v258
        %v380 = vunpack.c.l.b16 %v259
        %v381 = vunpack.c.h.b16 %v259
        %v382 = vunpack.c.l.b16 %v260
        %v383 = vunpack.c.h.b16 %v260
        %v384 = vunpack.c.l.b16 %v261
        %v385 = vunpack.c.h.b16 %v261
        %v386 = vunpack.c.l.b16 %v262
        %v387 = vunpack.c.h.b16 %v262
        %v388 = vunpack.c.l.b16 %v263
        %v389 = vunpack.c.h.b16 %v263
        %v390 = vunpack.c.l.b16 %v264
        %v391 = vunpack.c.h.b16 %v264
        %v392 = vunpack.c.l.b16 %v265
        %v393 = vunpack.c.h.b16 %v265
        %v394 = vunpack.c.l.b16 %v266
        %v395 = vunpack.c.h.b16 %v266
        %v396 = vunpack.c.l.b16 %v267
        %v397 = vunpack.c.h.b16 %v267
        %v398 = vunpack.c.l.b16 %v268
        %v399 = vunpack.c.h.b16 %v268
        %v400 = vunpack.c.l.b16 %v269
        %v401 = vunpack.c.h.b16 %v269
        %v402 = vunpack.c.l.b16 %v270
        %v403 = vunpack.c.h.b16 %v270
        %v404 = vunpack.c.l.b16 %v271
        %v405 = vunpack.c.h.b16 %v271
        %v406 = vunpack.c.l.b16 %v272
        %v407 = vunpack.c.h.b16 %v272
        %v408 = vunpack.c.l.b16 %v273
        %v409 = vunpack.c.h.b16 %v273
        %v410 = vunpack.c.l.b16 %v274
        %v411 = vunpack.c.h.b16 %v274
        %v412 = vunpack.c.l.b16 %v275
        %v413 = vunpack.c.h.b16 %v275
        %v414 = vunpack.c.l.b16 %v276
        %v415 = vunpack.c.h.b16 %v276
        %v416 = vunpack.c.l.b16 %v277
        %v417 = vunpack.c.h.b16 %v277
        %v418 = vunpack.c.l.b16 %v278
        %v419 = vunpack.c.h.b16 %v278
        %v420 = vunpack.c.l.b16 %v279
        %v421 = vunpack.c.h.b16 %v279
        %v422 = vpack.c.b16 %v362, %v358
        %v423 = vpack.c.b16 %v363, %v359
        %v424 = vpack.c.b16 %v364, %v360
        %v425 = vpack.c.b16 %v365, %v361
        %v426 = vpack.c.b16 %v370, %v366
        %v427 = vpack.c.b16 %v371, %v367
        %v428 = vpack.c.b16 %v372, %v368
        %v429 = vpack.c.b16 %v373, %v369
        %v430 = vpack.c.b16 %v378, %v374
        %v431 = vpack.c.b16 %v379, %v375
        %v432 = vpack.c.b16 %v380, %v376
        %v433 = vpack.c.b16 %v381, %v377
        %v434 = vpack.c.b16 %v386, %v382
        %v435 = vpack.c.b16 %v387, %v383
        %v436 = vpack.c.b16 %v388, %v384
        %v437 = vpack.c.b16 %v389, %v385
        %v438 = vpack.c.b16 %v394, %v390
        %v439 = vpack.c.b16 %v395, %v391
        %v440 = vpack.c.b16 %v396, %v392
        %v441 = vpack.c.b16 %v397, %v393
        %v442 = vpack.c.b16 %v402, %v398
        %v443 = vpack.c.b16 %v403, %v399
        %v444 = vpack.c.b16 %v404, %v400
        %v445 = vpack.c.b16 %v405, %v401
        %v446 = vpack.c.b16 %v410, %v406
        %v447 = vpack.c.b16 %v411, %v407
        %v448 = vpack.c.b16 %v412, %v408
        %v449 = vpack.c.b16 %v413, %v409
        %v450 = vpack.c.b16 %v418, %v414
        %v451 = vpack.c.b16 %v419, %v415
        %v452 = vpack.c.b16 %v420, %v416
        %v453 = vpack.c.b16 %v421, %v417
        %486 = vmatprep.subr.bf16.mxu0 %v451
        %487 = vmatpush1.bf16.msra.mxu0 %v450
        %488 = vmatprep.subr.bf16.mxu0 %v447
        %489 = vmatpush1.bf16.msra.mxu0 %v446
        %490 = vmatprep.subr.bf16.mxu0 %v443
        %491 = vmatpush1.bf16.msra.mxu0 %v442
        %492 = vmatprep.subr.bf16.mxu0 %v439
        %493 = vmatpush1.bf16.msra.mxu0 %v438
        %494 = vmatprep.subr.bf16.mxu0 %v435
        %495 = vmatpush1.bf16.msra.mxu0 %v434
        %496 = vmatprep.subr.bf16.mxu0 %v431
        %497 = vmatpush1.bf16.msra.mxu0 %v430
        %498 = vmatprep.subr.bf16.mxu0 %v427
        %499 = vmatpush1.bf16.msra.mxu0 %v426
        %500 = vmatprep.subr.bf16.mxu0 %v423
        %501 = vmatpush1.bf16.msra.mxu0 %v422
        %502 = vmatprep.subr.bf16.mxu0 0
        %503 = vmatpush2.bf16.msra.mxu0 0
        %504 = vmatprep.subr.bf16.mxu0 0
        %505 = vmatpush2.bf16.msra.mxu0 0
        %506 = vmatprep.subr.bf16.mxu0 0
        %507 = vmatpush2.bf16.msra.mxu0 0
        %508 = vmatprep.subr.bf16.mxu0 0
        %509 = vmatpush2.bf16.msra.mxu0 0
        %510 = vmatprep.subr.bf16.mxu0 0
        %511 = vmatpush2.bf16.msra.mxu0 0
        %512 = vmatprep.subr.bf16.mxu0 0
        %513 = vmatpush2.bf16.msra.mxu0 0
        %514 = vmatprep.subr.bf16.mxu0 0
        %515 = vmatpush2.bf16.msra.mxu0 0
        %516 = vmatprep.subr.bf16.mxu0 0
        %517 = vmatpush2.bf16.msra.mxu0 0
        %518 = vmatprep.mubr.bf16.mxu0 0
        %519 = vmatmul.mubr.bf16.gmra.mxu0 %v318
        %v520 = vpop.f32.mrf.mxu0
        %v521 = vadd.f32 %v285, %v520
        %v522 = vpop.f32.mrf.mxu0
        %v523 = vadd.f32 %v289, %v522
        %v524 = vpop.f32.mrf.mxu0
        %v525 = vadd.f32 %v285, %v524
        %v526 = vpop.f32.mrf.mxu0
        %v527 = vadd.f32 %v289, %v526
        %528 = vmatprep.mubr.bf16.mxu0 0
        %529 = vmatmul.mubr.bf16.gmra.mxu0 %v319
        %v530 = vpop.f32.mrf.mxu0
        %v531 = vadd.f32 %v285, %v530
        %v532 = vpop.f32.mrf.mxu0
        %v533 = vadd.f32 %v289, %v532
        %v534 = vpop.f32.mrf.mxu0
        %v535 = vadd.f32 %v285, %v534
        %v536 = vpop.f32.mrf.mxu0
        %v537 = vadd.f32 %v289, %v536
        %538 = vmatprep.mubr.bf16.mxu0 0
        %539 = vmatmul.mubr.bf16.gmra.mxu0 %v320
        %v540 = vpop.f32.mrf.mxu0
        %v541 = vadd.f32 %v285, %v540
        %v542 = vpop.f32.mrf.mxu0
        %v543 = vadd.f32 %v289, %v542
        %v544 = vpop.f32.mrf.mxu0
        %v545 = vadd.f32 %v285, %v544
        %v546 = vpop.f32.mrf.mxu0
        %v547 = vadd.f32 %v289, %v546
        %548 = vmatprep.mubr.bf16.mxu0 0
        %549 = vmatmul.mubr.bf16.gmra.mxu0 %v321
        %v550 = vpop.f32.mrf.mxu0
        %v551 = vadd.f32 %v285, %v550
        %v552 = vpop.f32.mrf.mxu0
        %v553 = vadd.f32 %v289, %v552
        %v554 = vpop.f32.mrf.mxu0
        %v555 = vadd.f32 %v285, %v554
        %v556 = vpop.f32.mrf.mxu0
        %v557 = vadd.f32 %v289, %v556
        %558 = vdwg.mxu0
        %559 = vmatprep.subr.bf16.mxu0 %v453
        %560 = vmatpush1.bf16.msra.mxu0 %v452
        %561 = vmatprep.subr.bf16.mxu0 %v449
        %562 = vmatpush1.bf16.msra.mxu0 %v448
        %563 = vmatprep.subr.bf16.mxu0 %v445
        %564 = vmatpush1.bf16.msra.mxu0 %v444
        %565 = vmatprep.subr.bf16.mxu0 %v441
        %566 = vmatpush1.bf16.msra.mxu0 %v440
        %567 = vmatprep.subr.bf16.mxu0 %v437
        %568 = vmatpush1.bf16.msra.mxu0 %v436
        %569 = vmatprep.subr.bf16.mxu0 %v433
        %570 = vmatpush1.bf16.msra.mxu0 %v432
        %571 = vmatprep.subr.bf16.mxu0 %v429
        %572 = vmatpush1.bf16.msra.mxu0 %v428
        %573 = vmatprep.subr.bf16.mxu0 %v425
        %574 = vmatpush1.bf16.msra.mxu0 %v424
        %575 = vmatprep.subr.bf16.mxu0 0
        %576 = vmatpush2.bf16.msra.mxu0 0
        %577 = vmatprep.subr.bf16.mxu0 0
        %578 = vmatpush2.bf16.msra.mxu0 0
        %579 = vmatprep.subr.bf16.mxu0 0
        %580 = vmatpush2.bf16.msra.mxu0 0
        %581 = vmatprep.subr.bf16.mxu0 0
        %582 = vmatpush2.bf16.msra.mxu0 0
        %583 = vmatprep.subr.bf16.mxu0 0
        %584 = vmatpush2.bf16.msra.mxu0 0
        %585 = vmatprep.subr.bf16.mxu0 0
        %586 = vmatpush2.bf16.msra.mxu0 0
        %587 = vmatprep.subr.bf16.mxu0 0
        %588 = vmatpush2.bf16.msra.mxu0 0
        %589 = vmatprep.subr.bf16.mxu0 0
        %590 = vmatpush2.bf16.msra.mxu0 0
        %591 = vmatprep.mubr.bf16.mxu0 0
        %592 = vmatmul.mubr.bf16.gmra.mxu0 %v318
        %v593 = vpop.f32.mrf.mxu0
        %v594 = vadd.f32 %v293, %v593
        %v595 = vpop.f32.mrf.mxu0
        %v596 = vadd.f32 %v297, %v595
        %v597 = vpop.f32.mrf.mxu0
        %v598 = vadd.f32 %v293, %v597
        %v599 = vpop.f32.mrf.mxu0
        %v600 = vadd.f32 %v297, %v599
        %601 = vmatprep.mubr.bf16.mxu0 0
        %602 = vmatmul.mubr.bf16.gmra.mxu0 %v319
        %v603 = vpop.f32.mrf.mxu0
        %v604 = vadd.f32 %v293, %v603
        %v605 = vpop.f32.mrf.mxu0
        %v606 = vadd.f32 %v297, %v605
        %v607 = vpop.f32.mrf.mxu0
        %v608 = vadd.f32 %v293, %v607
        %v609 = vpop.f32.mrf.mxu0
        %v610 = vadd.f32 %v297, %v609
        %611 = vmatprep.mubr.bf16.mxu0 0
        %612 = vmatmul.mubr.bf16.gmra.mxu0 %v320
        %v613 = vpop.f32.mrf.mxu0
        %v614 = vadd.f32 %v293, %v613
        %v615 = vpop.f32.mrf.mxu0
        %v616 = vadd.f32 %v297, %v615
        %v617 = vpop.f32.mrf.mxu0
        %v618 = vadd.f32 %v293, %v617
        %v619 = vpop.f32.mrf.mxu0
        %v620 = vadd.f32 %v297, %v619
        %621 = vmatprep.mubr.bf16.mxu0 0
        %622 = vmatmul.mubr.bf16.gmra.mxu0 %v321
        %v623 = vpop.f32.mrf.mxu0
        %v624 = vadd.f32 %v293, %v623
        %v625 = vpop.f32.mrf.mxu0
        %v626 = vadd.f32 %v297, %v625
        %v627 = vpop.f32.mrf.mxu0
        %v628 = vadd.f32 %v293, %v627
        %v629 = vpop.f32.mrf.mxu0
        %v630 = vadd.f32 %v297, %v629
        %631 = vdwg.mxu0
        %632 = vst [vmem:[#allocation4] sm:$0xff] %v521
        %633 = vst [vmem:[#allocation4 + $0x8] sm:$0xff] %v523
        %634 = vst [vmem:[#allocation4 + $0x10] sm:$0xff] %v594
        %635 = vst [vmem:[#allocation4 + $0x18] sm:$0xff] %v596
        %636 = vst [vmem:[#allocation4 + $0x20] sm:$0xff] %v525
        %637 = vst [vmem:[#allocation4 + $0x28] sm:$0xff] %v527
        %638 = vst [vmem:[#allocation4 + $0x30] sm:$0xff] %v598
        %639 = vst [vmem:[#allocation4 + $0x38] sm:$0xff] %v600
        %640 = vst [vmem:[#allocation4 + $0x40] sm:$0xff] %v531
        %641 = vst [vmem:[#allocation4 + $0x48] sm:$0xff] %v533
        %642 = vst [vmem:[#allocation4 + $0x50] sm:$0xff] %v604
        %643 = vst [vmem:[#allocation4 + $0x58] sm:$0xff] %v606
        %644 = vst [vmem:[#allocation4 + $0x60] sm:$0xff] %v535
        %645 = vst [vmem:[#allocation4 + $0x68] sm:$0xff] %v537
        %646 = vst [vmem:[#allocation4 + $0x70] sm:$0xff] %v608
        %647 = vst [vmem:[#allocation4 + $0x78] sm:$0xff] %v610
        %648 = vst [vmem:[#allocation4 + $0x80] sm:$0xff] %v541
        %649 = vst [vmem:[#allocation4 + $0x88] sm:$0xff] %v543
        %650 = vst [vmem:[#allocation4 + $0x90] sm:$0xff] %v614
        %651 = vst [vmem:[#allocation4 + $0x98] sm:$0xff] %v616
        %652 = vst [vmem:[#allocation4 + $0xa0] sm:$0xff] %v545
        %653 = vst [vmem:[#allocation4 + $0xa8] sm:$0xff] %v547
        %654 = vst [vmem:[#allocation4 + $0xb0] sm:$0xff] %v618
        %655 = vst [vmem:[#allocation4 + $0xb8] sm:$0xff] %v620
        %656 = vst [vmem:[#allocation4 + $0xc0] sm:$0xff] %v551
        %657 = vst [vmem:[#allocation4 + $0xc8] sm:$0xff] %v553
        %658 = vst [vmem:[#allocation4 + $0xd0] sm:$0xff] %v624
        %659 = vst [vmem:[#allocation4 + $0xd8] sm:$0xff] %v626
        %660 = vst [vmem:[#allocation4 + $0xe0] sm:$0xff] %v555
        %661 = vst [vmem:[#allocation4 + $0xe8] sm:$0xff] %v557
        %662 = vst [vmem:[#allocation4 + $0xf0] sm:$0xff] %v628
        %663 = vst [vmem:[#allocation4 + $0xf8] sm:$0xff] %v630
        %v664 = vld [vmem:[#allocation7] sm:$0xff]
        %v665 = vld [vmem:[#allocation7 + $0x8] sm:$0xff]
        %v666 = vld [vmem:[#allocation7 + $0x10] sm:$0xff]
        %v667 = vld [vmem:[#allocation7 + $0x18] sm:$0xff]
        %v668 = vld [vmem:[#allocation7 + $0x20] sm:$0xff]
        %v669 = vld [vmem:[#allocation7 + $0x28] sm:$0xff]
        %v670 = vld [vmem:[#allocation7 + $0x30] sm:$0xff]
        %v671 = vld [vmem:[#allocation7 + $0x38] sm:$0xff]
        %v672 = vld [vmem:[#allocation7 + $0x40] sm:$0xff]
        %v673 = vld [vmem:[#allocation7 + $0x48] sm:$0xff]
        %v674 = vld [vmem:[#allocation7 + $0x50] sm:$0xff]
        %v675 = vld [vmem:[#allocation7 + $0x58] sm:$0xff]
        %v676 = vld [vmem:[#allocation7 + $0x60] sm:$0xff]
        %v677 = vld [vmem:[#allocation7 + $0x68] sm:$0xff]
        %v678 = vld [vmem:[#allocation7 + $0x70] sm:$0xff]
        %v679 = vld [vmem:[#allocation7 + $0x78] sm:$0xff]
        %v680 = vld [vmem:[#allocation7 + $0x80] sm:$0xff]
        %v681 = vld [vmem:[#allocation7 + $0x88] sm:$0xff]
        %v682 = vld [vmem:[#allocation7 + $0x90] sm:$0xff]
        %v683 = vld [vmem:[#allocation7 + $0x98] sm:$0xff]
        %v684 = vld [vmem:[#allocation7 + $0xa0] sm:$0xff]
        %v685 = vld [vmem:[#allocation7 + $0xa8] sm:$0xff]
        %v686 = vld [vmem:[#allocation7 + $0xb0] sm:$0xff]
        %v687 = vld [vmem:[#allocation7 + $0xb8] sm:$0xff]
        %v688 = vld [vmem:[#allocation7 + $0xc0] sm:$0xff]
        %v689 = vld [vmem:[#allocation7 + $0xc8] sm:$0xff]
        %v690 = vld [vmem:[#allocation7 + $0xd0] sm:$0xff]
        %v691 = vld [vmem:[#allocation7 + $0xd8] sm:$0xff]
        %v692 = vld [vmem:[#allocation7 + $0xe0] sm:$0xff]
        %v693 = vld [vmem:[#allocation7 + $0xe8] sm:$0xff]
        %v694 = vld [vmem:[#allocation7 + $0xf0] sm:$0xff]
        %v695 = vld [vmem:[#allocation7 + $0xf8] sm:$0xff]
        %v696 = vld [vmem:[#allocation2] sm:$0xff]
        %v697 = vld [vmem:[#allocation2 + $0x8] sm:$0xff]
        %v698 = vld [vmem:[#allocation3] sm:$0xff]
        %v699 = vld [vmem:[#allocation3 + $0x8] sm:$0xff]
        %s700 = smul.u32 0, 4
        %s701 = smul.addr %s700, 8
        %s702 = scalar_lea.vmem [#allocation4], %s701
        %v703 = vld [vmem:[%s702] sm:$0xff]
        %v704 = vld [vmem:[%s702 + $0x8] sm:$0xff]
        %v705 = vld [vmem:[%s702 + $0x10] sm:$0xff]
        %v706 = vld [vmem:[%s702 + $0x18] sm:$0xff]
        %v707 = vld [vmem:[%s702 + $0x20] sm:$0xff]
        %v708 = vld [vmem:[%s702 + $0x28] sm:$0xff]
        %v709 = vld [vmem:[%s702 + $0x30] sm:$0xff]
        %v710 = vld [vmem:[%s702 + $0x38] sm:$0xff]
        %v711 = vpack.c.bf16 %v697, %v696
        %v744 = vunpack.c.l.b16 %v664
        %v745 = vunpack.c.h.b16 %v664
        %v746 = vunpack.c.l.b16 %v665
        %v747 = vunpack.c.h.b16 %v665
        %v748 = vunpack.c.l.b16 %v666
        %v749 = vunpack.c.h.b16 %v666
        %v750 = vunpack.c.l.b16 %v667
        %v751 = vunpack.c.h.b16 %v667
        %v752 = vunpack.c.l.b16 %v668
        %v753 = vunpack.c.h.b16 %v668
        %v754 = vunpack.c.l.b16 %v669
        %v755 = vunpack.c.h.b16 %v669
        %v756 = vunpack.c.l.b16 %v670
        %v757 = vunpack.c.h.b16 %v670
        %v758 = vunpack.c.l.b16 %v671
        %v759 = vunpack.c.h.b16 %v671
        %v760 = vunpack.c.l.b16 %v672
        %v761 = vunpack.c.h.b16 %v672
        %v762 = vunpack.c.l.b16 %v673
        %v763 = vunpack.c.h.b16 %v673
        %v764 = vunpack.c.l.b16 %v674
        %v765 = vunpack.c.h.b16 %v674
        %v766 = vunpack.c.l.b16 %v675
        %v767 = vunpack.c.h.b16 %v675
        %v768 = vunpack.c.l.b16 %v676
        %v769 = vunpack.c.h.b16 %v676
        %v770 = vunpack.c.l.b16 %v677
        %v771 = vunpack.c.h.b16 %v677
        %v772 = vunpack.c.l.b16 %v678
        %v773 = vunpack.c.h.b16 %v678
        %v774 = vunpack.c.l.b16 %v679
        %v775 = vunpack.c.h.b16 %v679
        %v776 = vunpack.c.l.b16 %v680
        %v777 = vunpack.c.h.b16 %v680
        %v778 = vunpack.c.l.b16 %v681
        %v779 = vunpack.c.h.b16 %v681
        %v780 = vunpack.c.l.b16 %v682
        %v781 = vunpack.c.h.b16 %v682
        %v782 = vunpack.c.l.b16 %v683
        %v783 = vunpack.c.h.b16 %v683
        %v784 = vunpack.c.l.b16 %v684
        %v785 = vunpack.c.h.b16 %v684
        %v786 = vunpack.c.l.b16 %v685
        %v787 = vunpack.c.h.b16 %v685
        %v788 = vunpack.c.l.b16 %v686
        %v789 = vunpack.c.h.b16 %v686
        %v790 = vunpack.c.l.b16 %v687
        %v791 = vunpack.c.h.b16 %v687
        %v792 = vunpack.c.l.b16 %v688
        %v793 = vunpack.c.h.b16 %v688
        %v794 = vunpack.c.l.b16 %v689
        %v795 = vunpack.c.h.b16 %v689
        %v796 = vunpack.c.l.b16 %v690
        %v797 = vunpack.c.h.b16 %v690
        %v798 = vunpack.c.l.b16 %v691
        %v799 = vunpack.c.h.b16 %v691
        %v800 = vunpack.c.l.b16 %v692
        %v801 = vunpack.c.h.b16 %v692
        %v802 = vunpack.c.l.b16 %v693
        %v803 = vunpack.c.h.b16 %v693
        %v804 = vunpack.c.l.b16 %v694
        %v805 = vunpack.c.h.b16 %v694
        %v806 = vunpack.c.l.b16 %v695
        %v807 = vunpack.c.h.b16 %v695
        %v808 = vpack.c.b16 %v748, %v744
        %v809 = vpack.c.b16 %v749, %v745
        %v810 = vpack.c.b16 %v750, %v746
        %v811 = vpack.c.b16 %v751, %v747
        %v812 = vpack.c.b16 %v756, %v752
        %v813 = vpack.c.b16 %v757, %v753
        %v814 = vpack.c.b16 %v758, %v754
        %v815 = vpack.c.b16 %v759, %v755
        %v816 = vpack.c.b16 %v764, %v760
        %v817 = vpack.c.b16 %v765, %v761
        %v818 = vpack.c.b16 %v766, %v762
        %v819 = vpack.c.b16 %v767, %v763
        %v820 = vpack.c.b16 %v772, %v768
        %v821 = vpack.c.b16 %v773, %v769
        %v822 = vpack.c.b16 %v774, %v770
        %v823 = vpack.c.b16 %v775, %v771
        %v824 = vpack.c.b16 %v780, %v776
        %v825 = vpack.c.b16 %v781, %v777
        %v826 = vpack.c.b16 %v782, %v778
        %v827 = vpack.c.b16 %v783, %v779
        %v828 = vpack.c.b16 %v788, %v784
        %v829 = vpack.c.b16 %v789, %v785
        %v830 = vpack.c.b16 %v790, %v786
        %v831 = vpack.c.b16 %v791, %v787
        %v832 = vpack.c.b16 %v796, %v792
        %v833 = vpack.c.b16 %v797, %v793
        %v834 = vpack.c.b16 %v798, %v794
        %v835 = vpack.c.b16 %v799, %v795
        %v836 = vpack.c.b16 %v804, %v800
        %v837 = vpack.c.b16 %v805, %v801
        %v838 = vpack.c.b16 %v806, %v802
        %v839 = vpack.c.b16 %v807, %v803
        %872 = vmatprep.subr.bf16.mxu0 %v837
        %873 = vmatpush1.bf16.msra.mxu0 %v836
        %874 = vmatprep.subr.bf16.mxu0 %v833
        %875 = vmatpush1.bf16.msra.mxu0 %v832
        %876 = vmatprep.subr.bf16.mxu0 %v829
        %877 = vmatpush1.bf16.msra.mxu0 %v828
        %878 = vmatprep.subr.bf16.mxu0 %v825
        %879 = vmatpush1.bf16.msra.mxu0 %v824
        %880 = vmatprep.subr.bf16.mxu0 %v821
        %881 = vmatpush1.bf16.msra.mxu0 %v820
        %882 = vmatprep.subr.bf16.mxu0 %v817
        %883 = vmatpush1.bf16.msra.mxu0 %v816
        %884 = vmatprep.subr.bf16.mxu0 %v813
        %885 = vmatpush1.bf16.msra.mxu0 %v812
        %886 = vmatprep.subr.bf16.mxu0 %v809
        %887 = vmatpush1.bf16.msra.mxu0 %v808
        %888 = vmatprep.subr.bf16.mxu0 0
        %889 = vmatpush2.bf16.msra.mxu0 0
        %890 = vmatprep.subr.bf16.mxu0 0
        %891 = vmatpush2.bf16.msra.mxu0 0
        %892 = vmatprep.subr.bf16.mxu0 0
        %893 = vmatpush2.bf16.msra.mxu0 0
        %894 = vmatprep.subr.bf16.mxu0 0
        %895 = vmatpush2.bf16.msra.mxu0 0
        %896 = vmatprep.subr.bf16.mxu0 0
        %897 = vmatpush2.bf16.msra.mxu0 0
        %898 = vmatprep.subr.bf16.mxu0 0
        %899 = vmatpush2.bf16.msra.mxu0 0
        %900 = vmatprep.subr.bf16.mxu0 0
        %901 = vmatpush2.bf16.msra.mxu0 0
        %902 = vmatprep.subr.bf16.mxu0 0
        %903 = vmatpush2.bf16.msra.mxu0 0
        %904 = vmatprep.mubr.bf16.mxu0 0
        %905 = vmatmul.mubr.bf16.gmra.mxu0 %v711
        %v906 = vpop.f32.mrf.mxu0
        %v907 = vadd.f32 0.0, %v906
        %v908 = vpop.f32.mrf.mxu0
        %v909 = vadd.f32 0.0, %v908
        %v910 = vpop.f32.mrf.mxu0
        %v911 = vadd.f32 0.0, %v910
        %v912 = vpop.f32.mrf.mxu0
        %v913 = vadd.f32 0.0, %v912
        %914 = vdwg.mxu0
        %915 = vmatprep.subr.bf16.mxu0 %v839
        %916 = vmatpush1.bf16.msra.mxu0 %v838
        %917 = vmatprep.subr.bf16.mxu0 %v835
        %918 = vmatpush1.bf16.msra.mxu0 %v834
        %919 = vmatprep.subr.bf16.mxu0 %v831
        %920 = vmatpush1.bf16.msra.mxu0 %v830
        %921 = vmatprep.subr.bf16.mxu0 %v827
        %922 = vmatpush1.bf16.msra.mxu0 %v826
        %923 = vmatprep.subr.bf16.mxu0 %v823
        %924 = vmatpush1.bf16.msra.mxu0 %v822
        %925 = vmatprep.subr.bf16.mxu0 %v819
        %926 = vmatpush1.bf16.msra.mxu0 %v818
        %927 = vmatprep.subr.bf16.mxu0 %v815
        %928 = vmatpush1.bf16.msra.mxu0 %v814
        %929 = vmatprep.subr.bf16.mxu0 %v811
        %930 = vmatpush1.bf16.msra.mxu0 %v810
        %931 = vmatprep.subr.bf16.mxu0 0
        %932 = vmatpush2.bf16.msra.mxu0 0
        %933 = vmatprep.subr.bf16.mxu0 0
        %934 = vmatpush2.bf16.msra.mxu0 0
        %935 = vmatprep.subr.bf16.mxu0 0
        %936 = vmatpush2.bf16.msra.mxu0 0
        %937 = vmatprep.subr.bf16.mxu0 0
        %938 = vmatpush2.bf16.msra.mxu0 0
        %939 = vmatprep.subr.bf16.mxu0 0
        %940 = vmatpush2.bf16.msra.mxu0 0
        %941 = vmatprep.subr.bf16.mxu0 0
        %942 = vmatpush2.bf16.msra.mxu0 0
        %943 = vmatprep.subr.bf16.mxu0 0
        %944 = vmatpush2.bf16.msra.mxu0 0
        %945 = vmatprep.subr.bf16.mxu0 0
        %946 = vmatpush2.bf16.msra.mxu0 0
        %947 = vmatprep.mubr.bf16.mxu0 0
        %948 = vmatmul.mubr.bf16.gmra.mxu0 %v711
        %v949 = vpop.f32.mrf.mxu0
        %v950 = vadd.f32 0.0, %v949
        %v951 = vpop.f32.mrf.mxu0
        %v952 = vadd.f32 0.0, %v951
        %v953 = vpop.f32.mrf.mxu0
        %v954 = vadd.f32 0.0, %v953
        %v955 = vpop.f32.mrf.mxu0
        %v956 = vadd.f32 0.0, %v955
        %957 = vdwg.mxu0
        %v958 = vadd.f32 %v703, %v907
        %v959 = vadd.f32 %v704, %v909
        %v960 = vadd.f32 %v705, %v950
        %v961 = vadd.f32 %v706, %v952
        %v962 = vadd.f32 %v707, %v911
        %v963 = vadd.f32 %v708, %v913
        %v964 = vadd.f32 %v709, %v954
        %v965 = vadd.f32 %v710, %v956
        %v966 = vxor.u32 %v958, 2147483648
        %v967 = vxor.u32 %v962, 2147483648
        %v968 = vmul.f32 %v966, 1.442695
        %v969 = vpow.pop %v968
        %v970 = vmul.f32 %v967, 1.442695
        %v971 = vpow.pop %v970
        %v972 = vadd.f32 %v969, 1.0
        %v973 = vadd.f32 %v971, 1.0
        %v974 = vrcp.pop %v972
        %v975 = vmul.f32 1.0, %v974
        %v976 = vrcp.pop %v973
        %v977 = vmul.f32 1.0, %v976
        %v978 = vxor.u32 %v959, 2147483648
        %v979 = vxor.u32 %v963, 2147483648
        %v980 = vmul.f32 %v978, 1.442695
        %v981 = vpow.pop %v980
        %v982 = vmul.f32 %v979, 1.442695
        %v983 = vpow.pop %v982
        %v984 = vadd.f32 %v981, 1.0
        %v985 = vadd.f32 %v983, 1.0
        %v986 = vrcp.pop %v984
        %v987 = vmul.f32 1.0, %v986
        %v988 = vrcp.pop %v985
        %v989 = vmul.f32 1.0, %v988
        %v990 = vtanh.pop %v960
        %v991 = vtanh.pop %v964
        %v992 = vxor.u32 %v961, 2147483648
        %v993 = vxor.u32 %v965, 2147483648
        %v994 = vmul.f32 %v992, 1.442695
        %v995 = vpow.pop %v994
        %v996 = vmul.f32 %v993, 1.442695
        %v997 = vpow.pop %v996
        %v998 = vadd.f32 %v995, 1.0
        %v999 = vadd.f32 %v997, 1.0
        %v1000 = vrcp.pop %v998
        %v1001 = vmul.f32 1.0, %v1000
        %v1002 = vrcp.pop %v999
        %v1003 = vmul.f32 1.0, %v1002
        %v1004 = vmul.f32 %v987, %v698
        %v1005 = vmul.f32 %v989, %v699
        %v1006 = vmul.f32 %v975, %v990
        %v1007 = vmul.f32 %v977, %v991
        %v1008 = vadd.f32 %v1004, %v1006
        %v1009 = vadd.f32 %v1005, %v1007
        %v1010 = vtanh.pop %v1008
        %v1011 = vtanh.pop %v1009
        %v1012 = vmul.f32 %v1001, %v1010
        %v1013 = vmul.f32 %v1003, %v1011
        %v1014 = vpack.c.bf16 %v1013, %v1012
        %v1016 = vunpack.c.l.b16 %v1014
        %v1017 = vunpack.c.h.b16 %v1014
        %v1018 = vpack.c.b16 %v1016, %v1016
        %v1019 = vpack.c.b16 %v1017, %v1017
        %1022 = vst [vmem:[%s229] sm:$0xf] %v1018
        %1023 = vst [vmem:[%s229 + $0x4] sm:$0xf] %v1019
        %s1024 = smul.u32 2, 4
        %s1025 = smul.addr %s1024, 8
        %s1026 = scalar_lea.vmem [#allocation4], %s1025
        %v1027 = vld [vmem:[%s1026] sm:$0xff]
        %v1028 = vld [vmem:[%s1026 + $0x8] sm:$0xff]
        %v1029 = vld [vmem:[%s1026 + $0x10] sm:$0xff]
        %v1030 = vld [vmem:[%s1026 + $0x18] sm:$0xff]
        %v1031 = vld [vmem:[%s1026 + $0x20] sm:$0xff]
        %v1032 = vld [vmem:[%s1026 + $0x28] sm:$0xff]
        %v1033 = vld [vmem:[%s1026 + $0x30] sm:$0xff]
        %v1034 = vld [vmem:[%s1026 + $0x38] sm:$0xff]
        %1035 = vmatprep.subr.bf16.mxu0 %v837
        %1036 = vmatpush1.bf16.msra.mxu0 %v836
        %1037 = vmatprep.subr.bf16.mxu0 %v833
        %1038 = vmatpush1.bf16.msra.mxu0 %v832
        %1039 = vmatprep.subr.bf16.mxu0 %v829
        %1040 = vmatpush1.bf16.msra.mxu0 %v828
        %1041 = vmatprep.subr.bf16.mxu0 %v825
        %1042 = vmatpush1.bf16.msra.mxu0 %v824
        %1043 = vmatprep.subr.bf16.mxu0 %v821
        %1044 = vmatpush1.bf16.msra.mxu0 %v820
        %1045 = vmatprep.subr.bf16.mxu0 %v817
        %1046 = vmatpush1.bf16.msra.mxu0 %v816
        %1047 = vmatprep.subr.bf16.mxu0 %v813
        %1048 = vmatpush1.bf16.msra.mxu0 %v812
        %1049 = vmatprep.subr.bf16.mxu0 %v809
        %1050 = vmatpush1.bf16.msra.mxu0 %v808
        %1051 = vmatprep.subr.bf16.mxu0 0
        %1052 = vmatpush2.bf16.msra.mxu0 0
        %1053 = vmatprep.subr.bf16.mxu0 0
        %1054 = vmatpush2.bf16.msra.mxu0 0
        %1055 = vmatprep.subr.bf16.mxu0 0
        %1056 = vmatpush2.bf16.msra.mxu0 0
        %1057 = vmatprep.subr.bf16.mxu0 0
        %1058 = vmatpush2.bf16.msra.mxu0 0
        %1059 = vmatprep.subr.bf16.mxu0 0
        %1060 = vmatpush2.bf16.msra.mxu0 0
        %1061 = vmatprep.subr.bf16.mxu0 0
        %1062 = vmatpush2.bf16.msra.mxu0 0
        %1063 = vmatprep.subr.bf16.mxu0 0
        %1064 = vmatpush2.bf16.msra.mxu0 0
        %1065 = vmatprep.subr.bf16.mxu0 0
        %1066 = vmatpush2.bf16.msra.mxu0 0
        %1067 = vmatprep.mubr.bf16.mxu0 0
        %1068 = vmatmul.mubr.bf16.gmra.mxu0 %v1014
        %v1069 = vpop.f32.mrf.mxu0
        %v1070 = vadd.f32 0.0, %v1069
        %v1071 = vpop.f32.mrf.mxu0
        %v1072 = vadd.f32 0.0, %v1071
        %v1073 = vpop.f32.mrf.mxu0
        %v1074 = vadd.f32 0.0, %v1073
        %v1075 = vpop.f32.mrf.mxu0
        %v1076 = vadd.f32 0.0, %v1075
        %1077 = vdwg.mxu0
        %1078 = vmatprep.subr.bf16.mxu0 %v839
        %1079 = vmatpush1.bf16.msra.mxu0 %v838
        %1080 = vmatprep.subr.bf16.mxu0 %v835
        %1081 = vmatpush1.bf16.msra.mxu0 %v834
        %1082 = vmatprep.subr.bf16.mxu0 %v831
        %1083 = vmatpush1.bf16.msra.mxu0 %v830
        %1084 = vmatprep.subr.bf16.mxu0 %v827
        %1085 = vmatpush1.bf16.msra.mxu0 %v826
        %1086 = vmatprep.subr.bf16.mxu0 %v823
        %1087 = vmatpush1.bf16.msra.mxu0 %v822
        %1088 = vmatprep.subr.bf16.mxu0 %v819
        %1089 = vmatpush1.bf16.msra.mxu0 %v818
        %1090 = vmatprep.subr.bf16.mxu0 %v815
        %1091 = vmatpush1.bf16.msra.mxu0 %v814
        %1092 = vmatprep.subr.bf16.mxu0 %v811
        %1093 = vmatpush1.bf16.msra.mxu0 %v810
        %1094 = vmatprep.subr.bf16.mxu0 0
        %1095 = vmatpush2.bf16.msra.mxu0 0
        %1096 = vmatprep.subr.bf16.mxu0 0
        %1097 = vmatpush2.bf16.msra.mxu0 0
        %1098 = vmatprep.subr.bf16.mxu0 0
        %1099 = vmatpush2.bf16.msra.mxu0 0
        %1100 = vmatprep.subr.bf16.mxu0 0
        %1101 = vmatpush2.bf16.msra.mxu0 0
        %1102 = vmatprep.subr.bf16.mxu0 0
        %1103 = vmatpush2.bf16.msra.mxu0 0
        %1104 = vmatprep.subr.bf16.mxu0 0
        %1105 = vmatpush2.bf16.msra.mxu0 0
        %1106 = vmatprep.subr.bf16.mxu0 0
        %1107 = vmatpush2.bf16.msra.mxu0 0
        %1108 = vmatprep.subr.bf16.mxu0 0
        %1109 = vmatpush2.bf16.msra.mxu0 0
        %1110 = vmatprep.mubr.bf16.mxu0 0
        %1111 = vmatmul.mubr.bf16.gmra.mxu0 %v1014
        %v1112 = vpop.f32.mrf.mxu0
        %v1113 = vadd.f32 0.0, %v1112
        %v1114 = vpop.f32.mrf.mxu0
        %v1115 = vadd.f32 0.0, %v1114
        %v1116 = vpop.f32.mrf.mxu0
        %v1117 = vadd.f32 0.0, %v1116
        %v1118 = vpop.f32.mrf.mxu0
        %v1119 = vadd.f32 0.0, %v1118
        %1120 = vdwg.mxu0
        %v1121 = vadd.f32 %v1027, %v1070
        %v1122 = vadd.f32 %v1028, %v1072
        %v1123 = vadd.f32 %v1029, %v1113
        %v1124 = vadd.f32 %v1030, %v1115
        %v1125 = vadd.f32 %v1031, %v1074
        %v1126 = vadd.f32 %v1032, %v1076
        %v1127 = vadd.f32 %v1033, %v1117
        %v1128 = vadd.f32 %v1034, %v1119
        %v1129 = vxor.u32 %v1121, 2147483648
        %v1130 = vxor.u32 %v1125, 2147483648
        %v1131 = vmul.f32 %v1129, 1.442695
        %v1132 = vpow.pop %v1131
        %v1133 = vmul.f32 %v1130, 1.442695
        %v1134 = vpow.pop %v1133
        %v1135 = vadd.f32 %v1132, 1.0
        %v1136 = vadd.f32 %v1134, 1.0
        %v1137 = vrcp.pop %v1135
        %v1138 = vmul.f32 1.0, %v1137
        %v1139 = vrcp.pop %v1136
        %v1140 = vmul.f32 1.0, %v1139
        %v1141 = vxor.u32 %v1122, 2147483648
        %v1142 = vxor.u32 %v1126, 2147483648
        %v1143 = vmul.f32 %v1141, 1.442695
        %v1144 = vpow.pop %v1143
        %v1145 = vmul.f32 %v1142, 1.442695
        %v1146 = vpow.pop %v1145
        %v1147 = vadd.f32 %v1144, 1.0
        %v1148 = vadd.f32 %v1146, 1.0
        %v1149 = vrcp.pop %v1147
        %v1150 = vmul.f32 1.0, %v1149
        %v1151 = vrcp.pop %v1148
        %v1152 = vmul.f32 1.0, %v1151
        %v1153 = vtanh.pop %v1123
        %v1154 = vtanh.pop %v1127
        %v1155 = vxor.u32 %v1124, 2147483648
        %v1156 = vxor.u32 %v1128, 2147483648
        %v1157 = vmul.f32 %v1155, 1.442695
        %v1158 = vpow.pop %v1157
        %v1159 = vmul.f32 %v1156, 1.442695
        %v1160 = vpow.pop %v1159
        %v1161 = vadd.f32 %v1158, 1.0
        %v1162 = vadd.f32 %v1160, 1.0
        %v1163 = vrcp.pop %v1161
        %v1164 = vmul.f32 1.0, %v1163
        %v1165 = vrcp.pop %v1162
        %v1166 = vmul.f32 1.0, %v1165
        %v1167 = vmul.f32 %v1150, %v1008
        %v1168 = vmul.f32 %v1152, %v1009
        %v1169 = vmul.f32 %v1138, %v1153
        %v1170 = vmul.f32 %v1140, %v1154
        %v1171 = vadd.f32 %v1167, %v1169
        %v1172 = vadd.f32 %v1168, %v1170
        %v1173 = vtanh.pop %v1171
        %v1174 = vtanh.pop %v1172
        %v1175 = vmul.f32 %v1164, %v1173
        %v1176 = vmul.f32 %v1166, %v1174
        %v1177 = vpack.c.bf16 %v1176, %v1175
        %v1179 = vunpack.c.l.b16 %v1177
        %v1180 = vunpack.c.h.b16 %v1177
        %v1181 = vpack.c.b16 %v1179, %v1179
        %v1182 = vpack.c.b16 %v1180, %v1180
        %s1185 = scalar_lea.vmem %s229, 8
        %1186 = vst [vmem:[%s1185] sm:$0xf] %v1181
        %1187 = vst [vmem:[%s1185 + $0x4] sm:$0xf] %v1182
        %s1188 = smul.u32 4, 4
        %s1189 = smul.addr %s1188, 8
        %s1190 = scalar_lea.vmem [#allocation4], %s1189
        %v1191 = vld [vmem:[%s1190] sm:$0xff]
        %v1192 = vld [vmem:[%s1190 + $0x8] sm:$0xff]
        %v1193 = vld [vmem:[%s1190 + $0x10] sm:$0xff]
        %v1194 = vld [vmem:[%s1190 + $0x18] sm:$0xff]
        %v1195 = vld [vmem:[%s1190 + $0x20] sm:$0xff]
        %v1196 = vld [vmem:[%s1190 + $0x28] sm:$0xff]
        %v1197 = vld [vmem:[%s1190 + $0x30] sm:$0xff]
        %v1198 = vld [vmem:[%s1190 + $0x38] sm:$0xff]
        %1199 = vmatprep.subr.bf16.mxu0 %v837
        %1200 = vmatpush1.bf16.msra.mxu0 %v836
        %1201 = vmatprep.subr.bf16.mxu0 %v833
        %1202 = vmatpush1.bf16.msra.mxu0 %v832
        %1203 = vmatprep.subr.bf16.mxu0 %v829
        %1204 = vmatpush1.bf16.msra.mxu0 %v828
        %1205 = vmatprep.subr.bf16.mxu0 %v825
        %1206 = vmatpush1.bf16.msra.mxu0 %v824
        %1207 = vmatprep.subr.bf16.mxu0 %v821
        %1208 = vmatpush1.bf16.msra.mxu0 %v820
        %1209 = vmatprep.subr.bf16.mxu0 %v817
        %1210 = vmatpush1.bf16.msra.mxu0 %v816
        %1211 = vmatprep.subr.bf16.mxu0 %v813
        %1212 = vmatpush1.bf16.msra.mxu0 %v812
        %1213 = vmatprep.subr.bf16.mxu0 %v809
        %1214 = vmatpush1.bf16.msra.mxu0 %v808
        %1215 = vmatprep.subr.bf16.mxu0 0
        %1216 = vmatpush2.bf16.msra.mxu0 0
        %1217 = vmatprep.subr.bf16.mxu0 0
        %1218 = vmatpush2.bf16.msra.mxu0 0
        %1219 = vmatprep.subr.bf16.mxu0 0
        %1220 = vmatpush2.bf16.msra.mxu0 0
        %1221 = vmatprep.subr.bf16.mxu0 0
        %1222 = vmatpush2.bf16.msra.mxu0 0
        %1223 = vmatprep.subr.bf16.mxu0 0
        %1224 = vmatpush2.bf16.msra.mxu0 0
        %1225 = vmatprep.subr.bf16.mxu0 0
        %1226 = vmatpush2.bf16.msra.mxu0 0
        %1227 = vmatprep.subr.bf16.mxu0 0
        %1228 = vmatpush2.bf16.msra.mxu0 0
        %1229 = vmatprep.subr.bf16.mxu0 0
        %1230 = vmatpush2.bf16.msra.mxu0 0
        %1231 = vmatprep.mubr.bf16.mxu0 0
        %1232 = vmatmul.mubr.bf16.gmra.mxu0 %v1177
        %v1233 = vpop.f32.mrf.mxu0
        %v1234 = vadd.f32 0.0, %v1233
        %v1235 = vpop.f32.mrf.mxu0
        %v1236 = vadd.f32 0.0, %v1235
        %v1237 = vpop.f32.mrf.mxu0
        %v1238 = vadd.f32 0.0, %v1237
        %v1239 = vpop.f32.mrf.mxu0
        %v1240 = vadd.f32 0.0, %v1239
        %1241 = vdwg.mxu0
        %1242 = vmatprep.subr.bf16.mxu0 %v839
        %1243 = vmatpush1.bf16.msra.mxu0 %v838
        %1244 = vmatprep.subr.bf16.mxu0 %v835
        %1245 = vmatpush1.bf16.msra.mxu0 %v834
        %1246 = vmatprep.subr.bf16.mxu0 %v831
        %1247 = vmatpush1.bf16.msra.mxu0 %v830
        %1248 = vmatprep.subr.bf16.mxu0 %v827
        %1249 = vmatpush1.bf16.msra.mxu0 %v826
        %1250 = vmatprep.subr.bf16.mxu0 %v823
        %1251 = vmatpush1.bf16.msra.mxu0 %v822
        %1252 = vmatprep.subr.bf16.mxu0 %v819
        %1253 = vmatpush1.bf16.msra.mxu0 %v818
        %1254 = vmatprep.subr.bf16.mxu0 %v815
        %1255 = vmatpush1.bf16.msra.mxu0 %v814
        %1256 = vmatprep.subr.bf16.mxu0 %v811
        %1257 = vmatpush1.bf16.msra.mxu0 %v810
        %1258 = vmatprep.subr.bf16.mxu0 0
        %1259 = vmatpush2.bf16.msra.mxu0 0
        %1260 = vmatprep.subr.bf16.mxu0 0
        %1261 = vmatpush2.bf16.msra.mxu0 0
        %1262 = vmatprep.subr.bf16.mxu0 0
        %1263 = vmatpush2.bf16.msra.mxu0 0
        %1264 = vmatprep.subr.bf16.mxu0 0
        %1265 = vmatpush2.bf16.msra.mxu0 0
        %1266 = vmatprep.subr.bf16.mxu0 0
        %1267 = vmatpush2.bf16.msra.mxu0 0
        %1268 = vmatprep.subr.bf16.mxu0 0
        %1269 = vmatpush2.bf16.msra.mxu0 0
        %1270 = vmatprep.subr.bf16.mxu0 0
        %1271 = vmatpush2.bf16.msra.mxu0 0
        %1272 = vmatprep.subr.bf16.mxu0 0
        %1273 = vmatpush2.bf16.msra.mxu0 0
        %1274 = vmatprep.mubr.bf16.mxu0 0
        %1275 = vmatmul.mubr.bf16.gmra.mxu0 %v1177
        %v1276 = vpop.f32.mrf.mxu0
        %v1277 = vadd.f32 0.0, %v1276
        %v1278 = vpop.f32.mrf.mxu0
        %v1279 = vadd.f32 0.0, %v1278
        %v1280 = vpop.f32.mrf.mxu0
        %v1281 = vadd.f32 0.0, %v1280
        %v1282 = vpop.f32.mrf.mxu0
        %v1283 = vadd.f32 0.0, %v1282
        %1284 = vdwg.mxu0
        %v1285 = vadd.f32 %v1191, %v1234
        %v1286 = vadd.f32 %v1192, %v1236
        %v1287 = vadd.f32 %v1193, %v1277
        %v1288 = vadd.f32 %v1194, %v1279
        %v1289 = vadd.f32 %v1195, %v1238
        %v1290 = vadd.f32 %v1196, %v1240
        %v1291 = vadd.f32 %v1197, %v1281
        %v1292 = vadd.f32 %v1198, %v1283
        %v1293 = vxor.u32 %v1285, 2147483648
        %v1294 = vxor.u32 %v1289, 2147483648
        %v1295 = vmul.f32 %v1293, 1.442695
        %v1296 = vpow.pop %v1295
        %v1297 = vmul.f32 %v1294, 1.442695
        %v1298 = vpow.pop %v1297
        %v1299 = vadd.f32 %v1296, 1.0
        %v1300 = vadd.f32 %v1298, 1.0
        %v1301 = vrcp.pop %v1299
        %v1302 = vmul.f32 1.0, %v1301
        %v1303 = vrcp.pop %v1300
        %v1304 = vmul.f32 1.0, %v1303
        %v1305 = vxor.u32 %v1286, 2147483648
        %v1306 = vxor.u32 %v1290, 2147483648
        %v1307 = vmul.f32 %v1305, 1.442695
        %v1308 = vpow.pop %v1307
        %v1309 = vmul.f32 %v1306, 1.442695
        %v1310 = vpow.pop %v1309
        %v1311 = vadd.f32 %v1308, 1.0
        %v1312 = vadd.f32 %v1310, 1.0
        %v1313 = vrcp.pop %v1311
        %v1314 = vmul.f32 1.0, %v1313
        %v1315 = vrcp.pop %v1312
        %v1316 = vmul.f32 1.0, %v1315
        %v1317 = vtanh.pop %v1287
        %v1318 = vtanh.pop %v1291
        %v1319 = vxor.u32 %v1288, 2147483648
        %v1320 = vxor.u32 %v1292, 2147483648
        %v1321 = vmul.f32 %v1319, 1.442695
        %v1322 = vpow.pop %v1321
        %v1323 = vmul.f32 %v1320, 1.442695
        %v1324 = vpow.pop %v1323
        %v1325 = vadd.f32 %v1322, 1.0
        %v1326 = vadd.f32 %v1324, 1.0
        %v1327 = vrcp.pop %v1325
        %v1328 = vmul.f32 1.0, %v1327
        %v1329 = vrcp.pop %v1326
        %v1330 = vmul.f32 1.0, %v1329
        %v1331 = vmul.f32 %v1314, %v1171
        %v1332 = vmul.f32 %v1316, %v1172
        %v1333 = vmul.f32 %v1302, %v1317
        %v1334 = vmul.f32 %v1304, %v1318
        %v1335 = vadd.f32 %v1331, %v1333
        %v1336 = vadd.f32 %v1332, %v1334
        %v1337 = vtanh.pop %v1335
        %v1338 = vtanh.pop %v1336
        %v1339 = vmul.f32 %v1328, %v1337
        %v1340 = vmul.f32 %v1330, %v1338
        %v1341 = vpack.c.bf16 %v1340, %v1339
        %v1343 = vunpack.c.l.b16 %v1341
        %v1344 = vunpack.c.h.b16 %v1341
        %v1345 = vpack.c.b16 %v1343, %v1343
        %v1346 = vpack.c.b16 %v1344, %v1344
        %s1349 = scalar_lea.vmem %s229, 16
        %1350 = vst [vmem:[%s1349] sm:$0xf] %v1345
        %1351 = vst [vmem:[%s1349 + $0x4] sm:$0xf] %v1346
        %s1352 = smul.u32 6, 4
        %s1353 = smul.addr %s1352, 8
        %s1354 = scalar_lea.vmem [#allocation4], %s1353
        %v1355 = vld [vmem:[%s1354] sm:$0xff]
        %v1356 = vld [vmem:[%s1354 + $0x8] sm:$0xff]
        %v1357 = vld [vmem:[%s1354 + $0x10] sm:$0xff]
        %v1358 = vld [vmem:[%s1354 + $0x18] sm:$0xff]
        %v1359 = vld [vmem:[%s1354 + $0x20] sm:$0xff]
        %v1360 = vld [vmem:[%s1354 + $0x28] sm:$0xff]
        %v1361 = vld [vmem:[%s1354 + $0x30] sm:$0xff]
        %v1362 = vld [vmem:[%s1354 + $0x38] sm:$0xff]
        %1363 = vmatprep.subr.bf16.mxu0 %v837
        %1364 = vmatpush1.bf16.msra.mxu0 %v836
        %1365 = vmatprep.subr.bf16.mxu0 %v833
        %1366 = vmatpush1.bf16.msra.mxu0 %v832
        %1367 = vmatprep.subr.bf16.mxu0 %v829
        %1368 = vmatpush1.bf16.msra.mxu0 %v828
        %1369 = vmatprep.subr.bf16.mxu0 %v825
        %1370 = vmatpush1.bf16.msra.mxu0 %v824
        %1371 = vmatprep.subr.bf16.mxu0 %v821
        %1372 = vmatpush1.bf16.msra.mxu0 %v820
        %1373 = vmatprep.subr.bf16.mxu0 %v817
        %1374 = vmatpush1.bf16.msra.mxu0 %v816
        %1375 = vmatprep.subr.bf16.mxu0 %v813
        %1376 = vmatpush1.bf16.msra.mxu0 %v812
        %1377 = vmatprep.subr.bf16.mxu0 %v809
        %1378 = vmatpush1.bf16.msra.mxu0 %v808
        %1379 = vmatprep.subr.bf16.mxu0 0
        %1380 = vmatpush2.bf16.msra.mxu0 0
        %1381 = vmatprep.subr.bf16.mxu0 0
        %1382 = vmatpush2.bf16.msra.mxu0 0
        %1383 = vmatprep.subr.bf16.mxu0 0
        %1384 = vmatpush2.bf16.msra.mxu0 0
        %1385 = vmatprep.subr.bf16.mxu0 0
        %1386 = vmatpush2.bf16.msra.mxu0 0
        %1387 = vmatprep.subr.bf16.mxu0 0
        %1388 = vmatpush2.bf16.msra.mxu0 0
        %1389 = vmatprep.subr.bf16.mxu0 0
        %1390 = vmatpush2.bf16.msra.mxu0 0
        %1391 = vmatprep.subr.bf16.mxu0 0
        %1392 = vmatpush2.bf16.msra.mxu0 0
        %1393 = vmatprep.subr.bf16.mxu0 0
        %1394 = vmatpush2.bf16.msra.mxu0 0
        %1395 = vmatprep.mubr.bf16.mxu0 0
        %1396 = vmatmul.mubr.bf16.gmra.mxu0 %v1341
        %v1397 = vpop.f32.mrf.mxu0
        %v1398 = vadd.f32 0.0, %v1397
        %v1399 = vpop.f32.mrf.mxu0
        %v1400 = vadd.f32 0.0, %v1399
        %v1401 = vpop.f32.mrf.mxu0
        %v1402 = vadd.f32 0.0, %v1401
        %v1403 = vpop.f32.mrf.mxu0
        %v1404 = vadd.f32 0.0, %v1403
        %1405 = vdwg.mxu0
        %1406 = vmatprep.subr.bf16.mxu0 %v839
        %1407 = vmatpush1.bf16.msra.mxu0 %v838
        %1408 = vmatprep.subr.bf16.mxu0 %v835
        %1409 = vmatpush1.bf16.msra.mxu0 %v834
        %1410 = vmatprep.subr.bf16.mxu0 %v831
        %1411 = vmatpush1.bf16.msra.mxu0 %v830
        %1412 = vmatprep.subr.bf16.mxu0 %v827
        %1413 = vmatpush1.bf16.msra.mxu0 %v826
        %1414 = vmatprep.subr.bf16.mxu0 %v823
        %1415 = vmatpush1.bf16.msra.mxu0 %v822
        %1416 = vmatprep.subr.bf16.mxu0 %v819
        %1417 = vmatpush1.bf16.msra.mxu0 %v818
        %1418 = vmatprep.subr.bf16.mxu0 %v815
        %1419 = vmatpush1.bf16.msra.mxu0 %v814
        %1420 = vmatprep.subr.bf16.mxu0 %v811
        %1421 = vmatpush1.bf16.msra.mxu0 %v810
        %1422 = vmatprep.subr.bf16.mxu0 0
        %1423 = vmatpush2.bf16.msra.mxu0 0
        %1424 = vmatprep.subr.bf16.mxu0 0
        %1425 = vmatpush2.bf16.msra.mxu0 0
        %1426 = vmatprep.subr.bf16.mxu0 0
        %1427 = vmatpush2.bf16.msra.mxu0 0
        %1428 = vmatprep.subr.bf16.mxu0 0
        %1429 = vmatpush2.bf16.msra.mxu0 0
        %1430 = vmatprep.subr.bf16.mxu0 0
        %1431 = vmatpush2.bf16.msra.mxu0 0
        %1432 = vmatprep.subr.bf16.mxu0 0
        %1433 = vmatpush2.bf16.msra.mxu0 0
        %1434 = vmatprep.subr.bf16.mxu0 0
        %1435 = vmatpush2.bf16.msra.mxu0 0
        %1436 = vmatprep.subr.bf16.mxu0 0
        %1437 = vmatpush2.bf16.msra.mxu0 0
        %1438 = vmatprep.mubr.bf16.mxu0 0
        %1439 = vmatmul.mubr.bf16.gmra.mxu0 %v1341
        %v1440 = vpop.f32.mrf.mxu0
        %v1441 = vadd.f32 0.0, %v1440
        %v1442 = vpop.f32.mrf.mxu0
        %v1443 = vadd.f32 0.0, %v1442
        %v1444 = vpop.f32.mrf.mxu0
        %v1445 = vadd.f32 0.0, %v1444
        %v1446 = vpop.f32.mrf.mxu0
        %v1447 = vadd.f32 0.0, %v1446
        %1448 = vdwg.mxu0
        %v1449 = vadd.f32 %v1355, %v1398
        %v1450 = vadd.f32 %v1356, %v1400
        %v1451 = vadd.f32 %v1357, %v1441
        %v1452 = vadd.f32 %v1358, %v1443
        %v1453 = vadd.f32 %v1359, %v1402
        %v1454 = vadd.f32 %v1360, %v1404
        %v1455 = vadd.f32 %v1361, %v1445
        %v1456 = vadd.f32 %v1362, %v1447
        %v1457 = vxor.u32 %v1449, 2147483648
        %v1458 = vxor.u32 %v1453, 2147483648
        %v1459 = vmul.f32 %v1457, 1.442695
        %v1460 = vpow.pop %v1459
        %v1461 = vmul.f32 %v1458, 1.442695
        %v1462 = vpow.pop %v1461
        %v1463 = vadd.f32 %v1460, 1.0
        %v1464 = vadd.f32 %v1462, 1.0
        %v1465 = vrcp.pop %v1463
        %v1466 = vmul.f32 1.0, %v1465
        %v1467 = vrcp.pop %v1464
        %v1468 = vmul.f32 1.0, %v1467
        %v1469 = vxor.u32 %v1450, 2147483648
        %v1470 = vxor.u32 %v1454, 2147483648
        %v1471 = vmul.f32 %v1469, 1.442695
        %v1472 = vpow.pop %v1471
        %v1473 = vmul.f32 %v1470, 1.442695
        %v1474 = vpow.pop %v1473
        %v1475 = vadd.f32 %v1472, 1.0
        %v1476 = vadd.f32 %v1474, 1.0
        %v1477 = vrcp.pop %v1475
        %v1478 = vmul.f32 1.0, %v1477
        %v1479 = vrcp.pop %v1476
        %v1480 = vmul.f32 1.0, %v1479
        %v1481 = vtanh.pop %v1451
        %v1482 = vtanh.pop %v1455
        %v1483 = vxor.u32 %v1452, 2147483648
        %v1484 = vxor.u32 %v1456, 2147483648
        %v1485 = vmul.f32 %v1483, 1.442695
        %v1486 = vpow.pop %v1485
        %v1487 = vmul.f32 %v1484, 1.442695
        %v1488 = vpow.pop %v1487
        %v1489 = vadd.f32 %v1486, 1.0
        %v1490 = vadd.f32 %v1488, 1.0
        %v1491 = vrcp.pop %v1489
        %v1492 = vmul.f32 1.0, %v1491
        %v1493 = vrcp.pop %v1490
        %v1494 = vmul.f32 1.0, %v1493
        %v1495 = vmul.f32 %v1478, %v1335
        %v1496 = vmul.f32 %v1480, %v1336
        %v1497 = vmul.f32 %v1466, %v1481
        %v1498 = vmul.f32 %v1468, %v1482
        %v1499 = vadd.f32 %v1495, %v1497
        %v1500 = vadd.f32 %v1496, %v1498
        %v1501 = vtanh.pop %v1499
        %v1502 = vtanh.pop %v1500
        %v1503 = vmul.f32 %v1492, %v1501
        %v1504 = vmul.f32 %v1494, %v1502
        %v1505 = vpack.c.bf16 %v1504, %v1503
        %v1507 = vunpack.c.l.b16 %v1505
        %v1508 = vunpack.c.h.b16 %v1505
        %v1509 = vpack.c.b16 %v1507, %v1507
        %v1510 = vpack.c.b16 %v1508, %v1508
        %s1513 = scalar_lea.vmem %s229, 24
        %1514 = vst [vmem:[%s1513] sm:$0xf] %v1509
        %1515 = vst [vmem:[%s1513 + $0x4] sm:$0xf] %v1510
        %1516 = vst [vmem:[#allocation2] sm:$0xff] %v1503
        %1517 = vst [vmem:[#allocation2 + $0x8] sm:$0xff] %v1504
        %1518 = vst [vmem:[#allocation3] sm:$0xff] %v1499
        %1519 = vst [vmem:[#allocation3 + $0x8] sm:$0xff] %v1500
        %s1520 = smul.u32 8, %s17
        %p1521 = scmp.lt.s32.totalorder %s1520, 15
        %s1522 = scalar_select %p1521, %s1520, 15
        %s1523 = smul.addr %s1522, 4
        %s1524 = scalar_lea.vmem %s4, %s1523
        // Predicated region
        $region49: #{lstm_forward.2} parent=35 // pred_check
          %p1525 = pneg %p124
        $region50: #{lstm_forward.2} parent=35 // pred_check_branch
          %1527 = sbr.rel (%p1525) target = $region52
        $region51: #{lstm_forward.2} parent=35 // pred_region
          %s1528 = smul.u32 8, %s17
        $region52: #{lstm_forward.2} parent=35 // pred_fallthru
          _
      $region36: #{lstm_forward.2} parent=5 // pred_fallthru
        _
      %p1529 = scmp.le.s32.totalorder 2, %s12
      // Predicated region
      $region53: #{lstm_forward.2} parent=5 // pred_check
        %p1530 = pneg %p1529
      $region54: #{lstm_forward.2} parent=5 // pred_check_branch
        %1532 = sbr.rel (%p1530) target = $region56
      $region55: #{lstm_forward.2} parent=5 // pred_region
        %s1533 = ssub.s32 %s12, 2
        // Predicated region
        $region57: #{lstm_forward.2} parent=55 // pred_check
          %p1534 = pneg %p130
        $region58: #{lstm_forward.2} parent=55 // pred_check_branch
          %1536 = sbr.rel (%p1534) target = $region60
        $region59: #{lstm_forward.2} parent=55 // pred_region
          %s1537 = smul.u32 8, %s18
          %p1538 = scmp.lt.s32.totalorder %s1537, 15
          %s1539 = scalar_select %p1538, %s1537, 15
          %s1540 = smul.addr %s1539, 4
          %s1541 = scalar_lea.vmem %s4, %s1540
        $region60: #{lstm_forward.2} parent=55 // pred_fallthru
          _
      $region56: #{lstm_forward.2} parent=5 // pred_fallthru
        _
    $region6: #{lstm_forward.2} parent=1 // loop_footer
      %s16 = sadd.s32 1, %s12
    $region7: #{lstm_forward.2} parent=1 // loop_footer_branch
      %11 = sbr.rel target = $region3
    $region8: #{lstm_forward.2} parent=1 // loop_exit
      _
    %1542 = vsyncpa [#allocation6], 1
    %s1543 = scalar_lea.sflag [#allocation6], 1
    %1544 = vsyncpa %s1543, 1
    %1545 = vsyncpa [#allocation8], 1

// kernel: lstm_forward.3
$region0: #{lstm_forward.3}
  #allocation0 [shape = 'u32[]', space=smem, size = 0x4, offset = 0x4, fixed_abs, tag = 'smem constant byte address 0x4 - core index']
  #allocation1 [shape = 'u32[144,128]{1,0:T(1,128)}', space=vmem, size = 0x12000, scoped, tag = 'internal scratch']
  #allocation2 [shape = 'f32[16,128]{1,0:T(8,128)}', space=vmem, size = 0x2000, scoped, tag = 'scratch operand']
  #allocation3 [shape = 'f32[16,128]{1,0:T(8,128)}', space=vmem, size = 0x2000, scoped, tag = 'scratch operand']
  #allocation4 [shape = 'f32[64,512]{1,0:T(8,128)}', space=vmem, size = 0x20000, scoped, tag = 'scratch operand']
  %s0 = inlined_call_operand.vmem [shape: bf16[128,128], index: 0, kind: input, shape index: {}]
  %s1 = inlined_call_operand.vmem [shape: bf16[128,512], index: 1, kind: input, shape index: {}]
  %s2 = inlined_call_operand.vmem [shape: bf16[128,512], index: 2, kind: input, shape index: {}]
  %s3 = inlined_call_operand.vmem [shape: f32[1,512], index: 3, kind: input, shape index: {}]
  %s4 = inlined_call_operand.vmem [shape: s32[16,1], index: 4, kind: input, shape index: {}]
  %s5 = inlined_call_operand.vmem [shape: f32[16,128], index: 5, kind: output, shape index: {}]
  %s6 = sld [smem:[#allocation0]]
  $region57: #{lstm_forward.3} parent=0
    _
  %s8 = ssub.s32 1, %s6
  %s9 = scalar_select 0, %s8, %s6
  loop: start=0, step=1, limit=4
  $region2: #{lstm_forward.3} parent=0 // loop_pre_header
    _
  $region3: #{lstm_forward.3} parent=0 // loop_header
    %s11 = sphi 0, %s15
    %p12 = scmp.ge.s32.totalorder %s11, 4
    %s21 = sphi 0, %s23
    %s24 = sphi 0, %s21
    %s25 = sphi 0, %s24
    %s41 = sphi 0, %s25
    %s45 = sphi 0, %s45
    %s47 = sphi 0, %s45
    %s48 = sphi 0, %s47
    %s62 = sphi 0, %s48
    %s66 = sphi 0, %s66
    %s68 = sphi 0, %s66
    %s69 = sphi 0, %s68
    %s83 = sphi 0, %s69
    %s87 = sphi 0, %s87
    %s89 = sphi 0, %s87
    %s90 = sphi 0, %s89
    %s104 = sphi 0, %s90
    %s108 = sphi 0, %s108
    %s110 = sphi 0, %s108
    %s111 = sphi 0, %s110
    %s125 = sphi 0, %s111
    %s129 = sphi 0, %s129
    %s131 = sphi 0, %s129
    %s132 = sphi 0, %s131
    %s146 = sphi 0, %s132
  $region4: #{lstm_forward.3} parent=0 // loop_header_branch
    %14 = sbr.rel (%p12) target = $region8
  $region5: #{lstm_forward.3} parent=0 // loop_body
    %s16 = ssub.s32 %s11, 1
    %s17 = ssub.s32 %s11, 2
    %s18 = sadd.s32 %s11, 1
    %s19 = ssub.s32 %s11, %s18
    %p20 = scmp.eq.s32.totalorder %s19, 0
    %s22 = sadd.s32 %s21, 1
    %s23 = scalar_select %p20, %s21, %s22
    %p26 = pneg %p20
    %p27 = scmp.eq.s32.totalorder %s11, 1
    %p28 = por %p26, %p27
    %p29 = scmp.ne.s32.totalorder %s21, %s24
    %p30 = scmp.eq.s32.totalorder %s11, 0
    %p31 = por %p29, %p30
    %p32 = scmp.ne.s32.totalorder %s21, %s24
    %p33 = scmp.eq.s32.totalorder %s16, 1
    %p34 = por %p32, %p33
    %p35 = scmp.ne.s32.totalorder %s24, %s25
    %p36 = scmp.eq.s32.totalorder %s16, 0
    %p37 = por %p35, %p36
    %p38 = scmp.ne.s32.totalorder %s24, %s25
    %p39 = scmp.eq.s32.totalorder %s17, 1
    %p40 = por %p38, %p39
    %p42 = scmp.ne.s32.totalorder %s25, %s41
    %p43 = scmp.eq.s32.totalorder %s17, 0
    %p44 = por %p42, %p43
    %s46 = sadd.s32 %s45, 1
    %p49 = scmp.eq.s32.totalorder %s11, 1
    %p50 = scmp.ne.s32.totalorder %s45, %s47
    %p51 = scmp.eq.s32.totalorder %s11, 0
    %p52 = por %p50, %p51
    %p53 = scmp.ne.s32.totalorder %s45, %s47
    %p54 = scmp.eq.s32.totalorder %s16, 1
    %p55 = por %p53, %p54
    %p56 = scmp.ne.s32.totalorder %s47, %s48
    %p57 = scmp.eq.s32.totalorder %s16, 0
    %p58 = por %p56, %p57
    %p59 = scmp.ne.s32.totalorder %s47, %s48
    %p60 = scmp.eq.s32.totalorder %s17, 1
    %p61 = por %p59, %p60
    %p63 = scmp.ne.s32.totalorder %s48, %s62
    %p64 = scmp.eq.s32.totalorder %s17, 0
    %p65 = por %p63, %p64
    %s67 = sadd.s32 %s66, 1
    %p70 = scmp.eq.s32.totalorder %s11, 1
    %p71 = scmp.ne.s32.totalorder %s66, %s68
    %p72 = scmp.eq.s32.totalorder %s11, 0
    %p73 = por %p71, %p72
    %p74 = scmp.ne.s32.totalorder %s66, %s68
    %p75 = scmp.eq.s32.totalorder %s16, 1
    %p76 = por %p74, %p75
    %p77 = scmp.ne.s32.totalorder %s68, %s69
    %p78 = scmp.eq.s32.totalorder %s16, 0
    %p79 = por %p77, %p78
    %p80 = scmp.ne.s32.totalorder %s68, %s69
    %p81 = scmp.eq.s32.totalorder %s17, 1
    %p82 = por %p80, %p81
    %p84 = scmp.ne.s32.totalorder %s69, %s83
    %p85 = scmp.eq.s32.totalorder %s17, 0
    %p86 = por %p84, %p85
    %s88 = sadd.s32 %s87, 1
    %p91 = scmp.eq.s32.totalorder %s11, 1
    %p92 = scmp.ne.s32.totalorder %s87, %s89
    %p93 = scmp.eq.s32.totalorder %s11, 0
    %p94 = por %p92, %p93
    %p95 = scmp.ne.s32.totalorder %s87, %s89
    %p96 = scmp.eq.s32.totalorder %s16, 1
    %p97 = por %p95, %p96
    %p98 = scmp.ne.s32.totalorder %s89, %s90
    %p99 = scmp.eq.s32.totalorder %s16, 0
    %p100 = por %p98, %p99
    %p101 = scmp.ne.s32.totalorder %s89, %s90
    %p102 = scmp.eq.s32.totalorder %s17, 1
    %p103 = por %p101, %p102
    %p105 = scmp.ne.s32.totalorder %s90, %s104
    %p106 = scmp.eq.s32.totalorder %s17, 0
    %p107 = por %p105, %p106
    %s109 = sadd.s32 %s108, 1
    %p112 = scmp.eq.s32.totalorder %s11, 1
    %p113 = scmp.ne.s32.totalorder %s108, %s110
    %p114 = scmp.eq.s32.totalorder %s11, 0
    %p115 = por %p113, %p114
    %p116 = scmp.ne.s32.totalorder %s108, %s110
    %p117 = scmp.eq.s32.totalorder %s16, 1
    %p118 = por %p116, %p117
    %p119 = scmp.ne.s32.totalorder %s110, %s111
    %p120 = scmp.eq.s32.totalorder %s16, 0
    %p121 = por %p119, %p120
    %p122 = scmp.ne.s32.totalorder %s110, %s111
    %p123 = scmp.eq.s32.totalorder %s17, 1
    %p124 = por %p122, %p123
    %p126 = scmp.ne.s32.totalorder %s111, %s125
    %p127 = scmp.eq.s32.totalorder %s17, 0
    %p128 = por %p126, %p127
    %s130 = sadd.s32 %s129, 1
    %p133 = scmp.eq.s32.totalorder %s11, 1
    %p134 = scmp.ne.s32.totalorder %s129, %s131
    %p135 = scmp.eq.s32.totalorder %s11, 0
    %p136 = por %p134, %p135
    %p137 = scmp.ne.s32.totalorder %s129, %s131
    %p138 = scmp.eq.s32.totalorder %s16, 1
    %p139 = por %p137, %p138
    %p140 = scmp.ne.s32.totalorder %s131, %s132
    %p141 = scmp.eq.s32.totalorder %s16, 0
    %p142 = por %p140, %p141
    %p143 = scmp.ne.s32.totalorder %s131, %s132
    %p144 = scmp.eq.s32.totalorder %s17, 1
    %p145 = por %p143, %p144
    %p147 = scmp.ne.s32.totalorder %s132, %s146
    %p148 = scmp.eq.s32.totalorder %s17, 0
    %p149 = por %p147, %p148
    %p150 = scmp.le.s32.totalorder 1, %s11
    %p151 = scmp.lt.s32.totalorder %s11, 3
    %p152 = pnand %p150, %p151
    %p153 = pneg %p152
    // Predicated region
    $region9: #{lstm_forward.3} parent=5 // pred_check
      _
    $region10: #{lstm_forward.3} parent=5 // pred_check_branch
      %155 = sbr.rel (%p152) target = $region12
    $region11: #{lstm_forward.3} parent=5 // pred_region
      %s156 = ssub.s32 %s11, 1
      // Predicated region
      $region13: #{lstm_forward.3} parent=11 // pred_check
        %p157 = pneg %p58
      $region14: #{lstm_forward.3} parent=11 // pred_check_branch
        %159 = sbr.rel (%p157) target = $region16
      $region15: #{lstm_forward.3} parent=11 // pred_region
        _
      $region16: #{lstm_forward.3} parent=11 // pred_fallthru
        _
      // Predicated region
      $region17: #{lstm_forward.3} parent=11 // pred_check
        %p160 = pneg %p79
      $region18: #{lstm_forward.3} parent=11 // pred_check_branch
        %162 = sbr.rel (%p160) target = $region20
      $region19: #{lstm_forward.3} parent=11 // pred_region
        _
      $region20: #{lstm_forward.3} parent=11 // pred_fallthru
        _
      // Predicated region
      $region21: #{lstm_forward.3} parent=11 // pred_check
        %p163 = pneg %p100
      $region22: #{lstm_forward.3} parent=11 // pred_check_branch
        %165 = sbr.rel (%p163) target = $region24
      $region23: #{lstm_forward.3} parent=11 // pred_region
        _
      $region24: #{lstm_forward.3} parent=11 // pred_fallthru
        _
      // Predicated region
      $region25: #{lstm_forward.3} parent=11 // pred_check
        %p166 = pneg %p121
      $region26: #{lstm_forward.3} parent=11 // pred_check_branch
        %168 = sbr.rel (%p166) target = $region28
      $region27: #{lstm_forward.3} parent=11 // pred_region
        _
      $region28: #{lstm_forward.3} parent=11 // pred_fallthru
        _
    $region12: #{lstm_forward.3} parent=5 // pred_fallthru
      _
    %p169 = scmp.lt.s32.totalorder %s11, 2
    // Predicated region
    $region29: #{lstm_forward.3} parent=5 // pred_check
      %p170 = pneg %p169
    $region30: #{lstm_forward.3} parent=5 // pred_check_branch
      %172 = sbr.rel (%p170) target = $region32
    $region31: #{lstm_forward.3} parent=5 // pred_region
      // Predicated region
      $region33: #{lstm_forward.3} parent=31 // pred_check
        %p173 = pneg %p31
      $region34: #{lstm_forward.3} parent=31 // pred_check_branch
        %175 = sbr.rel (%p173) target = $region36
      $region35: #{lstm_forward.3} parent=31 // pred_region
        %s176 = smul.u32 8, %s11
        %p177 = scmp.lt.s32.totalorder %s176, 15
        %s178 = scalar_select %p177, %s176, 15
        %s179 = smul.addr %s178, 4
        %s180 = scalar_lea.vmem %s0, %s179
        %s181 = smul.u32 8, %s11
      $region36: #{lstm_forward.3} parent=31 // pred_fallthru
        _
    $region32: #{lstm_forward.3} parent=5 // pred_fallthru
      _
    %p182 = scmp.le.s32.totalorder 1, %s11
    %p183 = scmp.lt.s32.totalorder %s11, 3
    %p184 = pnand %p182, %p183
    %p185 = pneg %p184
    // Predicated region
    $region37: #{lstm_forward.3} parent=5 // pred_check
      _
    $region38: #{lstm_forward.3} parent=5 // pred_check_branch
      %187 = sbr.rel (%p184) target = $region40
    $region39: #{lstm_forward.3} parent=5 // pred_region
      %s188 = ssub.s32 %s11, 1
      %s189 = smul.u32 8, %s16
      %p190 = scmp.lt.s32.totalorder %s189, 15
      %s191 = scalar_select %p190, %s189, 15
      %s192 = smul.addr %s191, 4
      %s193 = scalar_lea.vmem %s0, %s192
      %p194 = pneg %p37
      %p195 = pneg %p34
      %p196 = pneg %p58
      %p197 = pneg %p55
      %p198 = pneg %p79
      %p199 = pneg %p76
      %p200 = pneg %p100
      %p201 = pneg %p97
      %p202 = pneg %p121
      %p203 = pneg %p118
      %p204 = pneg %p142
      %p205 = pneg %p139
      %s206 = smul.u32 8, %s16
      %p207 = scmp.lt.s32.totalorder %s206, 15
      %s208 = scalar_select %p207, %s206, 15
      %s209 = smul.addr %s208, 4
      %s210 = scalar_lea.vmem %s0, %s209
      %s211 = smul.u32 8, %s16
      %p213 = scmp.eq.s32.totalorder %s16, 0
      // Predicated region
      $region41: #{lstm_forward.3} parent=39 // pred_check
        %p214 = pneg %p213
      $region42: #{lstm_forward.3} parent=39 // pred_check_branch
        %216 = sbr.rel (%p214) target = $region44
      $region43: #{lstm_forward.3} parent=39 // pred_region
        %217 = vst [vmem:[#allocation2] sm:$0xff] 0.0
        %218 = vst [vmem:[#allocation2 + $0x8] sm:$0xff] 0.0
        %219 = vst [vmem:[#allocation3] sm:$0xff] 0.0
        %220 = vst [vmem:[#allocation3 + $0x8] sm:$0xff] 0.0
        %221 = vst [vmem:[%s5] sm:$0xff] 0.0
        %222 = vst [vmem:[%s5 + $0x8] sm:$0xff] 0.0
      $region44: #{lstm_forward.3} parent=39 // pred_fallthru
        _
      %v223 = vld [vmem:[%s210] sm:$0xf]
      %v224 = vld [vmem:[%s210 + $0x4] sm:$0xf]
      %v225 = vld [vmem:[%s210 + $0x8] sm:$0xf]
      %v226 = vld [vmem:[%s210 + $0xc] sm:$0xf]
      %v227 = vld [vmem:[%s210 + $0x10] sm:$0xf]
      %v228 = vld [vmem:[%s210 + $0x14] sm:$0xf]
      %v229 = vld [vmem:[%s210 + $0x18] sm:$0xf]
      %v230 = vld [vmem:[%s210 + $0x1c] sm:$0xf]
      %v231 = vld [vmem:[%s1] sm:$0xff]
      %v232 = vld [vmem:[%s1 + $0x8] sm:$0xff]
      %v233 = vld [vmem:[%s1 + $0x10] sm:$0xff]
      %v234 = vld [vmem:[%s1 + $0x18] sm:$0xff]
      %v235 = vld [vmem:[%s1 + $0x20] sm:$0xff]
      %v236 = vld [vmem:[%s1 + $0x28] sm:$0xff]
      %v237 = vld [vmem:[%s1 + $0x30] sm:$0xff]
      %v238 = vld [vmem:[%s1 + $0x38] sm:$0xff]
      %v239 = vld [vmem:[%s1 + $0x40] sm:$0xff]
      %v240 = vld [vmem:[%s1 + $0x48] sm:$0xff]
      %v241 = vld [vmem:[%s1 + $0x50] sm:$0xff]
      %v242 = vld [vmem:[%s1 + $0x58] sm:$0xff]
      %v243 = vld [vmem:[%s1 + $0x60] sm:$0xff]
      %v244 = vld [vmem:[%s1 + $0x68] sm:$0xff]
      %v245 = vld [vmem:[%s1 + $0x70] sm:$0xff]
      %v246 = vld [vmem:[%s1 + $0x78] sm:$0xff]
      %v247 = vld [vmem:[%s1 + $0x80] sm:$0xff]
      %v248 = vld [vmem:[%s1 + $0x88] sm:$0xff]
      %v249 = vld [vmem:[%s1 + $0x90] sm:$0xff]
      %v250 = vld [vmem:[%s1 + $0x98] sm:$0xff]
      %v251 = vld [vmem:[%s1 + $0xa0] sm:$0xff]
      %v252 = vld [vmem:[%s1 + $0xa8] sm:$0xff]
      %v253 = vld [vmem:[%s1 + $0xb0] sm:$0xff]
      %v254 = vld [vmem:[%s1 + $0xb8] sm:$0xff]
      %v255 = vld [vmem:[%s1 + $0xc0] sm:$0xff]
      %v256 = vld [vmem:[%s1 + $0xc8] sm:$0xff]
      %v257 = vld [vmem:[%s1 + $0xd0] sm:$0xff]
      %v258 = vld [vmem:[%s1 + $0xd8] sm:$0xff]
      %v259 = vld [vmem:[%s1 + $0xe0] sm:$0xff]
      %v260 = vld [vmem:[%s1 + $0xe8] sm:$0xff]
      %v261 = vld [vmem:[%s1 + $0xf0] sm:$0xff]
      %v262 = vld [vmem:[%s1 + $0xf8] sm:$0xff]
      %v263 = vld [vmem:[%s3] sm:$0xf]
      %v265 = vlaneseq
      %v266 = vshrl.u32 %v265, 7
      %v267 = vsub.s32 0, %v266
      %v268 = vrot.slane %v263, %v267
      %v269 = vlaneseq
      %v270 = vshrl.u32 %v269, 7
      %v271 = vsub.s32 1, %v270
      %v272 = vrot.slane %v263, %v271
      %v273 = vlaneseq
      %v274 = vshrl.u32 %v273, 7
      %v275 = vsub.s32 2, %v274
      %v276 = vrot.slane %v263, %v275
      %v277 = vlaneseq
      %v278 = vshrl.u32 %v277, 7
      %v279 = vsub.s32 3, %v278
      %v280 = vrot.slane %v263, %v279
      %v293 = vunpack.c.l.b16 %v223
      %v294 = vunpack.c.l.b16 %v224
      %v295 = vunpack.c.l.b16 %v225
      %v296 = vunpack.c.l.b16 %v226
      %v297 = vunpack.c.l.b16 %v227
      %v298 = vunpack.c.l.b16 %v228
      %v299 = vunpack.c.l.b16 %v229
      %v300 = vunpack.c.l.b16 %v230
      %v301 = vpack.c.b16 %v294, %v293
      %v302 = vpack.c.b16 %v296, %v295
      %v303 = vpack.c.b16 %v298, %v297
      %v304 = vpack.c.b16 %v300, %v299
      %v341 = vunpack.c.l.b16 %v231
      %v342 = vunpack.c.h.b16 %v231
      %v343 = vunpack.c.l.b16 %v232
      %v344 = vunpack.c.h.b16 %v232
      %v345 = vunpack.c.l.b16 %v233
      %v346 = vunpack.c.h.b16 %v233
      %v347 = vunpack.c.l.b16 %v234
      %v348 = vunpack.c.h.b16 %v234
      %v349 = vunpack.c.l.b16 %v235
      %v350 = vunpack.c.h.b16 %v235
      %v351 = vunpack.c.l.b16 %v236
      %v352 = vunpack.c.h.b16 %v236
      %v353 = vunpack.c.l.b16 %v237
      %v354 = vunpack.c.h.b16 %v237
      %v355 = vunpack.c.l.b16 %v238
      %v356 = vunpack.c.h.b16 %v238
      %v357 = vunpack.c.l.b16 %v239
      %v358 = vunpack.c.h.b16 %v239
      %v359 = vunpack.c.l.b16 %v240
      %v360 = vunpack.c.h.b16 %v240
      %v361 = vunpack.c.l.b16 %v241
      %v362 = vunpack.c.h.b16 %v241
      %v363 = vunpack.c.l.b16 %v242
      %v364 = vunpack.c.h.b16 %v242
      %v365 = vunpack.c.l.b16 %v243
      %v366 = vunpack.c.h.b16 %v243
      %v367 = vunpack.c.l.b16 %v244
      %v368 = vunpack.c.h.b16 %v244
      %v369 = vunpack.c.l.b16 %v245
      %v370 = vunpack.c.h.b16 %v245
      %v371 = vunpack.c.l.b16 %v246
      %v372 = vunpack.c.h.b16 %v246
      %v373 = vunpack.c.l.b16 %v247
      %v374 = vunpack.c.h.b16 %v247
      %v375 = vunpack.c.l.b16 %v248
      %v376 = vunpack.c.h.b16 %v248
      %v377 = vunpack.c.l.b16 %v249
      %v378 = vunpack.c.h.b16 %v249
      %v379 = vunpack.c.l.b16 %v250
      %v380 = vunpack.c.h.b16 %v250
      %v381 = vunpack.c.l.b16 %v251
      %v382 = vunpack.c.h.b16 %v251
      %v383 = vunpack.c.l.b16 %v252
      %v384 = vunpack.c.h.b16 %v252
      %v385 = vunpack.c.l.b16 %v253
      %v386 = vunpack.c.h.b16 %v253
      %v387 = vunpack.c.l.b16 %v254
      %v388 = vunpack.c.h.b16 %v254
      %v389 = vunpack.c.l.b16 %v255
      %v390 = vunpack.c.h.b16 %v255
      %v391 = vunpack.c.l.b16 %v256
      %v392 = vunpack.c.h.b16 %v256
      %v393 = vunpack.c.l.b16 %v257
      %v394 = vunpack.c.h.b16 %v257
      %v395 = vunpack.c.l.b16 %v258
      %v396 = vunpack.c.h.b16 %v258
      %v397 = vunpack.c.l.b16 %v259
      %v398 = vunpack.c.h.b16 %v259
      %v399 = vunpack.c.l.b16 %v260
      %v400 = vunpack.c.h.b16 %v260
      %v401 = vunpack.c.l.b16 %v261
      %v402 = vunpack.c.h.b16 %v261
      %v403 = vunpack.c.l.b16 %v262
      %v404 = vunpack.c.h.b16 %v262
      %v405 = vpack.c.b16 %v345, %v341
      %v406 = vpack.c.b16 %v346, %v342
      %v407 = vpack.c.b16 %v347, %v343
      %v408 = vpack.c.b16 %v348, %v344
      %v409 = vpack.c.b16 %v353, %v349
      %v410 = vpack.c.b16 %v354, %v350
      %v411 = vpack.c.b16 %v355, %v351
      %v412 = vpack.c.b16 %v356, %v352
      %v413 = vpack.c.b16 %v361, %v357
      %v414 = vpack.c.b16 %v362, %v358
      %v415 = vpack.c.b16 %v363, %v359
      %v416 = vpack.c.b16 %v364, %v360
      %v417 = vpack.c.b16 %v369, %v365
      %v418 = vpack.c.b16 %v370, %v366
      %v419 = vpack.c.b16 %v371, %v367
      %v420 = vpack.c.b16 %v372, %v368
      %v421 = vpack.c.b16 %v377, %v373
      %v422 = vpack.c.b16 %v378, %v374
      %v423 = vpack.c.b16 %v379, %v375
      %v424 = vpack.c.b16 %v380, %v376
      %v425 = vpack.c.b16 %v385, %v381
      %v426 = vpack.c.b16 %v386, %v382
      %v427 = vpack.c.b16 %v387, %v383
      %v428 = vpack.c.b16 %v388, %v384
      %v429 = vpack.c.b16 %v393, %v389
      %v430 = vpack.c.b16 %v394, %v390
      %v431 = vpack.c.b16 %v395, %v391
      %v432 = vpack.c.b16 %v396, %v392
      %v433 = vpack.c.b16 %v401, %v397
      %v434 = vpack.c.b16 %v402, %v398
      %v435 = vpack.c.b16 %v403, %v399
      %v436 = vpack.c.b16 %v404, %v400
      %469 = vmatprep.subr.bf16.mxu0 %v434
      %470 = vmatpush1.bf16.msra.mxu0 %v433
      %471 = vmatprep.subr.bf16.mxu0 %v430
      %472 = vmatpush1.bf16.msra.mxu0 %v429
      %473 = vmatprep.subr.bf16.mxu0 %v426
      %474 = vmatpush1.bf16.msra.mxu0 %v425
      %475 = vmatprep.subr.bf16.mxu0 %v422
      %476 = vmatpush1.bf16.msra.mxu0 %v421
      %477 = vmatprep.subr.bf16.mxu0 %v418
      %478 = vmatpush1.bf16.msra.mxu0 %v417
      %479 = vmatprep.subr.bf16.mxu0 %v414
      %480 = vmatpush1.bf16.msra.mxu0 %v413
      %481 = vmatprep.subr.bf16.mxu0 %v410
      %482 = vmatpush1.bf16.msra.mxu0 %v409
      %483 = vmatprep.subr.bf16.mxu0 %v406
      %484 = vmatpush1.bf16.msra.mxu0 %v405
      %485 = vmatprep.subr.bf16.mxu0 0
      %486 = vmatpush2.bf16.msra.mxu0 0
      %487 = vmatprep.subr.bf16.mxu0 0
      %488 = vmatpush2.bf16.msra.mxu0 0
      %489 = vmatprep.subr.bf16.mxu0 0
      %490 = vmatpush2.bf16.msra.mxu0 0
      %491 = vmatprep.subr.bf16.mxu0 0
      %492 = vmatpush2.bf16.msra.mxu0 0
      %493 = vmatprep.subr.bf16.mxu0 0
      %494 = vmatpush2.bf16.msra.mxu0 0
      %495 = vmatprep.subr.bf16.mxu0 0
      %496 = vmatpush2.bf16.msra.mxu0 0
      %497 = vmatprep.subr.bf16.mxu0 0
      %498 = vmatpush2.bf16.msra.mxu0 0
      %499 = vmatprep.subr.bf16.mxu0 0
      %500 = vmatpush2.bf16.msra.mxu0 0
      %501 = vmatprep.mubr.bf16.mxu0 0
      %502 = vmatmul.mubr.bf16.gmra.mxu0 %v301
      %v503 = vpop.f32.mrf.mxu0
      %v504 = vadd.f32 %v268, %v503
      %v505 = vpop.f32.mrf.mxu0
      %v506 = vadd.f32 %v272, %v505
      %v507 = vpop.f32.mrf.mxu0
      %v508 = vadd.f32 %v268, %v507
      %v509 = vpop.f32.mrf.mxu0
      %v510 = vadd.f32 %v272, %v509
      %511 = vmatprep.mubr.bf16.mxu0 0
      %512 = vmatmul.mubr.bf16.gmra.mxu0 %v302
      %v513 = vpop.f32.mrf.mxu0
      %v514 = vadd.f32 %v268, %v513
      %v515 = vpop.f32.mrf.mxu0
      %v516 = vadd.f32 %v272, %v515
      %v517 = vpop.f32.mrf.mxu0
      %v518 = vadd.f32 %v268, %v517
      %v519 = vpop.f32.mrf.mxu0
      %v520 = vadd.f32 %v272, %v519
      %521 = vmatprep.mubr.bf16.mxu0 0
      %522 = vmatmul.mubr.bf16.gmra.mxu0 %v303
      %v523 = vpop.f32.mrf.mxu0
      %v524 = vadd.f32 %v268, %v523
      %v525 = vpop.f32.mrf.mxu0
      %v526 = vadd.f32 %v272, %v525
      %v527 = vpop.f32.mrf.mxu0
      %v528 = vadd.f32 %v268, %v527
      %v529 = vpop.f32.mrf.mxu0
      %v530 = vadd.f32 %v272, %v529
      %531 = vmatprep.mubr.bf16.mxu0 0
      %532 = vmatmul.mubr.bf16.gmra.mxu0 %v304
      %v533 = vpop.f32.mrf.mxu0
      %v534 = vadd.f32 %v268, %v533
      %v535 = vpop.f32.mrf.mxu0
      %v536 = vadd.f32 %v272, %v535
      %v537 = vpop.f32.mrf.mxu0
      %v538 = vadd.f32 %v268, %v537
      %v539 = vpop.f32.mrf.mxu0
      %v540 = vadd.f32 %v272, %v539
      %541 = vdwg.mxu0
      %542 = vmatprep.subr.bf16.mxu0 %v436
      %543 = vmatpush1.bf16.msra.mxu0 %v435
      %544 = vmatprep.subr.bf16.mxu0 %v432
      %545 = vmatpush1.bf16.msra.mxu0 %v431
      %546 = vmatprep.subr.bf16.mxu0 %v428
      %547 = vmatpush1.bf16.msra.mxu0 %v427
      %548 = vmatprep.subr.bf16.mxu0 %v424
      %549 = vmatpush1.bf16.msra.mxu0 %v423
      %550 = vmatprep.subr.bf16.mxu0 %v420
      %551 = vmatpush1.bf16.msra.mxu0 %v419
      %552 = vmatprep.subr.bf16.mxu0 %v416
      %553 = vmatpush1.bf16.msra.mxu0 %v415
      %554 = vmatprep.subr.bf16.mxu0 %v412
      %555 = vmatpush1.bf16.msra.mxu0 %v411
      %556 = vmatprep.subr.bf16.mxu0 %v408
      %557 = vmatpush1.bf16.msra.mxu0 %v407
      %558 = vmatprep.subr.bf16.mxu0 0
      %559 = vmatpush2.bf16.msra.mxu0 0
      %560 = vmatprep.subr.bf16.mxu0 0
      %561 = vmatpush2.bf16.msra.mxu0 0
      %562 = vmatprep.subr.bf16.mxu0 0
      %563 = vmatpush2.bf16.msra.mxu0 0
      %564 = vmatprep.subr.bf16.mxu0 0
      %565 = vmatpush2.bf16.msra.mxu0 0
      %566 = vmatprep.subr.bf16.mxu0 0
      %567 = vmatpush2.bf16.msra.mxu0 0
      %568 = vmatprep.subr.bf16.mxu0 0
      %569 = vmatpush2.bf16.msra.mxu0 0
      %570 = vmatprep.subr.bf16.mxu0 0
      %571 = vmatpush2.bf16.msra.mxu0 0
      %572 = vmatprep.subr.bf16.mxu0 0
      %573 = vmatpush2.bf16.msra.mxu0 0
      %574 = vmatprep.mubr.bf16.mxu0 0
      %575 = vmatmul.mubr.bf16.gmra.mxu0 %v301
      %v576 = vpop.f32.mrf.mxu0
      %v577 = vadd.f32 %v276, %v576
      %v578 = vpop.f32.mrf.mxu0
      %v579 = vadd.f32 %v280, %v578
      %v580 = vpop.f32.mrf.mxu0
      %v581 = vadd.f32 %v276, %v580
      %v582 = vpop.f32.mrf.mxu0
      %v583 = vadd.f32 %v280, %v582
      %584 = vmatprep.mubr.bf16.mxu0 0
      %585 = vmatmul.mubr.bf16.gmra.mxu0 %v302
      %v586 = vpop.f32.mrf.mxu0
      %v587 = vadd.f32 %v276, %v586
      %v588 = vpop.f32.mrf.mxu0
      %v589 = vadd.f32 %v280, %v588
      %v590 = vpop.f32.mrf.mxu0
      %v591 = vadd.f32 %v276, %v590
      %v592 = vpop.f32.mrf.mxu0
      %v593 = vadd.f32 %v280, %v592
      %594 = vmatprep.mubr.bf16.mxu0 0
      %595 = vmatmul.mubr.bf16.gmra.mxu0 %v303
      %v596 = vpop.f32.mrf.mxu0
      %v597 = vadd.f32 %v276, %v596
      %v598 = vpop.f32.mrf.mxu0
      %v599 = vadd.f32 %v280, %v598
      %v600 = vpop.f32.mrf.mxu0
      %v601 = vadd.f32 %v276, %v600
      %v602 = vpop.f32.mrf.mxu0
      %v603 = vadd.f32 %v280, %v602
      %604 = vmatprep.mubr.bf16.mxu0 0
      %605 = vmatmul.mubr.bf16.gmra.mxu0 %v304
      %v606 = vpop.f32.mrf.mxu0
      %v607 = vadd.f32 %v276, %v606
      %v608 = vpop.f32.mrf.mxu0
      %v609 = vadd.f32 %v280, %v608
      %v610 = vpop.f32.mrf.mxu0
      %v611 = vadd.f32 %v276, %v610
      %v612 = vpop.f32.mrf.mxu0
      %v613 = vadd.f32 %v280, %v612
      %614 = vdwg.mxu0
      %615 = vst [vmem:[#allocation4] sm:$0xff] %v504
      %616 = vst [vmem:[#allocation4 + $0x8] sm:$0xff] %v506
      %617 = vst [vmem:[#allocation4 + $0x10] sm:$0xff] %v577
      %618 = vst [vmem:[#allocation4 + $0x18] sm:$0xff] %v579
      %619 = vst [vmem:[#allocation4 + $0x20] sm:$0xff] %v508
      %620 = vst [vmem:[#allocation4 + $0x28] sm:$0xff] %v510
      %621 = vst [vmem:[#allocation4 + $0x30] sm:$0xff] %v581
      %622 = vst [vmem:[#allocation4 + $0x38] sm:$0xff] %v583
      %623 = vst [vmem:[#allocation4 + $0x40] sm:$0xff] %v514
      %624 = vst [vmem:[#allocation4 + $0x48] sm:$0xff] %v516
      %625 = vst [vmem:[#allocation4 + $0x50] sm:$0xff] %v587
      %626 = vst [vmem:[#allocation4 + $0x58] sm:$0xff] %v589
      %627 = vst [vmem:[#allocation4 + $0x60] sm:$0xff] %v518
      %628 = vst [vmem:[#allocation4 + $0x68] sm:$0xff] %v520
      %629 = vst [vmem:[#allocation4 + $0x70] sm:$0xff] %v591
      %630 = vst [vmem:[#allocation4 + $0x78] sm:$0xff] %v593
      %631 = vst [vmem:[#allocation4 + $0x80] sm:$0xff] %v524
      %632 = vst [vmem:[#allocation4 + $0x88] sm:$0xff] %v526
      %633 = vst [vmem:[#allocation4 + $0x90] sm:$0xff] %v597
      %634 = vst [vmem:[#allocation4 + $0x98] sm:$0xff] %v599
      %635 = vst [vmem:[#allocation4 + $0xa0] sm:$0xff] %v528
      %636 = vst [vmem:[#allocation4 + $0xa8] sm:$0xff] %v530
      %637 = vst [vmem:[#allocation4 + $0xb0] sm:$0xff] %v601
      %638 = vst [vmem:[#allocation4 + $0xb8] sm:$0xff] %v603
      %639 = vst [vmem:[#allocation4 + $0xc0] sm:$0xff] %v534
      %640 = vst [vmem:[#allocation4 + $0xc8] sm:$0xff] %v536
      %641 = vst [vmem:[#allocation4 + $0xd0] sm:$0xff] %v607
      %642 = vst [vmem:[#allocation4 + $0xd8] sm:$0xff] %v609
      %643 = vst [vmem:[#allocation4 + $0xe0] sm:$0xff] %v538
      %644 = vst [vmem:[#allocation4 + $0xe8] sm:$0xff] %v540
      %645 = vst [vmem:[#allocation4 + $0xf0] sm:$0xff] %v611
      %646 = vst [vmem:[#allocation4 + $0xf8] sm:$0xff] %v613
      %v647 = vld [vmem:[%s2] sm:$0xff]
      %v648 = vld [vmem:[%s2 + $0x8] sm:$0xff]
      %v649 = vld [vmem:[%s2 + $0x10] sm:$0xff]
      %v650 = vld [vmem:[%s2 + $0x18] sm:$0xff]
      %v651 = vld [vmem:[%s2 + $0x20] sm:$0xff]
      %v652 = vld [vmem:[%s2 + $0x28] sm:$0xff]
      %v653 = vld [vmem:[%s2 + $0x30] sm:$0xff]
      %v654 = vld [vmem:[%s2 + $0x38] sm:$0xff]
      %v655 = vld [vmem:[%s2 + $0x40] sm:$0xff]
      %v656 = vld [vmem:[%s2 + $0x48] sm:$0xff]
      %v657 = vld [vmem:[%s2 + $0x50] sm:$0xff]
      %v658 = vld [vmem:[%s2 + $0x58] sm:$0xff]
      %v659 = vld [vmem:[%s2 + $0x60] sm:$0xff]
      %v660 = vld [vmem:[%s2 + $0x68] sm:$0xff]
      %v661 = vld [vmem:[%s2 + $0x70] sm:$0xff]
      %v662 = vld [vmem:[%s2 + $0x78] sm:$0xff]
      %v663 = vld [vmem:[%s2 + $0x80] sm:$0xff]
      %v664 = vld [vmem:[%s2 + $0x88] sm:$0xff]
      %v665 = vld [vmem:[%s2 + $0x90] sm:$0xff]
      %v666 = vld [vmem:[%s2 + $0x98] sm:$0xff]
      %v667 = vld [vmem:[%s2 + $0xa0] sm:$0xff]
      %v668 = vld [vmem:[%s2 + $0xa8] sm:$0xff]
      %v669 = vld [vmem:[%s2 + $0xb0] sm:$0xff]
      %v670 = vld [vmem:[%s2 + $0xb8] sm:$0xff]
      %v671 = vld [vmem:[%s2 + $0xc0] sm:$0xff]
      %v672 = vld [vmem:[%s2 + $0xc8] sm:$0xff]
      %v673 = vld [vmem:[%s2 + $0xd0] sm:$0xff]
      %v674 = vld [vmem:[%s2 + $0xd8] sm:$0xff]
      %v675 = vld [vmem:[%s2 + $0xe0] sm:$0xff]
      %v676 = vld [vmem:[%s2 + $0xe8] sm:$0xff]
      %v677 = vld [vmem:[%s2 + $0xf0] sm:$0xff]
      %v678 = vld [vmem:[%s2 + $0xf8] sm:$0xff]
      %v679 = vld [vmem:[%s4] sm:$0xff]
      %v680 = vld [vmem:[%s4 + $0x8] sm:$0xff]
      %v681 = vsub.s32 %v679, 1
      %v682 = vsub.s32 %v680, 1
      %s683 = smul.u32 %s16, 4
      %v684 = vld [vmem:[#allocation2] sm:$0xff]
      %v685 = vld [vmem:[#allocation2 + $0x8] sm:$0xff]
      %v686 = vld [vmem:[#allocation3] sm:$0xff]
      %v687 = vld [vmem:[#allocation3 + $0x8] sm:$0xff]
      %v688 = vld [vmem:[%s5] sm:$0xff]
      %v689 = vld [vmem:[%s5 + $0x8] sm:$0xff]
      %s690 = smul.u32 0, 4
      %s691 = smul.addr %s690, 8
      %s692 = scalar_lea.vmem [#allocation4], %s691
      %v693 = vld [vmem:[%s692] sm:$0xff]
      %v694 = vld [vmem:[%s692 + $0x8] sm:$0xff]
      %v695 = vld [vmem:[%s692 + $0x10] sm:$0xff]
      %v696 = vld [vmem:[%s692 + $0x18] sm:$0xff]
      %v697 = vld [vmem:[%s692 + $0x20] sm:$0xff]
      %v698 = vld [vmem:[%s692 + $0x28] sm:$0xff]
      %v699 = vld [vmem:[%s692 + $0x30] sm:$0xff]
      %v700 = vld [vmem:[%s692 + $0x38] sm:$0xff]
      %v701 = vpack.c.bf16 %v685, %v684
      %v734 = vunpack.c.l.b16 %v647
      %v735 = vunpack.c.h.b16 %v647
      %v736 = vunpack.c.l.b16 %v648
      %v737 = vunpack.c.h.b16 %v648
      %v738 = vunpack.c.l.b16 %v649
      %v739 = vunpack.c.h.b16 %v649
      %v740 = vunpack.c.l.b16 %v650
      %v741 = vunpack.c.h.b16 %v650
      %v742 = vunpack.c.l.b16 %v651
      %v743 = vunpack.c.h.b16 %v651
      %v744 = vunpack.c.l.b16 %v652
      %v745 = vunpack.c.h.b16 %v652
      %v746 = vunpack.c.l.b16 %v653
      %v747 = vunpack.c.h.b16 %v653
      %v748 = vunpack.c.l.b16 %v654
      %v749 = vunpack.c.h.b16 %v654
      %v750 = vunpack.c.l.b16 %v655
      %v751 = vunpack.c.h.b16 %v655
      %v752 = vunpack.c.l.b16 %v656
      %v753 = vunpack.c.h.b16 %v656
      %v754 = vunpack.c.l.b16 %v657
      %v755 = vunpack.c.h.b16 %v657
      %v756 = vunpack.c.l.b16 %v658
      %v757 = vunpack.c.h.b16 %v658
      %v758 = vunpack.c.l.b16 %v659
      %v759 = vunpack.c.h.b16 %v659
      %v760 = vunpack.c.l.b16 %v660
      %v761 = vunpack.c.h.b16 %v660
      %v762 = vunpack.c.l.b16 %v661
      %v763 = vunpack.c.h.b16 %v661
      %v764 = vunpack.c.l.b16 %v662
      %v765 = vunpack.c.h.b16 %v662
      %v766 = vunpack.c.l.b16 %v663
      %v767 = vunpack.c.h.b16 %v663
      %v768 = vunpack.c.l.b16 %v664
      %v769 = vunpack.c.h.b16 %v664
      %v770 = vunpack.c.l.b16 %v665
      %v771 = vunpack.c.h.b16 %v665
      %v772 = vunpack.c.l.b16 %v666
      %v773 = vunpack.c.h.b16 %v666
      %v774 = vunpack.c.l.b16 %v667
      %v775 = vunpack.c.h.b16 %v667
      %v776 = vunpack.c.l.b16 %v668
      %v777 = vunpack.c.h.b16 %v668
      %v778 = vunpack.c.l.b16 %v669
      %v779 = vunpack.c.h.b16 %v669
      %v780 = vunpack.c.l.b16 %v670
      %v781 = vunpack.c.h.b16 %v670
      %v782 = vunpack.c.l.b16 %v671
      %v783 = vunpack.c.h.b16 %v671
      %v784 = vunpack.c.l.b16 %v672
      %v785 = vunpack.c.h.b16 %v672
      %v786 = vunpack.c.l.b16 %v673
      %v787 = vunpack.c.h.b16 %v673
      %v788 = vunpack.c.l.b16 %v674
      %v789 = vunpack.c.h.b16 %v674
      %v790 = vunpack.c.l.b16 %v675
      %v791 = vunpack.c.h.b16 %v675
      %v792 = vunpack.c.l.b16 %v676
      %v793 = vunpack.c.h.b16 %v676
      %v794 = vunpack.c.l.b16 %v677
      %v795 = vunpack.c.h.b16 %v677
      %v796 = vunpack.c.l.b16 %v678
      %v797 = vunpack.c.h.b16 %v678
      %v798 = vpack.c.b16 %v738, %v734
      %v799 = vpack.c.b16 %v739, %v735
      %v800 = vpack.c.b16 %v740, %v736
      %v801 = vpack.c.b16 %v741, %v737
      %v802 = vpack.c.b16 %v746, %v742
      %v803 = vpack.c.b16 %v747, %v743
      %v804 = vpack.c.b16 %v748, %v744
      %v805 = vpack.c.b16 %v749, %v745
      %v806 = vpack.c.b16 %v754, %v750
      %v807 = vpack.c.b16 %v755, %v751
      %v808 = vpack.c.b16 %v756, %v752
      %v809 = vpack.c.b16 %v757, %v753
      %v810 = vpack.c.b16 %v762, %v758
      %v811 = vpack.c.b16 %v763, %v759
      %v812 = vpack.c.b16 %v764, %v760
      %v813 = vpack.c.b16 %v765, %v761
      %v814 = vpack.c.b16 %v770, %v766
      %v815 = vpack.c.b16 %v771, %v767
      %v816 = vpack.c.b16 %v772, %v768
      %v817 = vpack.c.b16 %v773, %v769
      %v818 = vpack.c.b16 %v778, %v774
      %v819 = vpack.c.b16 %v779, %v775
      %v820 = vpack.c.b16 %v780, %v776
      %v821 = vpack.c.b16 %v781, %v777
      %v822 = vpack.c.b16 %v786, %v782
      %v823 = vpack.c.b16 %v787, %v783
      %v824 = vpack.c.b16 %v788, %v784
      %v825 = vpack.c.b16 %v789, %v785
      %v826 = vpack.c.b16 %v794, %v790
      %v827 = vpack.c.b16 %v795, %v791
      %v828 = vpack.c.b16 %v796, %v792
      %v829 = vpack.c.b16 %v797, %v793
      %862 = vmatprep.subr.bf16.mxu0 %v827
      %863 = vmatpush1.bf16.msra.mxu0 %v826
      %864 = vmatprep.subr.bf16.mxu0 %v823
      %865 = vmatpush1.bf16.msra.mxu0 %v822
      %866 = vmatprep.subr.bf16.mxu0 %v819
      %867 = vmatpush1.bf16.msra.mxu0 %v818
      %868 = vmatprep.subr.bf16.mxu0 %v815
      %869 = vmatpush1.bf16.msra.mxu0 %v814
      %870 = vmatprep.subr.bf16.mxu0 %v811
      %871 = vmatpush1.bf16.msra.mxu0 %v810
      %872 = vmatprep.subr.bf16.mxu0 %v807
      %873 = vmatpush1.bf16.msra.mxu0 %v806
      %874 = vmatprep.subr.bf16.mxu0 %v803
      %875 = vmatpush1.bf16.msra.mxu0 %v802
      %876 = vmatprep.subr.bf16.mxu0 %v799
      %877 = vmatpush1.bf16.msra.mxu0 %v798
      %878 = vmatprep.subr.bf16.mxu0 0
      %879 = vmatpush2.bf16.msra.mxu0 0
      %880 = vmatprep.subr.bf16.mxu0 0
      %881 = vmatpush2.bf16.msra.mxu0 0
      %882 = vmatprep.subr.bf16.mxu0 0
      %883 = vmatpush2.bf16.msra.mxu0 0
      %884 = vmatprep.subr.bf16.mxu0 0
      %885 = vmatpush2.bf16.msra.mxu0 0
      %886 = vmatprep.subr.bf16.mxu0 0
      %887 = vmatpush2.bf16.msra.mxu0 0
      %888 = vmatprep.subr.bf16.mxu0 0
      %889 = vmatpush2.bf16.msra.mxu0 0
      %890 = vmatprep.subr.bf16.mxu0 0
      %891 = vmatpush2.bf16.msra.mxu0 0
      %892 = vmatprep.subr.bf16.mxu0 0
      %893 = vmatpush2.bf16.msra.mxu0 0
      %894 = vmatprep.mubr.bf16.mxu0 0
      %895 = vmatmul.mubr.bf16.gmra.mxu0 %v701
      %v896 = vpop.f32.mrf.mxu0
      %v897 = vadd.f32 0.0, %v896
      %v898 = vpop.f32.mrf.mxu0
      %v899 = vadd.f32 0.0, %v898
      %v900 = vpop.f32.mrf.mxu0
      %v901 = vadd.f32 0.0, %v900
      %v902 = vpop.f32.mrf.mxu0
      %v903 = vadd.f32 0.0, %v902
      %904 = vdwg.mxu0
      %905 = vmatprep.subr.bf16.mxu0 %v829
      %906 = vmatpush1.bf16.msra.mxu0 %v828
      %907 = vmatprep.subr.bf16.mxu0 %v825
      %908 = vmatpush1.bf16.msra.mxu0 %v824
      %909 = vmatprep.subr.bf16.mxu0 %v821
      %910 = vmatpush1.bf16.msra.mxu0 %v820
      %911 = vmatprep.subr.bf16.mxu0 %v817
      %912 = vmatpush1.bf16.msra.mxu0 %v816
      %913 = vmatprep.subr.bf16.mxu0 %v813
      %914 = vmatpush1.bf16.msra.mxu0 %v812
      %915 = vmatprep.subr.bf16.mxu0 %v809
      %916 = vmatpush1.bf16.msra.mxu0 %v808
      %917 = vmatprep.subr.bf16.mxu0 %v805
      %918 = vmatpush1.bf16.msra.mxu0 %v804
      %919 = vmatprep.subr.bf16.mxu0 %v801
      %920 = vmatpush1.bf16.msra.mxu0 %v800
      %921 = vmatprep.subr.bf16.mxu0 0
      %922 = vmatpush2.bf16.msra.mxu0 0
      %923 = vmatprep.subr.bf16.mxu0 0
      %924 = vmatpush2.bf16.msra.mxu0 0
      %925 = vmatprep.subr.bf16.mxu0 0
      %926 = vmatpush2.bf16.msra.mxu0 0
      %927 = vmatprep.subr.bf16.mxu0 0
      %928 = vmatpush2.bf16.msra.mxu0 0
      %929 = vmatprep.subr.bf16.mxu0 0
      %930 = vmatpush2.bf16.msra.mxu0 0
      %931 = vmatprep.subr.bf16.mxu0 0
      %932 = vmatpush2.bf16.msra.mxu0 0
      %933 = vmatprep.subr.bf16.mxu0 0
      %934 = vmatpush2.bf16.msra.mxu0 0
      %935 = vmatprep.subr.bf16.mxu0 0
      %936 = vmatpush2.bf16.msra.mxu0 0
      %937 = vmatprep.mubr.bf16.mxu0 0
      %938 = vmatmul.mubr.bf16.gmra.mxu0 %v701
      %v939 = vpop.f32.mrf.mxu0
      %v940 = vadd.f32 0.0, %v939
      %v941 = vpop.f32.mrf.mxu0
      %v942 = vadd.f32 0.0, %v941
      %v943 = vpop.f32.mrf.mxu0
      %v944 = vadd.f32 0.0, %v943
      %v945 = vpop.f32.mrf.mxu0
      %v946 = vadd.f32 0.0, %v945
      %947 = vdwg.mxu0
      %v948 = vadd.f32 %v693, %v897
      %v949 = vadd.f32 %v694, %v899
      %v950 = vadd.f32 %v695, %v940
      %v951 = vadd.f32 %v696, %v942
      %v952 = vadd.f32 %v697, %v901
      %v953 = vadd.f32 %v698, %v903
      %v954 = vadd.f32 %v699, %v944
      %v955 = vadd.f32 %v700, %v946
      %v956 = vxor.u32 %v948, 2147483648
      %v957 = vxor.u32 %v952, 2147483648
      %v958 = vmul.f32 %v956, 1.442695
      %v959 = vpow.pop %v958
      %v960 = vmul.f32 %v957, 1.442695
      %v961 = vpow.pop %v960
      %v962 = vadd.f32 %v959, 1.0
      %v963 = vadd.f32 %v961, 1.0
      %v964 = vrcp.pop %v962
      %v965 = vmul.f32 1.0, %v964
      %v966 = vrcp.pop %v963
      %v967 = vmul.f32 1.0, %v966
      %v968 = vxor.u32 %v949, 2147483648
      %v969 = vxor.u32 %v953, 2147483648
      %v970 = vmul.f32 %v968, 1.442695
      %v971 = vpow.pop %v970
      %v972 = vmul.f32 %v969, 1.442695
      %v973 = vpow.pop %v972
      %v974 = vadd.f32 %v971, 1.0
      %v975 = vadd.f32 %v973, 1.0
      %v976 = vrcp.pop %v974
      %v977 = vmul.f32 1.0, %v976
      %v978 = vrcp.pop %v975
      %v979 = vmul.f32 1.0, %v978
      %v980 = vtanh.pop %v950
      %v981 = vtanh.pop %v954
      %v982 = vxor.u32 %v951, 2147483648
      %v983 = vxor.u32 %v955, 2147483648
      %v984 = vmul.f32 %v982, 1.442695
      %v985 = vpow.pop %v984
      %v986 = vmul.f32 %v983, 1.442695
      %v987 = vpow.pop %v986
      %v988 = vadd.f32 %v985, 1.0
      %v989 = vadd.f32 %v987, 1.0
      %v990 = vrcp.pop %v988
      %v991 = vmul.f32 1.0, %v990
      %v992 = vrcp.pop %v989
      %v993 = vmul.f32 1.0, %v992
      %v994 = vmul.f32 %v977, %v686
      %v995 = vmul.f32 %v979, %v687
      %v996 = vmul.f32 %v965, %v980
      %v997 = vmul.f32 %v967, %v981
      %v998 = vadd.f32 %v994, %v996
      %v999 = vadd.f32 %v995, %v997
      %v1000 = vtanh.pop %v998
      %v1001 = vtanh.pop %v999
      %v1002 = vmul.f32 %v991, %v1000
      %v1003 = vmul.f32 %v993, %v1001
      %v1004 = vstv %s683
      %vm1005 = vcmp.eq.s32.totalorder %v681, %v1004
      %vm1006 = vcmp.eq.s32.totalorder %v682, %v1004
      %v1007 = vsel %vm1005, 1, 0
      %v1008 = vsel %vm1006, 1, 0
      %1009 = vset.pattern.permute.xlu0 0
      %1010 = vperm.xlu0 %1009, %v1007
      %v1011 = vpop.permute.xlu0 %1010
      %1012 = vset.pattern.permute.xlu0 0
      %1013 = vperm.xlu0 %1012, %v1008
      %v1014 = vpop.permute.xlu0 %1013
      %vm1015 = vcmp.eq.s32.totalorder %v1011, 1
      %vm1016 = vcmp.eq.s32.totalorder %v1014, 1
      %v1017 = vsel %vm1015, %v1002, %v688
      %v1018 = vsel %vm1016, %v1003, %v689
      %s1019 = smul.u32 2, 4
      %s1020 = smul.addr %s1019, 8
      %s1021 = scalar_lea.vmem [#allocation4], %s1020
      %v1022 = vld [vmem:[%s1021] sm:$0xff]
      %v1023 = vld [vmem:[%s1021 + $0x8] sm:$0xff]
      %v1024 = vld [vmem:[%s1021 + $0x10] sm:$0xff]
      %v1025 = vld [vmem:[%s1021 + $0x18] sm:$0xff]
      %v1026 = vld [vmem:[%s1021 + $0x20] sm:$0xff]
      %v1027 = vld [vmem:[%s1021 + $0x28] sm:$0xff]
      %v1028 = vld [vmem:[%s1021 + $0x30] sm:$0xff]
      %v1029 = vld [vmem:[%s1021 + $0x38] sm:$0xff]
      %v1030 = vpack.c.bf16 %v1003, %v1002
      %1031 = vmatprep.subr.bf16.mxu0 %v827
      %1032 = vmatpush1.bf16.msra.mxu0 %v826
      %1033 = vmatprep.subr.bf16.mxu0 %v823
      %1034 = vmatpush1.bf16.msra.mxu0 %v822
      %1035 = vmatprep.subr.bf16.mxu0 %v819
      %1036 = vmatpush1.bf16.msra.mxu0 %v818
      %1037 = vmatprep.subr.bf16.mxu0 %v815
      %1038 = vmatpush1.bf16.msra.mxu0 %v814
      %1039 = vmatprep.subr.bf16.mxu0 %v811
      %1040 = vmatpush1.bf16.msra.mxu0 %v810
      %1041 = vmatprep.subr.bf16.mxu0 %v807
      %1042 = vmatpush1.bf16.msra.mxu0 %v806
      %1043 = vmatprep.subr.bf16.mxu0 %v803
      %1044 = vmatpush1.bf16.msra.mxu0 %v802
      %1045 = vmatprep.subr.bf16.mxu0 %v799
      %1046 = vmatpush1.bf16.msra.mxu0 %v798
      %1047 = vmatprep.subr.bf16.mxu0 0
      %1048 = vmatpush2.bf16.msra.mxu0 0
      %1049 = vmatprep.subr.bf16.mxu0 0
      %1050 = vmatpush2.bf16.msra.mxu0 0
      %1051 = vmatprep.subr.bf16.mxu0 0
      %1052 = vmatpush2.bf16.msra.mxu0 0
      %1053 = vmatprep.subr.bf16.mxu0 0
      %1054 = vmatpush2.bf16.msra.mxu0 0
      %1055 = vmatprep.subr.bf16.mxu0 0
      %1056 = vmatpush2.bf16.msra.mxu0 0
      %1057 = vmatprep.subr.bf16.mxu0 0
      %1058 = vmatpush2.bf16.msra.mxu0 0
      %1059 = vmatprep.subr.bf16.mxu0 0
      %1060 = vmatpush2.bf16.msra.mxu0 0
      %1061 = vmatprep.subr.bf16.mxu0 0
      %1062 = vmatpush2.bf16.msra.mxu0 0
      %1063 = vmatprep.mubr.bf16.mxu0 0
      %1064 = vmatmul.mubr.bf16.gmra.mxu0 %v1030
      %v1065 = vpop.f32.mrf.mxu0
      %v1066 = vadd.f32 0.0, %v1065
      %v1067 = vpop.f32.mrf.mxu0
      %v1068 = vadd.f32 0.0, %v1067
      %v1069 = vpop.f32.mrf.mxu0
      %v1070 = vadd.f32 0.0, %v1069
      %v1071 = vpop.f32.mrf.mxu0
      %v1072 = vadd.f32 0.0, %v1071
      %1073 = vdwg.mxu0
      %1074 = vmatprep.subr.bf16.mxu0 %v829
      %1075 = vmatpush1.bf16.msra.mxu0 %v828
      %1076 = vmatprep.subr.bf16.mxu0 %v825
      %1077 = vmatpush1.bf16.msra.mxu0 %v824
      %1078 = vmatprep.subr.bf16.mxu0 %v821
      %1079 = vmatpush1.bf16.msra.mxu0 %v820
      %1080 = vmatprep.subr.bf16.mxu0 %v817
      %1081 = vmatpush1.bf16.msra.mxu0 %v816
      %1082 = vmatprep.subr.bf16.mxu0 %v813
      %1083 = vmatpush1.bf16.msra.mxu0 %v812
      %1084 = vmatprep.subr.bf16.mxu0 %v809
      %1085 = vmatpush1.bf16.msra.mxu0 %v808
      %1086 = vmatprep.subr.bf16.mxu0 %v805
      %1087 = vmatpush1.bf16.msra.mxu0 %v804
      %1088 = vmatprep.subr.bf16.mxu0 %v801
      %1089 = vmatpush1.bf16.msra.mxu0 %v800
      %1090 = vmatprep.subr.bf16.mxu0 0
      %1091 = vmatpush2.bf16.msra.mxu0 0
      %1092 = vmatprep.subr.bf16.mxu0 0
      %1093 = vmatpush2.bf16.msra.mxu0 0
      %1094 = vmatprep.subr.bf16.mxu0 0
      %1095 = vmatpush2.bf16.msra.mxu0 0
      %1096 = vmatprep.subr.bf16.mxu0 0
      %1097 = vmatpush2.bf16.msra.mxu0 0
      %1098 = vmatprep.subr.bf16.mxu0 0
      %1099 = vmatpush2.bf16.msra.mxu0 0
      %1100 = vmatprep.subr.bf16.mxu0 0
      %1101 = vmatpush2.bf16.msra.mxu0 0
      %1102 = vmatprep.subr.bf16.mxu0 0
      %1103 = vmatpush2.bf16.msra.mxu0 0
      %1104 = vmatprep.subr.bf16.mxu0 0
      %1105 = vmatpush2.bf16.msra.mxu0 0
      %1106 = vmatprep.mubr.bf16.mxu0 0
      %1107 = vmatmul.mubr.bf16.gmra.mxu0 %v1030
      %v1108 = vpop.f32.mrf.mxu0
      %v1109 = vadd.f32 0.0, %v1108
      %v1110 = vpop.f32.mrf.mxu0
      %v1111 = vadd.f32 0.0, %v1110
      %v1112 = vpop.f32.mrf.mxu0
      %v1113 = vadd.f32 0.0, %v1112
      %v1114 = vpop.f32.mrf.mxu0
      %v1115 = vadd.f32 0.0, %v1114
      %1116 = vdwg.mxu0
      %v1117 = vadd.f32 %v1022, %v1066
      %v1118 = vadd.f32 %v1023, %v1068
      %v1119 = vadd.f32 %v1024, %v1109
      %v1120 = vadd.f32 %v1025, %v1111
      %v1121 = vadd.f32 %v1026, %v1070
      %v1122 = vadd.f32 %v1027, %v1072
      %v1123 = vadd.f32 %v1028, %v1113
      %v1124 = vadd.f32 %v1029, %v1115
      %v1125 = vxor.u32 %v1117, 2147483648
      %v1126 = vxor.u32 %v1121, 2147483648
      %v1127 = vmul.f32 %v1125, 1.442695
      %v1128 = vpow.pop %v1127
      %v1129 = vmul.f32 %v1126, 1.442695
      %v1130 = vpow.pop %v1129
      %v1131 = vadd.f32 %v1128, 1.0
      %v1132 = vadd.f32 %v1130, 1.0
      %v1133 = vrcp.pop %v1131
      %v1134 = vmul.f32 1.0, %v1133
      %v1135 = vrcp.pop %v1132
      %v1136 = vmul.f32 1.0, %v1135
      %v1137 = vxor.u32 %v1118, 2147483648
      %v1138 = vxor.u32 %v1122, 2147483648
      %v1139 = vmul.f32 %v1137, 1.442695
      %v1140 = vpow.pop %v1139
      %v1141 = vmul.f32 %v1138, 1.442695
      %v1142 = vpow.pop %v1141
      %v1143 = vadd.f32 %v1140, 1.0
      %v1144 = vadd.f32 %v1142, 1.0
      %v1145 = vrcp.pop %v1143
      %v1146 = vmul.f32 1.0, %v1145
      %v1147 = vrcp.pop %v1144
      %v1148 = vmul.f32 1.0, %v1147
      %v1149 = vtanh.pop %v1119
      %v1150 = vtanh.pop %v1123
      %v1151 = vxor.u32 %v1120, 2147483648
      %v1152 = vxor.u32 %v1124, 2147483648
      %v1153 = vmul.f32 %v1151, 1.442695
      %v1154 = vpow.pop %v1153
      %v1155 = vmul.f32 %v1152, 1.442695
      %v1156 = vpow.pop %v1155
      %v1157 = vadd.f32 %v1154, 1.0
      %v1158 = vadd.f32 %v1156, 1.0
      %v1159 = vrcp.pop %v1157
      %v1160 = vmul.f32 1.0, %v1159
      %v1161 = vrcp.pop %v1158
      %v1162 = vmul.f32 1.0, %v1161
      %v1163 = vmul.f32 %v1146, %v998
      %v1164 = vmul.f32 %v1148, %v999
      %v1165 = vmul.f32 %v1134, %v1149
      %v1166 = vmul.f32 %v1136, %v1150
      %v1167 = vadd.f32 %v1163, %v1165
      %v1168 = vadd.f32 %v1164, %v1166
      %v1169 = vtanh.pop %v1167
      %v1170 = vtanh.pop %v1168
      %v1171 = vmul.f32 %v1160, %v1169
      %v1172 = vmul.f32 %v1162, %v1170
      %s1173 = sadd.s32 %s683, 1
      %v1174 = vstv %s1173
      %vm1175 = vcmp.eq.s32.totalorder %v681, %v1174
      %vm1176 = vcmp.eq.s32.totalorder %v682, %v1174
      %v1177 = vsel %vm1175, 1, 0
      %v1178 = vsel %vm1176, 1, 0
      %1179 = vset.pattern.permute.xlu0 0
      %1180 = vperm.xlu0 %1179, %v1177
      %v1181 = vpop.permute.xlu0 %1180
      %1182 = vset.pattern.permute.xlu0 0
      %1183 = vperm.xlu0 %1182, %v1178
      %v1184 = vpop.permute.xlu0 %1183
      %vm1185 = vcmp.eq.s32.totalorder %v1181, 1
      %vm1186 = vcmp.eq.s32.totalorder %v1184, 1
      %v1187 = vsel %vm1185, %v1171, %v1017
      %v1188 = vsel %vm1186, %v1172, %v1018
      %s1189 = smul.u32 4, 4
      %s1190 = smul.addr %s1189, 8
      %s1191 = scalar_lea.vmem [#allocation4], %s1190
      %v1192 = vld [vmem:[%s1191] sm:$0xff]
      %v1193 = vld [vmem:[%s1191 + $0x8] sm:$0xff]
      %v1194 = vld [vmem:[%s1191 + $0x10] sm:$0xff]
      %v1195 = vld [vmem:[%s1191 + $0x18] sm:$0xff]
      %v1196 = vld [vmem:[%s1191 + $0x20] sm:$0xff]
      %v1197 = vld [vmem:[%s1191 + $0x28] sm:$0xff]
      %v1198 = vld [vmem:[%s1191 + $0x30] sm:$0xff]
      %v1199 = vld [vmem:[%s1191 + $0x38] sm:$0xff]
      %v1200 = vpack.c.bf16 %v1172, %v1171
      %1201 = vmatprep.subr.bf16.mxu0 %v827
      %1202 = vmatpush1.bf16.msra.mxu0 %v826
      %1203 = vmatprep.subr.bf16.mxu0 %v823
      %1204 = vmatpush1.bf16.msra.mxu0 %v822
      %1205 = vmatprep.subr.bf16.mxu0 %v819
      %1206 = vmatpush1.bf16.msra.mxu0 %v818
      %1207 = vmatprep.subr.bf16.mxu0 %v815
      %1208 = vmatpush1.bf16.msra.mxu0 %v814
      %1209 = vmatprep.subr.bf16.mxu0 %v811
      %1210 = vmatpush1.bf16.msra.mxu0 %v810
      %1211 = vmatprep.subr.bf16.mxu0 %v807
      %1212 = vmatpush1.bf16.msra.mxu0 %v806
      %1213 = vmatprep.subr.bf16.mxu0 %v803
      %1214 = vmatpush1.bf16.msra.mxu0 %v802
      %1215 = vmatprep.subr.bf16.mxu0 %v799
      %1216 = vmatpush1.bf16.msra.mxu0 %v798
      %1217 = vmatprep.subr.bf16.mxu0 0
      %1218 = vmatpush2.bf16.msra.mxu0 0
      %1219 = vmatprep.subr.bf16.mxu0 0
      %1220 = vmatpush2.bf16.msra.mxu0 0
      %1221 = vmatprep.subr.bf16.mxu0 0
      %1222 = vmatpush2.bf16.msra.mxu0 0
      %1223 = vmatprep.subr.bf16.mxu0 0
      %1224 = vmatpush2.bf16.msra.mxu0 0
      %1225 = vmatprep.subr.bf16.mxu0 0
      %1226 = vmatpush2.bf16.msra.mxu0 0
      %1227 = vmatprep.subr.bf16.mxu0 0
      %1228 = vmatpush2.bf16.msra.mxu0 0
      %1229 = vmatprep.subr.bf16.mxu0 0
      %1230 = vmatpush2.bf16.msra.mxu0 0
      %1231 = vmatprep.subr.bf16.mxu0 0
      %1232 = vmatpush2.bf16.msra.mxu0 0
      %1233 = vmatprep.mubr.bf16.mxu0 0
      %1234 = vmatmul.mubr.bf16.gmra.mxu0 %v1200
      %v1235 = vpop.f32.mrf.mxu0
      %v1236 = vadd.f32 0.0, %v1235
      %v1237 = vpop.f32.mrf.mxu0
      %v1238 = vadd.f32 0.0, %v1237
      %v1239 = vpop.f32.mrf.mxu0
      %v1240 = vadd.f32 0.0, %v1239
      %v1241 = vpop.f32.mrf.mxu0
      %v1242 = vadd.f32 0.0, %v1241
      %1243 = vdwg.mxu0
      %1244 = vmatprep.subr.bf16.mxu0 %v829
      %1245 = vmatpush1.bf16.msra.mxu0 %v828
      %1246 = vmatprep.subr.bf16.mxu0 %v825
      %1247 = vmatpush1.bf16.msra.mxu0 %v824
      %1248 = vmatprep.subr.bf16.mxu0 %v821
      %1249 = vmatpush1.bf16.msra.mxu0 %v820
      %1250 = vmatprep.subr.bf16.mxu0 %v817
      %1251 = vmatpush1.bf16.msra.mxu0 %v816
      %1252 = vmatprep.subr.bf16.mxu0 %v813
      %1253 = vmatpush1.bf16.msra.mxu0 %v812
      %1254 = vmatprep.subr.bf16.mxu0 %v809
      %1255 = vmatpush1.bf16.msra.mxu0 %v808
      %1256 = vmatprep.subr.bf16.mxu0 %v805
      %1257 = vmatpush1.bf16.msra.mxu0 %v804
      %1258 = vmatprep.subr.bf16.mxu0 %v801
      %1259 = vmatpush1.bf16.msra.mxu0 %v800
      %1260 = vmatprep.subr.bf16.mxu0 0
      %1261 = vmatpush2.bf16.msra.mxu0 0
      %1262 = vmatprep.subr.bf16.mxu0 0
      %1263 = vmatpush2.bf16.msra.mxu0 0
      %1264 = vmatprep.subr.bf16.mxu0 0
      %1265 = vmatpush2.bf16.msra.mxu0 0
      %1266 = vmatprep.subr.bf16.mxu0 0
      %1267 = vmatpush2.bf16.msra.mxu0 0
      %1268 = vmatprep.subr.bf16.mxu0 0
      %1269 = vmatpush2.bf16.msra.mxu0 0
      %1270 = vmatprep.subr.bf16.mxu0 0
      %1271 = vmatpush2.bf16.msra.mxu0 0
      %1272 = vmatprep.subr.bf16.mxu0 0
      %1273 = vmatpush2.bf16.msra.mxu0 0
      %1274 = vmatprep.subr.bf16.mxu0 0
      %1275 = vmatpush2.bf16.msra.mxu0 0
      %1276 = vmatprep.mubr.bf16.mxu0 0
      %1277 = vmatmul.mubr.bf16.gmra.mxu0 %v1200
      %v1278 = vpop.f32.mrf.mxu0
      %v1279 = vadd.f32 0.0, %v1278
      %v1280 = vpop.f32.mrf.mxu0
      %v1281 = vadd.f32 0.0, %v1280
      %v1282 = vpop.f32.mrf.mxu0
      %v1283 = vadd.f32 0.0, %v1282
      %v1284 = vpop.f32.mrf.mxu0
      %v1285 = vadd.f32 0.0, %v1284
      %1286 = vdwg.mxu0
      %v1287 = vadd.f32 %v1192, %v1236
      %v1288 = vadd.f32 %v1193, %v1238
      %v1289 = vadd.f32 %v1194, %v1279
      %v1290 = vadd.f32 %v1195, %v1281
      %v1291 = vadd.f32 %v1196, %v1240
      %v1292 = vadd.f32 %v1197, %v1242
      %v1293 = vadd.f32 %v1198, %v1283
      %v1294 = vadd.f32 %v1199, %v1285
      %v1295 = vxor.u32 %v1287, 2147483648
      %v1296 = vxor.u32 %v1291, 2147483648
      %v1297 = vmul.f32 %v1295, 1.442695
      %v1298 = vpow.pop %v1297
      %v1299 = vmul.f32 %v1296, 1.442695
      %v1300 = vpow.pop %v1299
      %v1301 = vadd.f32 %v1298, 1.0
      %v1302 = vadd.f32 %v1300, 1.0
      %v1303 = vrcp.pop %v1301
      %v1304 = vmul.f32 1.0, %v1303
      %v1305 = vrcp.pop %v1302
      %v1306 = vmul.f32 1.0, %v1305
      %v1307 = vxor.u32 %v1288, 2147483648
      %v1308 = vxor.u32 %v1292, 2147483648
      %v1309 = vmul.f32 %v1307, 1.442695
      %v1310 = vpow.pop %v1309
      %v1311 = vmul.f32 %v1308, 1.442695
      %v1312 = vpow.pop %v1311
      %v1313 = vadd.f32 %v1310, 1.0
      %v1314 = vadd.f32 %v1312, 1.0
      %v1315 = vrcp.pop %v1313
      %v1316 = vmul.f32 1.0, %v1315
      %v1317 = vrcp.pop %v1314
      %v1318 = vmul.f32 1.0, %v1317
      %v1319 = vtanh.pop %v1289
      %v1320 = vtanh.pop %v1293
      %v1321 = vxor.u32 %v1290, 2147483648
      %v1322 = vxor.u32 %v1294, 2147483648
      %v1323 = vmul.f32 %v1321, 1.442695
      %v1324 = vpow.pop %v1323
      %v1325 = vmul.f32 %v1322, 1.442695
      %v1326 = vpow.pop %v1325
      %v1327 = vadd.f32 %v1324, 1.0
      %v1328 = vadd.f32 %v1326, 1.0
      %v1329 = vrcp.pop %v1327
      %v1330 = vmul.f32 1.0, %v1329
      %v1331 = vrcp.pop %v1328
      %v1332 = vmul.f32 1.0, %v1331
      %v1333 = vmul.f32 %v1316, %v1167
      %v1334 = vmul.f32 %v1318, %v1168
      %v1335 = vmul.f32 %v1304, %v1319
      %v1336 = vmul.f32 %v1306, %v1320
      %v1337 = vadd.f32 %v1333, %v1335
      %v1338 = vadd.f32 %v1334, %v1336
      %v1339 = vtanh.pop %v1337
      %v1340 = vtanh.pop %v1338
      %v1341 = vmul.f32 %v1330, %v1339
      %v1342 = vmul.f32 %v1332, %v1340
      %s1343 = sadd.s32 %s683, 2
      %v1344 = vstv %s1343
      %vm1345 = vcmp.eq.s32.totalorder %v681, %v1344
      %vm1346 = vcmp.eq.s32.totalorder %v682, %v1344
      %v1347 = vsel %vm1345, 1, 0
      %v1348 = vsel %vm1346, 1, 0
      %1349 = vset.pattern.permute.xlu0 0
      %1350 = vperm.xlu0 %1349, %v1347
      %v1351 = vpop.permute.xlu0 %1350
      %1352 = vset.pattern.permute.xlu0 0
      %1353 = vperm.xlu0 %1352, %v1348
      %v1354 = vpop.permute.xlu0 %1353
      %vm1355 = vcmp.eq.s32.totalorder %v1351, 1
      %vm1356 = vcmp.eq.s32.totalorder %v1354, 1
      %v1357 = vsel %vm1355, %v1341, %v1187
      %v1358 = vsel %vm1356, %v1342, %v1188
      %s1359 = smul.u32 6, 4
      %s1360 = smul.addr %s1359, 8
      %s1361 = scalar_lea.vmem [#allocation4], %s1360
      %v1362 = vld [vmem:[%s1361] sm:$0xff]
      %v1363 = vld [vmem:[%s1361 + $0x8] sm:$0xff]
      %v1364 = vld [vmem:[%s1361 + $0x10] sm:$0xff]
      %v1365 = vld [vmem:[%s1361 + $0x18] sm:$0xff]
      %v1366 = vld [vmem:[%s1361 + $0x20] sm:$0xff]
      %v1367 = vld [vmem:[%s1361 + $0x28] sm:$0xff]
      %v1368 = vld [vmem:[%s1361 + $0x30] sm:$0xff]
      %v1369 = vld [vmem:[%s1361 + $0x38] sm:$0xff]
      %v1370 = vpack.c.bf16 %v1342, %v1341
      %1371 = vmatprep.subr.bf16.mxu0 %v827
      %1372 = vmatpush1.bf16.msra.mxu0 %v826
      %1373 = vmatprep.subr.bf16.mxu0 %v823
      %1374 = vmatpush1.bf16.msra.mxu0 %v822
      %1375 = vmatprep.subr.bf16.mxu0 %v819
      %1376 = vmatpush1.bf16.msra.mxu0 %v818
      %1377 = vmatprep.subr.bf16.mxu0 %v815
      %1378 = vmatpush1.bf16.msra.mxu0 %v814
      %1379 = vmatprep.subr.bf16.mxu0 %v811
      %1380 = vmatpush1.bf16.msra.mxu0 %v810
      %1381 = vmatprep.subr.bf16.mxu0 %v807
      %1382 = vmatpush1.bf16.msra.mxu0 %v806
      %1383 = vmatprep.subr.bf16.mxu0 %v803
      %1384 = vmatpush1.bf16.msra.mxu0 %v802
      %1385 = vmatprep.subr.bf16.mxu0 %v799
      %1386 = vmatpush1.bf16.msra.mxu0 %v798
      %1387 = vmatprep.subr.bf16.mxu0 0
      %1388 = vmatpush2.bf16.msra.mxu0 0
      %1389 = vmatprep.subr.bf16.mxu0 0
      %1390 = vmatpush2.bf16.msra.mxu0 0
      %1391 = vmatprep.subr.bf16.mxu0 0
      %1392 = vmatpush2.bf16.msra.mxu0 0
      %1393 = vmatprep.subr.bf16.mxu0 0
      %1394 = vmatpush2.bf16.msra.mxu0 0
      %1395 = vmatprep.subr.bf16.mxu0 0
      %1396 = vmatpush2.bf16.msra.mxu0 0
      %1397 = vmatprep.subr.bf16.mxu0 0
      %1398 = vmatpush2.bf16.msra.mxu0 0
      %1399 = vmatprep.subr.bf16.mxu0 0
      %1400 = vmatpush2.bf16.msra.mxu0 0
      %1401 = vmatprep.subr.bf16.mxu0 0
      %1402 = vmatpush2.bf16.msra.mxu0 0
      %1403 = vmatprep.mubr.bf16.mxu0 0
      %1404 = vmatmul.mubr.bf16.gmra.mxu0 %v1370
      %v1405 = vpop.f32.mrf.mxu0
      %v1406 = vadd.f32 0.0, %v1405
      %v1407 = vpop.f32.mrf.mxu0
      %v1408 = vadd.f32 0.0, %v1407
      %v1409 = vpop.f32.mrf.mxu0
      %v1410 = vadd.f32 0.0, %v1409
      %v1411 = vpop.f32.mrf.mxu0
      %v1412 = vadd.f32 0.0, %v1411
      %1413 = vdwg.mxu0
      %1414 = vmatprep.subr.bf16.mxu0 %v829
      %1415 = vmatpush1.bf16.msra.mxu0 %v828
      %1416 = vmatprep.subr.bf16.mxu0 %v825
      %1417 = vmatpush1.bf16.msra.mxu0 %v824
      %1418 = vmatprep.subr.bf16.mxu0 %v821
      %1419 = vmatpush1.bf16.msra.mxu0 %v820
      %1420 = vmatprep.subr.bf16.mxu0 %v817
      %1421 = vmatpush1.bf16.msra.mxu0 %v816
      %1422 = vmatprep.subr.bf16.mxu0 %v813
      %1423 = vmatpush1.bf16.msra.mxu0 %v812
      %1424 = vmatprep.subr.bf16.mxu0 %v809
      %1425 = vmatpush1.bf16.msra.mxu0 %v808
      %1426 = vmatprep.subr.bf16.mxu0 %v805
      %1427 = vmatpush1.bf16.msra.mxu0 %v804
      %1428 = vmatprep.subr.bf16.mxu0 %v801
      %1429 = vmatpush1.bf16.msra.mxu0 %v800
      %1430 = vmatprep.subr.bf16.mxu0 0
      %1431 = vmatpush2.bf16.msra.mxu0 0
      %1432 = vmatprep.subr.bf16.mxu0 0
      %1433 = vmatpush2.bf16.msra.mxu0 0
      %1434 = vmatprep.subr.bf16.mxu0 0
      %1435 = vmatpush2.bf16.msra.mxu0 0
      %1436 = vmatprep.subr.bf16.mxu0 0
      %1437 = vmatpush2.bf16.msra.mxu0 0
      %1438 = vmatprep.subr.bf16.mxu0 0
      %1439 = vmatpush2.bf16.msra.mxu0 0
      %1440 = vmatprep.subr.bf16.mxu0 0
      %1441 = vmatpush2.bf16.msra.mxu0 0
      %1442 = vmatprep.subr.bf16.mxu0 0
      %1443 = vmatpush2.bf16.msra.mxu0 0
      %1444 = vmatprep.subr.bf16.mxu0 0
      %1445 = vmatpush2.bf16.msra.mxu0 0
      %1446 = vmatprep.mubr.bf16.mxu0 0
      %1447 = vmatmul.mubr.bf16.gmra.mxu0 %v1370
      %v1448 = vpop.f32.mrf.mxu0
      %v1449 = vadd.f32 0.0, %v1448
      %v1450 = vpop.f32.mrf.mxu0
      %v1451 = vadd.f32 0.0, %v1450
      %v1452 = vpop.f32.mrf.mxu0
      %v1453 = vadd.f32 0.0, %v1452
      %v1454 = vpop.f32.mrf.mxu0
      %v1455 = vadd.f32 0.0, %v1454
      %1456 = vdwg.mxu0
      %v1457 = vadd.f32 %v1362, %v1406
      %v1458 = vadd.f32 %v1363, %v1408
      %v1459 = vadd.f32 %v1364, %v1449
      %v1460 = vadd.f32 %v1365, %v1451
      %v1461 = vadd.f32 %v1366, %v1410
      %v1462 = vadd.f32 %v1367, %v1412
      %v1463 = vadd.f32 %v1368, %v1453
      %v1464 = vadd.f32 %v1369, %v1455
      %v1465 = vxor.u32 %v1457, 2147483648
      %v1466 = vxor.u32 %v1461, 2147483648
      %v1467 = vmul.f32 %v1465, 1.442695
      %v1468 = vpow.pop %v1467
      %v1469 = vmul.f32 %v1466, 1.442695
      %v1470 = vpow.pop %v1469
      %v1471 = vadd.f32 %v1468, 1.0
      %v1472 = vadd.f32 %v1470, 1.0
      %v1473 = vrcp.pop %v1471
      %v1474 = vmul.f32 1.0, %v1473
      %v1475 = vrcp.pop %v1472
      %v1476 = vmul.f32 1.0, %v1475
      %v1477 = vxor.u32 %v1458, 2147483648
      %v1478 = vxor.u32 %v1462, 2147483648
      %v1479 = vmul.f32 %v1477, 1.442695
      %v1480 = vpow.pop %v1479
      %v1481 = vmul.f32 %v1478, 1.442695
      %v1482 = vpow.pop %v1481
      %v1483 = vadd.f32 %v1480, 1.0
      %v1484 = vadd.f32 %v1482, 1.0
      %v1485 = vrcp.pop %v1483
      %v1486 = vmul.f32 1.0, %v1485
      %v1487 = vrcp.pop %v1484
      %v1488 = vmul.f32 1.0, %v1487
      %v1489 = vtanh.pop %v1459
      %v1490 = vtanh.pop %v1463
      %v1491 = vxor.u32 %v1460, 2147483648
      %v1492 = vxor.u32 %v1464, 2147483648
      %v1493 = vmul.f32 %v1491, 1.442695
      %v1494 = vpow.pop %v1493
      %v1495 = vmul.f32 %v1492, 1.442695
      %v1496 = vpow.pop %v1495
      %v1497 = vadd.f32 %v1494, 1.0
      %v1498 = vadd.f32 %v1496, 1.0
      %v1499 = vrcp.pop %v1497
      %v1500 = vmul.f32 1.0, %v1499
      %v1501 = vrcp.pop %v1498
      %v1502 = vmul.f32 1.0, %v1501
      %v1503 = vmul.f32 %v1486, %v1337
      %v1504 = vmul.f32 %v1488, %v1338
      %v1505 = vmul.f32 %v1474, %v1489
      %v1506 = vmul.f32 %v1476, %v1490
      %v1507 = vadd.f32 %v1503, %v1505
      %v1508 = vadd.f32 %v1504, %v1506
      %v1509 = vtanh.pop %v1507
      %v1510 = vtanh.pop %v1508
      %v1511 = vmul.f32 %v1500, %v1509
      %v1512 = vmul.f32 %v1502, %v1510
      %s1513 = sadd.s32 %s683, 3
      %v1514 = vstv %s1513
      %vm1515 = vcmp.eq.s32.totalorder %v681, %v1514
      %vm1516 = vcmp.eq.s32.totalorder %v682, %v1514
      %v1517 = vsel %vm1515, 1, 0
      %v1518 = vsel %vm1516, 1, 0
      %1519 = vset.pattern.permute.xlu0 0
      %1520 = vperm.xlu0 %1519, %v1517
      %v1521 = vpop.permute.xlu0 %1520
      %1522 = vset.pattern.permute.xlu0 0
      %1523 = vperm.xlu0 %1522, %v1518
      %v1524 = vpop.permute.xlu0 %1523
      %vm1525 = vcmp.eq.s32.totalorder %v1521, 1
      %vm1526 = vcmp.eq.s32.totalorder %v1524, 1
      %v1527 = vsel %vm1525, %v1511, %v1357
      %v1528 = vsel %vm1526, %v1512, %v1358
      %1529 = vst [vmem:[#allocation2] sm:$0xff] %v1511
      %1530 = vst [vmem:[#allocation2 + $0x8] sm:$0xff] %v1512
      %1531 = vst [vmem:[#allocation3] sm:$0xff] %v1507
      %1532 = vst [vmem:[#allocation3 + $0x8] sm:$0xff] %v1508
      %1533 = vst [vmem:[%s5] sm:$0xff] %v1527
      %1534 = vst [vmem:[%s5 + $0x8] sm:$0xff] %v1528
      // Predicated region
      $region45: #{lstm_forward.3} parent=39 // pred_check
        %p1535 = pneg %p139
      $region46: #{lstm_forward.3} parent=39 // pred_check_branch
        %1537 = sbr.rel (%p1535) target = $region48
      $region47: #{lstm_forward.3} parent=39 // pred_region
        _
      $region48: #{lstm_forward.3} parent=39 // pred_fallthru
        _
      // Predicated region
      $region49: #{lstm_forward.3} parent=39 // pred_check
        %p1538 = pneg %p139
      $region50: #{lstm_forward.3} parent=39 // pred_check_branch
        %1540 = sbr.rel (%p1538) target = $region52
      $region51: #{lstm_forward.3} parent=39 // pred_region
        _
      $region52: #{lstm_forward.3} parent=39 // pred_fallthru
        _
    $region40: #{lstm_forward.3} parent=5 // pred_fallthru
      _
    %p1541 = scmp.le.s32.totalorder 2, %s11
    // Predicated region
    $region53: #{lstm_forward.3} parent=5 // pred_check
      %p1542 = pneg %p1541
    $region54: #{lstm_forward.3} parent=5 // pred_check_branch
      %1544 = sbr.rel (%p1542) target = $region56
    $region55: #{lstm_forward.3} parent=5 // pred_region
      %s1545 = ssub.s32 %s11, 2
    $region56: #{lstm_forward.3} parent=5 // pred_fallthru
      _
  $region6: #{lstm_forward.3} parent=0 // loop_footer
    %s15 = sadd.s32 1, %s11
  $region7: #{lstm_forward.3} parent=0 // loop_footer_branch
    %10 = sbr.rel target = $region3
  $region8: #{lstm_forward.3} parent=0 // loop_exit
    _

</llo_original>
